<compile_context>
chip_gen: v6e
topology: v6e:2x2x1
jax: 0.10.0
libtpu: 0.0.40
codegen_flags: <defaults>
</compile_context>

<pallas_src>
import functools

import jax
import jax.numpy as jnp
import numpy as np
from jax import lax
from jax.experimental import pallas as pl
from jax.experimental.pallas import tpu as pltpu

EPS = 1e-5


def _round_up(x, m):
    return (x + m - 1) // m * m


# ------------------------------ Pallas kernels --------------------------------

def _conv_taps(x_ref, w_ref, scratch, *, hs, ws, cin, fuse_taps):
    """3x3 conv (padding=1, no bias) on one padded, row-flattened image tile.

    x_ref:   (1, (hs+2)*(ws+2)+2, cin) bf16  spatially padded image with rows
             flattened (row r = i*(ws+2)+j) plus 2 trailing zero rows so every
             tap window stays in bounds.
    w_ref:   (9*cin, cout) bf16 if fuse_taps else (9, cin, cout) bf16
    scratch: (z_ref,) or (z_ref, im_ref)
             z_ref:  (hs*(ws+2), cout) f32  -- row r = y*(ws+2)+x holds conv
                     output (y, x) for x < ws; columns x in {ws, ws+1} are junk.
             im_ref: (hs*(ws+2), 9*cin) bf16 im2col scratch (fused path only).
    """
    z_ref = scratch[0]
    wrow = ws + 2
    nrows = hs * wrow

    if fuse_taps:
        im_ref = scratch[1]
        for dy in range(3):
            for dx in range(3):
                t = dy * 3 + dx
                s = dy * wrow + dx
                im_ref[:, t * cin:(t + 1) * cin] = x_ref[0, s:s + nrows, :]
        z_ref[...] = jnp.dot(im_ref[...], w_ref[...],
                             preferred_element_type=jnp.float32)
    else:
        for dy in range(3):
            for dx in range(3):
                t = dy * 3 + dx
                s = dy * wrow + dx
                prod = jnp.dot(x_ref[0, s:s + nrows, :], w_ref[t],
                               preferred_element_type=jnp.float32)
                if t == 0:
                    z_ref[...] = prod
                else:
                    z_ref[...] += prod


def _conv_stats_kernel(x_ref, w_ref, mask_ref, stats_ref, *scratch,
                       hs, ws, cin, fuse_taps):
    """Pass 1: conv -> per-image partial BN statistics.

    mask_ref:  (hs*(ws+2), 1) f32, 1.0 on valid columns / 0.0 on junk columns.
    stats_ref: (1, 2, cout) f32: row 0 = sum(z), row 1 = sum((z - tile_mean)^2),
               both over valid pixels only.
    """
    _conv_taps(x_ref, w_ref, scratch, hs=hs, ws=ws, cin=cin, fuse_taps=fuse_taps)
    z_ref = scratch[0]

    zm = z_ref[...] * mask_ref[...]
    s = jnp.sum(zm, axis=0, keepdims=True)                      # (1, cout)
    mu = s * (1.0 / float(hs * ws))                             # per-tile mean
    c = (z_ref[...] - mu) * mask_ref[...]                       # centered, masked
    stats_ref[0, 0:1, :] = s
    stats_ref[0, 1:2, :] = jnp.sum(c * c, axis=0, keepdims=True)


def _conv_norm_kernel(x_ref, w_ref, scale_ref, shift_ref, o_ref, *scratch,
                      hs, ws, cin, fuse_taps):
    """Pass 2: recompute conv, apply folded BN scale/shift, ReLU, store."""
    _conv_taps(x_ref, w_ref, scratch, hs=hs, ws=ws, cin=cin, fuse_taps=fuse_taps)
    y = scratch[0][...] * scale_ref[...] + shift_ref[...]
    # NOTE: with Cout < 128 (toy config) the store is lane-sparse; real UNet
    # channel counts (>=128) make it lane-dense.
    o_ref[0] = jnp.maximum(y, 0.0).astype(o_ref.dtype)


# ------------------------------- wrapper ---------------------------------------

def conv3x3_bn_relu(x_nhwc, w_oihw, gamma, beta, *, out_dtype=jnp.bfloat16):
    """Fused Conv2d(3x3, pad=1; bias folded into BN) + BatchNorm2d(train) + ReLU."""
    n, hs, ws, cin = x_nhwc.shape
    cout = w_oihw.shape[0]
    wrow = ws + 2
    nrows = hs * wrow
    flat_rows = (hs + 2) * wrow + 2
    fuse_taps = (9 * cin) <= 256

    # Zero-pad (conv padding=1), flatten rows, append 2 zero rows so the last tap
    # window is in bounds.  One padded HBM copy; no halo duplication, no gather.
    xpad = jnp.pad(x_nhwc.astype(jnp.bfloat16), ((0, 0), (1, 1), (1, 1), (0, 0)))
    xflat = jnp.pad(xpad.reshape(n, (hs + 2) * wrow, cin), ((0, 0), (0, 2), (0, 0)))

    # PyTorch (Cout, Cin, 3, 3) -> (3, 3, Cin, Cout) -> (9[*Cin], Cin, Cout), tap=dy*3+dx.
    wk = jnp.transpose(w_oihw, (2, 3, 1, 0)).reshape(9, cin, cout).astype(jnp.bfloat16)
    if fuse_taps:
        wk = wk.reshape(9 * cin, cout)

    # Valid-column mask for the row-flattened layout (junk columns ws, ws+1).
    mask_np = (np.arange(nrows) % wrow < ws).astype(np.float32).reshape(nrows, 1)
    mask = jnp.asarray(mask_np)

    x_spec = pl.BlockSpec((1, flat_rows, cin), lambda i: (i, 0, 0))
    w_spec = pl.BlockSpec(wk.shape, lambda i: (0,) * wk.ndim)
    vec_spec = pl.BlockSpec((1, cout), lambda i: (0, 0))
    mask_spec = pl.BlockSpec((nrows, 1), lambda i: (0, 0))

    scratch_shapes = [pltpu.VMEM((nrows, cout), jnp.float32)]
    if fuse_taps:
        scratch_shapes.append(pltpu.VMEM((nrows, 9 * cin), jnp.bfloat16))

    # VMEM budget: (sublane, lane)-padding aware, capped for v7x's 64 MiB VMEM.
    def blk_bytes(shape, itemsize):
        lead = int(np.prod(shape[:-2])) if len(shape) > 2 else 1
        return lead * _round_up(shape[-2], 8) * _round_up(shape[-1], 128) * itemsize

    out_itemsize = np.dtype(out_dtype).itemsize
    need = (2 * blk_bytes((1, flat_rows, cin), 2)          # double-buffered input
            + 2 * blk_bytes(wk.shape, 2)                   # weights
            + 2 * blk_bytes((1, nrows, cout), out_itemsize)
            + blk_bytes((nrows, cout), 4)                  # z scratch
            + (blk_bytes((nrows, 9 * cin), 2) if fuse_taps else 0)
            + blk_bytes((nrows, 1), 4)
            + 4 * blk_bytes((1, cout), 4))
    vmem_limit = int(min(max(need + (4 << 20), 16 << 20), 40 << 20))

    cparams = pltpu.CompilerParams(dimension_semantics=("parallel",),
                                   vmem_limit_bytes=vmem_limit)
    conv_flops = 2 * n * hs * ws * 9 * cin * cout

    # ---- pass 1: per-image partial BN statistics --------------------------------
    stats = pl.pallas_call(
        functools.partial(_conv_stats_kernel, hs=hs, ws=ws, cin=cin,
                          fuse_taps=fuse_taps),
        out_shape=jax.ShapeDtypeStruct((n, 2, cout), jnp.float32),
        grid_spec=pltpu.PrefetchScalarGridSpec(
            num_scalar_prefetch=0,
            grid=(n,),
            in_specs=[x_spec, w_spec, mask_spec],
            out_specs=pl.BlockSpec((1, 2, cout), lambda i: (i, 0, 0)),
            scratch_shapes=scratch_shapes),
        compiler_params=cparams,
        cost_estimate=pl.CostEstimate(
            flops=conv_flops, transcendentals=0,
            bytes_accessed=int(xflat.size * 2 + wk.size * 2 + n * 2 * cout * 4)),
    )(xflat, wk, mask)

    # Combine per-image partial stats with the Chan parallel-variance formula
    # (numerically stable), then fold gamma/beta into one scale/shift per channel.
    cnt = float(hs * ws)
    m = float(n) * cnt
    tile_sum = stats[:, 0, :]                       # (n, cout)
    tile_m2 = stats[:, 1, :]                        # within-tile centered SS
    tile_mean = tile_sum / cnt
    mean = jnp.sum(tile_sum, axis=0) / m            # (cout,)
    m2 = jnp.sum(tile_m2, axis=0) + cnt * jnp.sum((tile_mean - mean[None, :]) ** 2,
                                                  axis=0)
    var = m2 / m                                    # biased variance (train-mode BN)
    scale = (gamma.astype(jnp.float32) * lax.rsqrt(var + EPS)).reshape(1, cout)
    shift = beta.astype(jnp.float32).reshape(1, cout) - mean.reshape(1, cout) * scale

    # ---- pass 2: recompute conv (bandwidth-cheap), normalize + ReLU, store ------
    out = pl.pallas_call(
        functools.partial(_conv_norm_kernel, hs=hs, ws=ws, cin=cin,
                          fuse_taps=fuse_taps),
        out_shape=jax.ShapeDtypeStruct((n, nrows, cout), out_dtype),
        grid_spec=pltpu.PrefetchScalarGridSpec(
            num_scalar_prefetch=0,
            grid=(n,),
            in_specs=[x_spec, w_spec, vec_spec, vec_spec],
            out_specs=pl.BlockSpec((1, nrows, cout), lambda i: (i, 0, 0)),
            scratch_shapes=scratch_shapes),
        compiler_params=cparams,
        cost_estimate=pl.CostEstimate(
            flops=conv_flops, transcendentals=0,
            bytes_accessed=int(xflat.size * 2 + wk.size * 2
                               + n * nrows * cout * out_itemsize)),
    )(xflat, wk, scale, shift)

    # Drop the junk columns from the row-flattened layout (the slice fuses with
    # the next stage's pad / the final transpose in XLA).
    return out.reshape(n, hs, wrow, cout)[:, :, :ws, :]


def down_forward(x_nchw, params):
    """Down.forward: MaxPool2d(2) -> [Conv3x3 -> BN -> ReLU] x 2 (NCHW in/out)."""
    n, c, h, w = x_nchw.shape
    x = jnp.transpose(x_nchw, (0, 2, 3, 1))                       # NHWC
    x = x.reshape(n, h // 2, 2, w // 2, 2, c).max(axis=(2, 4))    # MaxPool2d(2)
    # Conv biases are intentionally not applied: training-mode BN mean subtraction
    # cancels them exactly (the reference keeps them for parity).
    y = conv3x3_bn_relu(x, params["w1"], params["g1"], params["be1"],
                        out_dtype=jnp.bfloat16)   # next stage consumes bf16 anyway
    y = conv3x3_bn_relu(y, params["w2"], params["g2"], params["be2"],
                        out_dtype=jnp.float32)
    return jnp.transpose(y, (0, 3, 1, 2))                         # NCHW


# ------------------------ deterministic parameter init -------------------------

def init_params(key, in_channels, out_channels):
    mid = out_channels  # DoubleConv default: mid_channels = out_channels
    k1, k2, k3, k4 = jax.random.split(key, 4)
    return {
        "w1": 0.1 * jax.random.normal(k1, (mid, in_channels, 3, 3), jnp.float32),
        "b1": 0.1 * jax.random.normal(k2, (mid,), jnp.float32),
        "g1": 1.0 + 0.05 * jnp.arange(mid, dtype=jnp.float32),
        "be1": 0.02 * jnp.arange(mid, dtype=jnp.float32),
        "w2": 0.1 * jax.random.normal(k3, (out_channels, mid, 3, 3), jnp.float32),
        "b2": 0.1 * jax.random.normal(k4, (out_channels,), jnp.float32),
        "g2": 1.0 - 0.03 * jnp.arange(out_channels, dtype=jnp.float32),
        "be2": -0.01 * jnp.arange(out_channels, dtype=jnp.float32),
    }


# ------------------------------ pure-JAX references -----------------------------

def _ref_cbr(x, w, b, g, be, round_bf16):
    if round_bf16:  # mirror the kernel's bf16 matmul-input policy
        x = x.astype(jnp.bfloat16).astype(jnp.float32)
        w = w.astype(jnp.bfloat16).astype(jnp.float32)
    z = lax.conv_general_dilated(
        x, w, window_strides=(1, 1), padding=((1, 1), (1, 1)),
        dimension_numbers=("NCHW", "OIHW", "NCHW"),
        precision=lax.Precision.HIGHEST)
    z = z + b[None, :, None, None]
    mean = jnp.mean(z, axis=(0, 2, 3), keepdims=True)
    var = jnp.mean((z - mean) ** 2, axis=(0, 2, 3), keepdims=True)
    zn = (z - mean) * lax.rsqrt(var + EPS)
    return jnp.maximum(g[None, :, None, None] * zn + be[None, :, None, None], 0.0)


def ref_down(x, params, round_bf16=False):
    y = lax.reduce_window(x, -jnp.inf, lax.max, (1, 1, 2, 2), (1, 1, 2, 2), "VALID")
    y = _ref_cbr(y, params["w1"], params["b1"], params["g1"], params["be1"], round_bf16)
    y = _ref_cbr(y, params["w2"], params["b2"], params["g2"], params["be2"], round_bf16)
    return y


# ----------------------------------- main ---------------------------------------

if __name__ == "__main__":
    N, C_IN, C_OUT, H, W = 2, 4, 8, 16, 16

    key = jax.random.PRNGKey(0)
    kx, kp = jax.random.split(key)
    x = jax.random.normal(kx, (N, C_IN, H, W), jnp.float32)   # NCHW, like PyTorch
    params = init_params(kp, C_IN, C_OUT)

    out = jax.block_until_ready(jax.jit(down_forward)(x, params))
    assert out.shape == (N, C_OUT, H // 2, W // 2), out.shape

    # Tight check vs. a precision-matched reference (conv inputs rounded to bf16).
    ref_bf = jax.block_until_ready(
        jax.jit(functools.partial(ref_down, round_bf16=True))(x, params))
    np.testing.assert_allclose(np.asarray(out), np.asarray(ref_bf),
                               rtol=5e-3, atol=5e-3)

    # Sanity check vs. the full-f32 reference (bounds the bf16 matmul error).
    ref_f32 = jax.block_until_ready(jax.jit(ref_down)(x, params))
    np.testing.assert_allclose(np.asarray(out), np.asarray(ref_f32),
                               rtol=5e-2, atol=5e-2)

    print("KERNEL_OK")
</pallas_src>

<mosaic_0001>
module attributes {stable_mosaic.version = 11 : i64} {
  func.func @_conv_stats_kernel(%arg0: i32, %arg1: memref<1x102x4xbf16, #tpu.memory_space<vmem>>, %arg2: memref<36x8xbf16, #tpu.memory_space<vmem>>, %arg3: memref<80x1xf32, #tpu.memory_space<vmem>>, %arg4: memref<1x2x8xf32, #tpu.memory_space<vmem>>, %arg5: memref<80x8xf32, #tpu.memory_space<vmem>>, %arg6: memref<80x36xbf16, #tpu.memory_space<vmem>>) attributes {dimension_semantics = [#tpu.dimension_semantics<parallel>], iteration_bounds = array<i64: 2>, scalar_prefetch = 0 : i64, scratch_operands = 2 : i64, tpu.core_type = #tpu.core_type<tc>, window_params = [{transform_indices = @transform_0, window_bounds = array<i64: 1, 102, 4>}, {pipeline_mode = #tpu.pipeline_mode<synchronous>, transform_indices = @transform_1, window_bounds = array<i64: 36, 8>}, {pipeline_mode = #tpu.pipeline_mode<synchronous>, transform_indices = @transform_2, window_bounds = array<i64: 80, 1>}, {transform_indices = @transform_3, window_bounds = array<i64: 1, 2, 8>}]} {
    %c0 = arith.constant 0 : index
    %c0_0 = arith.constant 0 : index
    %c0_1 = arith.constant 0 : index
    %0 = vector.load %arg1[%c0, %c0_0, %c0_1] : memref<1x102x4xbf16, #tpu.memory_space<vmem>>, vector<1x80x4xbf16>
    %1 = vector.shape_cast %0 : vector<1x80x4xbf16> to vector<80x4xbf16>
    %c0_2 = arith.constant 0 : index
    %c0_3 = arith.constant 0 : index
    %2 = vector.load %arg6[%c0_2, %c0_3] : memref<80x36xbf16, #tpu.memory_space<vmem>>, vector<80x4xbf16>
    tpu.vector_store %arg6[%c0_2, %c0_3], %1 {strides = array<i32>} : memref<80x36xbf16, #tpu.memory_space<vmem>>, vector<80x4xbf16>,
    %c0_4 = arith.constant 0 : index
    %c1 = arith.constant 1 : index
    %c0_5 = arith.constant 0 : index
    %3 = vector.load %arg1[%c0_4, %c1, %c0_5] : memref<1x102x4xbf16, #tpu.memory_space<vmem>>, vector<1x80x4xbf16>
    %4 = vector.shape_cast %3 : vector<1x80x4xbf16> to vector<80x4xbf16>
    %c0_6 = arith.constant 0 : index
    %c4 = arith.constant 4 : index
    %5 = vector.load %arg6[%c0_6, %c4] : memref<80x36xbf16, #tpu.memory_space<vmem>>, vector<80x4xbf16>
    tpu.vector_store %arg6[%c0_6, %c4], %4 {strides = array<i32>} : memref<80x36xbf16, #tpu.memory_space<vmem>>, vector<80x4xbf16>,
    %c0_7 = arith.constant 0 : index
    %c2 = arith.constant 2 : index
    %c0_8 = arith.constant 0 : index
    %6 = vector.load %arg1[%c0_7, %c2, %c0_8] : memref<1x102x4xbf16, #tpu.memory_space<vmem>>, vector<1x80x4xbf16>
    %7 = vector.shape_cast %6 : vector<1x80x4xbf16> to vector<80x4xbf16>
    %c0_9 = arith.constant 0 : index
    %c8 = arith.constant 8 : index
    %8 = vector.load %arg6[%c0_9, %c8] : memref<80x36xbf16, #tpu.memory_space<vmem>>, vector<80x4xbf16>
    tpu.vector_store %arg6[%c0_9, %c8], %7 {strides = array<i32>} : memref<80x36xbf16, #tpu.memory_space<vmem>>, vector<80x4xbf16>,
    %c0_10 = arith.constant 0 : index
    %c10 = arith.constant 10 : index
    %c0_11 = arith.constant 0 : index
    %9 = vector.load %arg1[%c0_10, %c10, %c0_11] : memref<1x102x4xbf16, #tpu.memory_space<vmem>>, vector<1x80x4xbf16>
    %10 = vector.shape_cast %9 : vector<1x80x4xbf16> to vector<80x4xbf16>
    %c0_12 = arith.constant 0 : index
    %c12 = arith.constant 12 : index
    %11 = vector.load %arg6[%c0_12, %c12] : memref<80x36xbf16, #tpu.memory_space<vmem>>, vector<80x4xbf16>
    tpu.vector_store %arg6[%c0_12, %c12], %10 {strides = array<i32>} : memref<80x36xbf16, #tpu.memory_space<vmem>>, vector<80x4xbf16>,
    %c0_13 = arith.constant 0 : index
    %c11 = arith.constant 11 : index
    %c0_14 = arith.constant 0 : index
    %12 = vector.load %arg1[%c0_13, %c11, %c0_14] : memref<1x102x4xbf16, #tpu.memory_space<vmem>>, vector<1x80x4xbf16>
    %13 = vector.shape_cast %12 : vector<1x80x4xbf16> to vector<80x4xbf16>
    %c0_15 = arith.constant 0 : index
    %c16 = arith.constant 16 : index
    %14 = vector.load %arg6[%c0_15, %c16] : memref<80x36xbf16, #tpu.memory_space<vmem>>, vector<80x4xbf16>
    tpu.vector_store %arg6[%c0_15, %c16], %13 {strides = array<i32>} : memref<80x36xbf16, #tpu.memory_space<vmem>>, vector<80x4xbf16>,
    %c0_16 = arith.constant 0 : index
    %c12_17 = arith.constant 12 : index
    %c0_18 = arith.constant 0 : index
    %15 = vector.load %arg1[%c0_16, %c12_17, %c0_18] : memref<1x102x4xbf16, #tpu.memory_space<vmem>>, vector<1x80x4xbf16>
    %16 = vector.shape_cast %15 : vector<1x80x4xbf16> to vector<80x4xbf16>
    %c0_19 = arith.constant 0 : index
    %c20 = arith.constant 20 : index
    %17 = vector.load %arg6[%c0_19, %c20] : memref<80x36xbf16, #tpu.memory_space<vmem>>, vector<80x4xbf16>
    tpu.vector_store %arg6[%c0_19, %c20], %16 {strides = array<i32>} : memref<80x36xbf16, #tpu.memory_space<vmem>>, vector<80x4xbf16>,
    %c0_20 = arith.constant 0 : index
    %c20_21 = arith.constant 20 : index
    %c0_22 = arith.constant 0 : index
    %18 = vector.load %arg1[%c0_20, %c20_21, %c0_22] : memref<1x102x4xbf16, #tpu.memory_space<vmem>>, vector<1x80x4xbf16>
    %19 = vector.shape_cast %18 : vector<1x80x4xbf16> to vector<80x4xbf16>
    %c0_23 = arith.constant 0 : index
    %c24 = arith.constant 24 : index
    %20 = vector.load %arg6[%c0_23, %c24] : memref<80x36xbf16, #tpu.memory_space<vmem>>, vector<80x4xbf16>
    tpu.vector_store %arg6[%c0_23, %c24], %19 {strides = array<i32>} : memref<80x36xbf16, #tpu.memory_space<vmem>>, vector<80x4xbf16>,
    %c0_24 = arith.constant 0 : index
    %c21 = arith.constant 21 : index
    %c0_25 = arith.constant 0 : index
    %21 = vector.load %arg1[%c0_24, %c21, %c0_25] : memref<1x102x4xbf16, #tpu.memory_space<vmem>>, vector<1x80x4xbf16>
    %22 = vector.shape_cast %21 : vector<1x80x4xbf16> to vector<80x4xbf16>
    %c0_26 = arith.constant 0 : index
    %c28 = arith.constant 28 : index
    %23 = vector.load %arg6[%c0_26, %c28] : memref<80x36xbf16, #tpu.memory_space<vmem>>, vector<80x4xbf16>
    tpu.vector_store %arg6[%c0_26, %c28], %22 {strides = array<i32>} : memref<80x36xbf16, #tpu.memory_space<vmem>>, vector<80x4xbf16>,
    %c0_27 = arith.constant 0 : index
    %c22 = arith.constant 22 : index
    %c0_28 = arith.constant 0 : index
    %24 = vector.load %arg1[%c0_27, %c22, %c0_28] : memref<1x102x4xbf16, #tpu.memory_space<vmem>>, vector<1x80x4xbf16>
    %25 = vector.shape_cast %24 : vector<1x80x4xbf16> to vector<80x4xbf16>
    %c0_29 = arith.constant 0 : index
    %c32 = arith.constant 32 : index
    %26 = vector.load %arg6[%c0_29, %c32] : memref<80x36xbf16, #tpu.memory_space<vmem>>, vector<80x4xbf16>
    tpu.vector_store %arg6[%c0_29, %c32], %25 {strides = array<i32>} : memref<80x36xbf16, #tpu.memory_space<vmem>>, vector<80x4xbf16>,
    %c0_30 = arith.constant 0 : index
    %c0_31 = arith.constant 0 : index
    %27 = vector.load %arg6[%c0_30, %c0_31] : memref<80x36xbf16, #tpu.memory_space<vmem>>, vector<80x36xbf16>
    %c0_32 = arith.constant 0 : index
    %c0_33 = arith.constant 0 : index
    %28 = vector.load %arg2[%c0_32, %c0_33] : memref<36x8xbf16, #tpu.memory_space<vmem>>, vector<36x8xbf16>
    %cst = arith.constant dense<0.000000e+00> : vector<80x8xf32>
    %29 = tpu.matmul %27, %28, %cst {dimension_numbers = #tpu.dot_dimension_numbers<[1], [0], [0], [1], [0, 0, 1, 1], [], []>} : vector<80x36xbf16>, vector<36x8xbf16>, vector<80x8xf32> -> vector<80x8xf32>
    %c0_34 = arith.constant 0 : index
    %c0_35 = arith.constant 0 : index
    %30 = vector.load %arg5[%c0_34, %c0_35] : memref<80x8xf32, #tpu.memory_space<vmem>>, vector<80x8xf32>
    tpu.vector_store %arg5[%c0_34, %c0_35], %29 {strides = array<i32>} : memref<80x8xf32, #tpu.memory_space<vmem>>, vector<80x8xf32>,
    %c0_36 = arith.constant 0 : index
    %c0_37 = arith.constant 0 : index
    %31 = vector.load %arg5[%c0_36, %c0_37] : memref<80x8xf32, #tpu.memory_space<vmem>>, vector<80x8xf32>
    %c0_38 = arith.constant 0 : index
    %c0_39 = arith.constant 0 : index
    %32 = vector.load %arg3[%c0_38, %c0_39] : memref<80x1xf32, #tpu.memory_space<vmem>>, vector<80x1xf32>
    %33 = vector.broadcast %32 : vector<80x1xf32> to vector<80x8xf32>
    %34 = arith.mulf %31, %33 : vector<80x8xf32>
    %cst_40 = arith.constant dense<0.000000e+00> : vector<8xf32>
    %35 = vector.multi_reduction <add>, %34, %cst_40 [0] : vector<80x8xf32> to vector<8xf32>
    %36 = vector.shape_cast %35 : vector<8xf32> to vector<1x8xf32>
    %cst_41 = arith.constant 1.562500e-02 : f32
    %37 = vector.broadcast %cst_41 : f32 to vector<1x8xf32>
    %38 = arith.mulf %36, %37 : vector<1x8xf32>
    %c0_42 = arith.constant 0 : index
    %c0_43 = arith.constant 0 : index
    %39 = vector.load %arg5[%c0_42, %c0_43] : memref<80x8xf32, #tpu.memory_space<vmem>>, vector<80x8xf32>
    %40 = vector.broadcast %38 : vector<1x8xf32> to vector<80x8xf32>
    %41 = arith.subf %39, %40 : vector<80x8xf32>
    %c0_44 = arith.constant 0 : index
    %c0_45 = arith.constant 0 : index
    %42 = vector.load %arg3[%c0_44, %c0_45] : memref<80x1xf32, #tpu.memory_space<vmem>>, vector<80x1xf32>
    %43 = vector.broadcast %42 : vector<80x1xf32> to vector<80x8xf32>
    %44 = arith.mulf %41, %43 : vector<80x8xf32>
    %c0_46 = arith.constant 0 : index
    %c0_47 = arith.constant 0 : index
    %c0_48 = arith.constant 0 : index
    %45 = vector.load %arg4[%c0_46, %c0_47, %c0_48] : memref<1x2x8xf32, #tpu.memory_space<vmem>>, vector<1x1x8xf32>
    %46 = vector.shape_cast %45 : vector<1x1x8xf32> to vector<1x8xf32>
    %47 = vector.shape_cast %36 : vector<1x8xf32> to vector<1x1x8xf32>
    tpu.vector_store %arg4[%c0_46, %c0_47, %c0_48], %47 {strides = array<i32>} : memref<1x2x8xf32, #tpu.memory_space<vmem>>, vector<1x1x8xf32>,
    %48 = arith.mulf %44, %44 : vector<80x8xf32>
    %cst_49 = arith.constant dense<0.000000e+00> : vector<8xf32>
    %49 = vector.multi_reduction <add>, %48, %cst_49 [0] : vector<80x8xf32> to vector<8xf32>
    %50 = vector.shape_cast %49 : vector<8xf32> to vector<1x8xf32>
    %c0_50 = arith.constant 0 : index
    %c1_51 = arith.constant 1 : index
    %c0_52 = arith.constant 0 : index
    %51 = vector.load %arg4[%c0_50, %c1_51, %c0_52] : memref<1x2x8xf32, #tpu.memory_space<vmem>>, vector<1x1x8xf32>
    %52 = vector.shape_cast %51 : vector<1x1x8xf32> to vector<1x8xf32>
    %53 = vector.shape_cast %50 : vector<1x8xf32> to vector<1x1x8xf32>
    tpu.vector_store %arg4[%c0_50, %c1_51, %c0_52], %53 {strides = array<i32>} : memref<1x2x8xf32, #tpu.memory_space<vmem>>, vector<1x1x8xf32>,
    return
  }
  func.func @transform_0(%arg0: i32) -> (i32, i32, i32) {
    %c0_i32 = arith.constant 0 : i32
    %c0_i32_0 = arith.constant 0 : i32
    %c0_i32_1 = arith.constant 0 : i32
    return %arg0, %c0_i32, %c0_i32_0 : i32, i32, i32
  }
  func.func @transform_1(%arg0: i32) -> (i32, i32) {
    %c0_i32 = arith.constant 0 : i32
    %c0_i32_0 = arith.constant 0 : i32
    %c0_i32_1 = arith.constant 0 : i32
    return %c0_i32, %c0_i32_0 : i32, i32
  }
  func.func @transform_2(%arg0: i32) -> (i32, i32) {
    %c0_i32 = arith.constant 0 : i32
    %c0_i32_0 = arith.constant 0 : i32
    %c0_i32_1 = arith.constant 0 : i32
    return %c0_i32, %c0_i32_0 : i32, i32
  }
  func.func @transform_3(%arg0: i32) -> (i32, i32, i32) {
    %c0_i32 = arith.constant 0 : i32
    %c0_i32_0 = arith.constant 0 : i32
    %c0_i32_1 = arith.constant 0 : i32
    return %arg0, %c0_i32, %c0_i32_0 : i32, i32, i32
  }
}

module attributes {stable_mosaic.version = 11 : i64} {
  func.func @_conv_norm_kernel(%arg0: i32, %arg1: memref<1x102x4xbf16, #tpu.memory_space<vmem>>, %arg2: memref<36x8xbf16, #tpu.memory_space<vmem>>, %arg3: memref<1x8xf32, #tpu.memory_space<vmem>>, %arg4: memref<1x8xf32, #tpu.memory_space<vmem>>, %arg5: memref<1x80x8xbf16, #tpu.memory_space<vmem>>, %arg6: memref<80x8xf32, #tpu.memory_space<vmem>>, %arg7: memref<80x36xbf16, #tpu.memory_space<vmem>>) attributes {dimension_semantics = [#tpu.dimension_semantics<parallel>], iteration_bounds = array<i64: 2>, scalar_prefetch = 0 : i64, scratch_operands = 2 : i64, tpu.core_type = #tpu.core_type<tc>, window_params = [{transform_indices = @transform_0, window_bounds = array<i64: 1, 102, 4>}, {pipeline_mode = #tpu.pipeline_mode<synchronous>, transform_indices = @transform_1, window_bounds = array<i64: 36, 8>}, {pipeline_mode = #tpu.pipeline_mode<synchronous>, transform_indices = @transform_2, window_bounds = array<i64: 1, 8>}, {pipeline_mode = #tpu.pipeline_mode<synchronous>, transform_indices = @transform_3, window_bounds = array<i64: 1, 8>}, {transform_indices = @transform_4, window_bounds = array<i64: 1, 80, 8>}]} {
    %c0 = arith.constant 0 : index
    %c0_0 = arith.constant 0 : index
    %c0_1 = arith.constant 0 : index
    %0 = vector.load %arg1[%c0, %c0_0, %c0_1] : memref<1x102x4xbf16, #tpu.memory_space<vmem>>, vector<1x80x4xbf16>
    %1 = vector.shape_cast %0 : vector<1x80x4xbf16> to vector<80x4xbf16>
    %c0_2 = arith.constant 0 : index
    %c0_3 = arith.constant 0 : index
    %2 = vector.load %arg7[%c0_2, %c0_3] : memref<80x36xbf16, #tpu.memory_space<vmem>>, vector<80x4xbf16>
    tpu.vector_store %arg7[%c0_2, %c0_3], %1 {strides = array<i32>} : memref<80x36xbf16, #tpu.memory_space<vmem>>, vector<80x4xbf16>,
    %c0_4 = arith.constant 0 : index
    %c1 = arith.constant 1 : index
    %c0_5 = arith.constant 0 : index
    %3 = vector.load %arg1[%c0_4, %c1, %c0_5] : memref<1x102x4xbf16, #tpu.memory_space<vmem>>, vector<1x80x4xbf16>
    %4 = vector.shape_cast %3 : vector<1x80x4xbf16> to vector<80x4xbf16>
    %c0_6 = arith.constant 0 : index
    %c4 = arith.constant 4 : index
    %5 = vector.load %arg7[%c0_6, %c4] : memref<80x36xbf16, #tpu.memory_space<vmem>>, vector<80x4xbf16>
    tpu.vector_store %arg7[%c0_6, %c4], %4 {strides = array<i32>} : memref<80x36xbf16, #tpu.memory_space<vmem>>, vector<80x4xbf16>,
    %c0_7 = arith.constant 0 : index
    %c2 = arith.constant 2 : index
    %c0_8 = arith.constant 0 : index
    %6 = vector.load %arg1[%c0_7, %c2, %c0_8] : memref<1x102x4xbf16, #tpu.memory_space<vmem>>, vector<1x80x4xbf16>
    %7 = vector.shape_cast %6 : vector<1x80x4xbf16> to vector<80x4xbf16>
    %c0_9 = arith.constant 0 : index
    %c8 = arith.constant 8 : index
    %8 = vector.load %arg7[%c0_9, %c8] : memref<80x36xbf16, #tpu.memory_space<vmem>>, vector<80x4xbf16>
    tpu.vector_store %arg7[%c0_9, %c8], %7 {strides = array<i32>} : memref<80x36xbf16, #tpu.memory_space<vmem>>, vector<80x4xbf16>,
    %c0_10 = arith.constant 0 : index
    %c10 = arith.constant 10 : index
    %c0_11 = arith.constant 0 : index
    %9 = vector.load %arg1[%c0_10, %c10, %c0_11] : memref<1x102x4xbf16, #tpu.memory_space<vmem>>, vector<1x80x4xbf16>
    %10 = vector.shape_cast %9 : vector<1x80x4xbf16> to vector<80x4xbf16>
    %c0_12 = arith.constant 0 : index
    %c12 = arith.constant 12 : index
    %11 = vector.load %arg7[%c0_12, %c12] : memref<80x36xbf16, #tpu.memory_space<vmem>>, vector<80x4xbf16>
    tpu.vector_store %arg7[%c0_12, %c12], %10 {strides = array<i32>} : memref<80x36xbf16, #tpu.memory_space<vmem>>, vector<80x4xbf16>,
    %c0_13 = arith.constant 0 : index
    %c11 = arith.constant 11 : index
    %c0_14 = arith.constant 0 : index
    %12 = vector.load %arg1[%c0_13, %c11, %c0_14] : memref<1x102x4xbf16, #tpu.memory_space<vmem>>, vector<1x80x4xbf16>
    %13 = vector.shape_cast %12 : vector<1x80x4xbf16> to vector<80x4xbf16>
    %c0_15 = arith.constant 0 : index
    %c16 = arith.constant 16 : index
    %14 = vector.load %arg7[%c0_15, %c16] : memref<80x36xbf16, #tpu.memory_space<vmem>>, vector<80x4xbf16>
    tpu.vector_store %arg7[%c0_15, %c16], %13 {strides = array<i32>} : memref<80x36xbf16, #tpu.memory_space<vmem>>, vector<80x4xbf16>,
    %c0_16 = arith.constant 0 : index
    %c12_17 = arith.constant 12 : index
    %c0_18 = arith.constant 0 : index
    %15 = vector.load %arg1[%c0_16, %c12_17, %c0_18] : memref<1x102x4xbf16, #tpu.memory_space<vmem>>, vector<1x80x4xbf16>
    %16 = vector.shape_cast %15 : vector<1x80x4xbf16> to vector<80x4xbf16>
    %c0_19 = arith.constant 0 : index
    %c20 = arith.constant 20 : index
    %17 = vector.load %arg7[%c0_19, %c20] : memref<80x36xbf16, #tpu.memory_space<vmem>>, vector<80x4xbf16>
    tpu.vector_store %arg7[%c0_19, %c20], %16 {strides = array<i32>} : memref<80x36xbf16, #tpu.memory_space<vmem>>, vector<80x4xbf16>,
    %c0_20 = arith.constant 0 : index
    %c20_21 = arith.constant 20 : index
    %c0_22 = arith.constant 0 : index
    %18 = vector.load %arg1[%c0_20, %c20_21, %c0_22] : memref<1x102x4xbf16, #tpu.memory_space<vmem>>, vector<1x80x4xbf16>
    %19 = vector.shape_cast %18 : vector<1x80x4xbf16> to vector<80x4xbf16>
    %c0_23 = arith.constant 0 : index
    %c24 = arith.constant 24 : index
    %20 = vector.load %arg7[%c0_23, %c24] : memref<80x36xbf16, #tpu.memory_space<vmem>>, vector<80x4xbf16>
    tpu.vector_store %arg7[%c0_23, %c24], %19 {strides = array<i32>} : memref<80x36xbf16, #tpu.memory_space<vmem>>, vector<80x4xbf16>,
    %c0_24 = arith.constant 0 : index
    %c21 = arith.constant 21 : index
    %c0_25 = arith.constant 0 : index
    %21 = vector.load %arg1[%c0_24, %c21, %c0_25] : memref<1x102x4xbf16, #tpu.memory_space<vmem>>, vector<1x80x4xbf16>
    %22 = vector.shape_cast %21 : vector<1x80x4xbf16> to vector<80x4xbf16>
    %c0_26 = arith.constant 0 : index
    %c28 = arith.constant 28 : index
    %23 = vector.load %arg7[%c0_26, %c28] : memref<80x36xbf16, #tpu.memory_space<vmem>>, vector<80x4xbf16>
    tpu.vector_store %arg7[%c0_26, %c28], %22 {strides = array<i32>} : memref<80x36xbf16, #tpu.memory_space<vmem>>, vector<80x4xbf16>,
    %c0_27 = arith.constant 0 : index
    %c22 = arith.constant 22 : index
    %c0_28 = arith.constant 0 : index
    %24 = vector.load %arg1[%c0_27, %c22, %c0_28] : memref<1x102x4xbf16, #tpu.memory_space<vmem>>, vector<1x80x4xbf16>
    %25 = vector.shape_cast %24 : vector<1x80x4xbf16> to vector<80x4xbf16>
    %c0_29 = arith.constant 0 : index
    %c32 = arith.constant 32 : index
    %26 = vector.load %arg7[%c0_29, %c32] : memref<80x36xbf16, #tpu.memory_space<vmem>>, vector<80x4xbf16>
    tpu.vector_store %arg7[%c0_29, %c32], %25 {strides = array<i32>} : memref<80x36xbf16, #tpu.memory_space<vmem>>, vector<80x4xbf16>,
    %c0_30 = arith.constant 0 : index
    %c0_31 = arith.constant 0 : index
    %27 = vector.load %arg7[%c0_30, %c0_31] : memref<80x36xbf16, #tpu.memory_space<vmem>>, vector<80x36xbf16>
    %c0_32 = arith.constant 0 : index
    %c0_33 = arith.constant 0 : index
    %28 = vector.load %arg2[%c0_32, %c0_33] : memref<36x8xbf16, #tpu.memory_space<vmem>>, vector<36x8xbf16>
    %cst = arith.constant dense<0.000000e+00> : vector<80x8xf32>
    %29 = tpu.matmul %27, %28, %cst {dimension_numbers = #tpu.dot_dimension_numbers<[1], [0], [0], [1], [0, 0, 1, 1], [], []>} : vector<80x36xbf16>, vector<36x8xbf16>, vector<80x8xf32> -> vector<80x8xf32>
    %c0_34 = arith.constant 0 : index
    %c0_35 = arith.constant 0 : index
    %30 = vector.load %arg6[%c0_34, %c0_35] : memref<80x8xf32, #tpu.memory_space<vmem>>, vector<80x8xf32>
    tpu.vector_store %arg6[%c0_34, %c0_35], %29 {strides = array<i32>} : memref<80x8xf32, #tpu.memory_space<vmem>>, vector<80x8xf32>,
    %c0_36 = arith.constant 0 : index
    %c0_37 = arith.constant 0 : index
    %31 = vector.load %arg6[%c0_36, %c0_37] : memref<80x8xf32, #tpu.memory_space<vmem>>, vector<80x8xf32>
    %c0_38 = arith.constant 0 : index
    %c0_39 = arith.constant 0 : index
    %32 = vector.load %arg3[%c0_38, %c0_39] : memref<1x8xf32, #tpu.memory_space<vmem>>, vector<1x8xf32>
    %33 = vector.broadcast %32 : vector<1x8xf32> to vector<80x8xf32>
    %34 = arith.mulf %31, %33 : vector<80x8xf32>
    %c0_40 = arith.constant 0 : index
    %c0_41 = arith.constant 0 : index
    %35 = vector.load %arg4[%c0_40, %c0_41] : memref<1x8xf32, #tpu.memory_space<vmem>>, vector<1x8xf32>
    %36 = vector.broadcast %35 : vector<1x8xf32> to vector<80x8xf32>
    %37 = arith.addf %34, %36 : vector<80x8xf32>
    %cst_42 = arith.constant 0.000000e+00 : f32
    %38 = vector.broadcast %cst_42 : f32 to vector<80x8xf32>
    %39 = arith.maximumf %37, %38 : vector<80x8xf32>
    %40 = arith.truncf %39 : vector<80x8xf32> to vector<80x8xbf16>
    %c0_43 = arith.constant 0 : index
    %c0_44 = arith.constant 0 : index
    %c0_45 = arith.constant 0 : index
    %41 = vector.load %arg5[%c0_43, %c0_44, %c0_45] : memref<1x80x8xbf16, #tpu.memory_space<vmem>>, vector<1x80x8xbf16>
    %42 = vector.shape_cast %41 : vector<1x80x8xbf16> to vector<80x8xbf16>
    %43 = vector.shape_cast %40 : vector<80x8xbf16> to vector<1x80x8xbf16>
    tpu.vector_store %arg5[%c0_43, %c0_44, %c0_45], %43 {strides = array<i32>} : memref<1x80x8xbf16, #tpu.memory_space<vmem>>, vector<1x80x8xbf16>,
    return
  }
  func.func @transform_0(%arg0: i32) -> (i32, i32, i32) {
    %c0_i32 = arith.constant 0 : i32
    %c0_i32_0 = arith.constant 0 : i32
    %c0_i32_1 = arith.constant 0 : i32
    return %arg0, %c0_i32, %c0_i32_0 : i32, i32, i32
  }
  func.func @transform_1(%arg0: i32) -> (i32, i32) {
    %c0_i32 = arith.constant 0 : i32
    %c0_i32_0 = arith.constant 0 : i32
    %c0_i32_1 = arith.constant 0 : i32
    return %c0_i32, %c0_i32_0 : i32, i32
  }
  func.func @transform_2(%arg0: i32) -> (i32, i32) {
    %c0_i32 = arith.constant 0 : i32
    %c0_i32_0 = arith.constant 0 : i32
    %c0_i32_1 = arith.constant 0 : i32
    return %c0_i32, %c0_i32_0 : i32, i32
  }
  func.func @transform_3(%arg0: i32) -> (i32, i32) {
    %c0_i32 = arith.constant 0 : i32
    %c0_i32_0 = arith.constant 0 : i32
    %c0_i32_1 = arith.constant 0 : i32
    return %c0_i32, %c0_i32_0 : i32, i32
  }
  func.func @transform_4(%arg0: i32) -> (i32, i32, i32) {
    %c0_i32 = arith.constant 0 : i32
    %c0_i32_0 = arith.constant 0 : i32
    %c0_i32_1 = arith.constant 0 : i32
    return %arg0, %c0_i32, %c0_i32_0 : i32, i32, i32
  }
}

module attributes {stable_mosaic.version = 11 : i64} {
  func.func @_conv_norm_kernel(%arg0: i32, %arg1: memref<1x102x8xbf16, #tpu.memory_space<vmem>>, %arg2: memref<72x8xbf16, #tpu.memory_space<vmem>>, %arg3: memref<1x8xf32, #tpu.memory_space<vmem>>, %arg4: memref<1x8xf32, #tpu.memory_space<vmem>>, %arg5: memref<1x80x8xf32, #tpu.memory_space<vmem>>, %arg6: memref<80x8xf32, #tpu.memory_space<vmem>>, %arg7: memref<80x72xbf16, #tpu.memory_space<vmem>>) attributes {dimension_semantics = [#tpu.dimension_semantics<parallel>], iteration_bounds = array<i64: 2>, scalar_prefetch = 0 : i64, scratch_operands = 2 : i64, tpu.core_type = #tpu.core_type<tc>, window_params = [{transform_indices = @transform_0, window_bounds = array<i64: 1, 102, 8>}, {pipeline_mode = #tpu.pipeline_mode<synchronous>, transform_indices = @transform_1, window_bounds = array<i64: 72, 8>}, {pipeline_mode = #tpu.pipeline_mode<synchronous>, transform_indices = @transform_2, window_bounds = array<i64: 1, 8>}, {pipeline_mode = #tpu.pipeline_mode<synchronous>, transform_indices = @transform_3, window_bounds = array<i64: 1, 8>}, {transform_indices = @transform_4, window_bounds = array<i64: 1, 80, 8>}]} {
    %c0 = arith.constant 0 : index
    %c0_0 = arith.constant 0 : index
    %c0_1 = arith.constant 0 : index
    %0 = vector.load %arg1[%c0, %c0_0, %c0_1] : memref<1x102x8xbf16, #tpu.memory_space<vmem>>, vector<1x80x8xbf16>
    %1 = vector.shape_cast %0 : vector<1x80x8xbf16> to vector<80x8xbf16>
    %c0_2 = arith.constant 0 : index
    %c0_3 = arith.constant 0 : index
    %2 = vector.load %arg7[%c0_2, %c0_3] : memref<80x72xbf16, #tpu.memory_space<vmem>>, vector<80x8xbf16>
    tpu.vector_store %arg7[%c0_2, %c0_3], %1 {strides = array<i32>} : memref<80x72xbf16, #tpu.memory_space<vmem>>, vector<80x8xbf16>,
    %c0_4 = arith.constant 0 : index
    %c1 = arith.constant 1 : index
    %c0_5 = arith.constant 0 : index
    %3 = vector.load %arg1[%c0_4, %c1, %c0_5] : memref<1x102x8xbf16, #tpu.memory_space<vmem>>, vector<1x80x8xbf16>
    %4 = vector.shape_cast %3 : vector<1x80x8xbf16> to vector<80x8xbf16>
    %c0_6 = arith.constant 0 : index
    %c8 = arith.constant 8 : index
    %5 = vector.load %arg7[%c0_6, %c8] : memref<80x72xbf16, #tpu.memory_space<vmem>>, vector<80x8xbf16>
    tpu.vector_store %arg7[%c0_6, %c8], %4 {strides = array<i32>} : memref<80x72xbf16, #tpu.memory_space<vmem>>, vector<80x8xbf16>,
    %c0_7 = arith.constant 0 : index
    %c2 = arith.constant 2 : index
    %c0_8 = arith.constant 0 : index
    %6 = vector.load %arg1[%c0_7, %c2, %c0_8] : memref<1x102x8xbf16, #tpu.memory_space<vmem>>, vector<1x80x8xbf16>
    %7 = vector.shape_cast %6 : vector<1x80x8xbf16> to vector<80x8xbf16>
    %c0_9 = arith.constant 0 : index
    %c16 = arith.constant 16 : index
    %8 = vector.load %arg7[%c0_9, %c16] : memref<80x72xbf16, #tpu.memory_space<vmem>>, vector<80x8xbf16>
    tpu.vector_store %arg7[%c0_9, %c16], %7 {strides = array<i32>} : memref<80x72xbf16, #tpu.memory_space<vmem>>, vector<80x8xbf16>,
    %c0_10 = arith.constant 0 : index
    %c10 = arith.constant 10 : index
    %c0_11 = arith.constant 0 : index
    %9 = vector.load %arg1[%c0_10, %c10, %c0_11] : memref<1x102x8xbf16, #tpu.memory_space<vmem>>, vector<1x80x8xbf16>
    %10 = vector.shape_cast %9 : vector<1x80x8xbf16> to vector<80x8xbf16>
    %c0_12 = arith.constant 0 : index
    %c24 = arith.constant 24 : index
    %11 = vector.load %arg7[%c0_12, %c24] : memref<80x72xbf16, #tpu.memory_space<vmem>>, vector<80x8xbf16>
    tpu.vector_store %arg7[%c0_12, %c24], %10 {strides = array<i32>} : memref<80x72xbf16, #tpu.memory_space<vmem>>, vector<80x8xbf16>,
    %c0_13 = arith.constant 0 : index
    %c11 = arith.constant 11 : index
    %c0_14 = arith.constant 0 : index
    %12 = vector.load %arg1[%c0_13, %c11, %c0_14] : memref<1x102x8xbf16, #tpu.memory_space<vmem>>, vector<1x80x8xbf16>
    %13 = vector.shape_cast %12 : vector<1x80x8xbf16> to vector<80x8xbf16>
    %c0_15 = arith.constant 0 : index
    %c32 = arith.constant 32 : index
    %14 = vector.load %arg7[%c0_15, %c32] : memref<80x72xbf16, #tpu.memory_space<vmem>>, vector<80x8xbf16>
    tpu.vector_store %arg7[%c0_15, %c32], %13 {strides = array<i32>} : memref<80x72xbf16, #tpu.memory_space<vmem>>, vector<80x8xbf16>,
    %c0_16 = arith.constant 0 : index
    %c12 = arith.constant 12 : index
    %c0_17 = arith.constant 0 : index
    %15 = vector.load %arg1[%c0_16, %c12, %c0_17] : memref<1x102x8xbf16, #tpu.memory_space<vmem>>, vector<1x80x8xbf16>
    %16 = vector.shape_cast %15 : vector<1x80x8xbf16> to vector<80x8xbf16>
    %c0_18 = arith.constant 0 : index
    %c40 = arith.constant 40 : index
    %17 = vector.load %arg7[%c0_18, %c40] : memref<80x72xbf16, #tpu.memory_space<vmem>>, vector<80x8xbf16>
    tpu.vector_store %arg7[%c0_18, %c40], %16 {strides = array<i32>} : memref<80x72xbf16, #tpu.memory_space<vmem>>, vector<80x8xbf16>,
    %c0_19 = arith.constant 0 : index
    %c20 = arith.constant 20 : index
    %c0_20 = arith.constant 0 : index
    %18 = vector.load %arg1[%c0_19, %c20, %c0_20] : memref<1x102x8xbf16, #tpu.memory_space<vmem>>, vector<1x80x8xbf16>
    %19 = vector.shape_cast %18 : vector<1x80x8xbf16> to vector<80x8xbf16>
    %c0_21 = arith.constant 0 : index
    %c48 = arith.constant 48 : index
    %20 = vector.load %arg7[%c0_21, %c48] : memref<80x72xbf16, #tpu.memory_space<vmem>>, vector<80x8xbf16>
    tpu.vector_store %arg7[%c0_21, %c48], %19 {strides = array<i32>} : memref<80x72xbf16, #tpu.memory_space<vmem>>, vector<80x8xbf16>,
    %c0_22 = arith.constant 0 : index
    %c21 = arith.constant 21 : index
    %c0_23 = arith.constant 0 : index
    %21 = vector.load %arg1[%c0_22, %c21, %c0_23] : memref<1x102x8xbf16, #tpu.memory_space<vmem>>, vector<1x80x8xbf16>
    %22 = vector.shape_cast %21 : vector<1x80x8xbf16> to vector<80x8xbf16>
    %c0_24 = arith.constant 0 : index
    %c56 = arith.constant 56 : index
    %23 = vector.load %arg7[%c0_24, %c56] : memref<80x72xbf16, #tpu.memory_space<vmem>>, vector<80x8xbf16>
    tpu.vector_store %arg7[%c0_24, %c56], %22 {strides = array<i32>} : memref<80x72xbf16, #tpu.memory_space<vmem>>, vector<80x8xbf16>,
    %c0_25 = arith.constant 0 : index
    %c22 = arith.constant 22 : index
    %c0_26 = arith.constant 0 : index
    %24 = vector.load %arg1[%c0_25, %c22, %c0_26] : memref<1x102x8xbf16, #tpu.memory_space<vmem>>, vector<1x80x8xbf16>
    %25 = vector.shape_cast %24 : vector<1x80x8xbf16> to vector<80x8xbf16>
    %c0_27 = arith.constant 0 : index
    %c64 = arith.constant 64 : index
    %26 = vector.load %arg7[%c0_27, %c64] : memref<80x72xbf16, #tpu.memory_space<vmem>>, vector<80x8xbf16>
    tpu.vector_store %arg7[%c0_27, %c64], %25 {strides = array<i32>} : memref<80x72xbf16, #tpu.memory_space<vmem>>, vector<80x8xbf16>,
    %c0_28 = arith.constant 0 : index
    %c0_29 = arith.constant 0 : index
    %27 = vector.load %arg7[%c0_28, %c0_29] : memref<80x72xbf16, #tpu.memory_space<vmem>>, vector<80x72xbf16>
    %c0_30 = arith.constant 0 : index
    %c0_31 = arith.constant 0 : index
    %28 = vector.load %arg2[%c0_30, %c0_31] : memref<72x8xbf16, #tpu.memory_space<vmem>>, vector<72x8xbf16>
    %cst = arith.constant dense<0.000000e+00> : vector<80x8xf32>
    %29 = tpu.matmul %27, %28, %cst {dimension_numbers = #tpu.dot_dimension_numbers<[1], [0], [0], [1], [0, 0, 1, 1], [], []>} : vector<80x72xbf16>, vector<72x8xbf16>, vector<80x8xf32> -> vector<80x8xf32>
    %c0_32 = arith.constant 0 : index
    %c0_33 = arith.constant 0 : index
    %30 = vector.load %arg6[%c0_32, %c0_33] : memref<80x8xf32, #tpu.memory_space<vmem>>, vector<80x8xf32>
    tpu.vector_store %arg6[%c0_32, %c0_33], %29 {strides = array<i32>} : memref<80x8xf32, #tpu.memory_space<vmem>>, vector<80x8xf32>,
    %c0_34 = arith.constant 0 : index
    %c0_35 = arith.constant 0 : index
    %31 = vector.load %arg6[%c0_34, %c0_35] : memref<80x8xf32, #tpu.memory_space<vmem>>, vector<80x8xf32>
    %c0_36 = arith.constant 0 : index
    %c0_37 = arith.constant 0 : index
    %32 = vector.load %arg3[%c0_36, %c0_37] : memref<1x8xf32, #tpu.memory_space<vmem>>, vector<1x8xf32>
    %33 = vector.broadcast %32 : vector<1x8xf32> to vector<80x8xf32>
    %34 = arith.mulf %31, %33 : vector<80x8xf32>
    %c0_38 = arith.constant 0 : index
    %c0_39 = arith.constant 0 : index
    %35 = vector.load %arg4[%c0_38, %c0_39] : memref<1x8xf32, #tpu.memory_space<vmem>>, vector<1x8xf32>
    %36 = vector.broadcast %35 : vector<1x8xf32> to vector<80x8xf32>
    %37 = arith.addf %34, %36 : vector<80x8xf32>
    %cst_40 = arith.constant 0.000000e+00 : f32
    %38 = vector.broadcast %cst_40 : f32 to vector<80x8xf32>
    %39 = arith.maximumf %37, %38 : vector<80x8xf32>
    %c0_41 = arith.constant 0 : index
    %c0_42 = arith.constant 0 : index
    %c0_43 = arith.constant 0 : index
    %40 = vector.load %arg5[%c0_41, %c0_42, %c0_43] : memref<1x80x8xf32, #tpu.memory_space<vmem>>, vector<1x80x8xf32>
    %41 = vector.shape_cast %40 : vector<1x80x8xf32> to vector<80x8xf32>
    %42 = vector.shape_cast %39 : vector<80x8xf32> to vector<1x80x8xf32>
    tpu.vector_store %arg5[%c0_41, %c0_42, %c0_43], %42 {strides = array<i32>} : memref<1x80x8xf32, #tpu.memory_space<vmem>>, vector<1x80x8xf32>,
    return
  }
  func.func @transform_0(%arg0: i32) -> (i32, i32, i32) {
    %c0_i32 = arith.constant 0 : i32
    %c0_i32_0 = arith.constant 0 : i32
    %c0_i32_1 = arith.constant 0 : i32
    return %arg0, %c0_i32, %c0_i32_0 : i32, i32, i32
  }
  func.func @transform_1(%arg0: i32) -> (i32, i32) {
    %c0_i32 = arith.constant 0 : i32
    %c0_i32_0 = arith.constant 0 : i32
    %c0_i32_1 = arith.constant 0 : i32
    return %c0_i32, %c0_i32_0 : i32, i32
  }
  func.func @transform_2(%arg0: i32) -> (i32, i32) {
    %c0_i32 = arith.constant 0 : i32
    %c0_i32_0 = arith.constant 0 : i32
    %c0_i32_1 = arith.constant 0 : i32
    return %c0_i32, %c0_i32_0 : i32, i32
  }
  func.func @transform_3(%arg0: i32) -> (i32, i32) {
    %c0_i32 = arith.constant 0 : i32
    %c0_i32_0 = arith.constant 0 : i32
    %c0_i32_1 = arith.constant 0 : i32
    return %c0_i32, %c0_i32_0 : i32, i32
  }
  func.func @transform_4(%arg0: i32) -> (i32, i32, i32) {
    %c0_i32 = arith.constant 0 : i32
    %c0_i32_0 = arith.constant 0 : i32
    %c0_i32_1 = arith.constant 0 : i32
    return %arg0, %c0_i32, %c0_i32_0 : i32, i32, i32
  }
}

module attributes {stable_mosaic.version = 11 : i64} {
  func.func @_conv_stats_kernel(%arg0: i32, %arg1: memref<1x102x8xbf16, #tpu.memory_space<vmem>>, %arg2: memref<72x8xbf16, #tpu.memory_space<vmem>>, %arg3: memref<80x1xf32, #tpu.memory_space<vmem>>, %arg4: memref<1x2x8xf32, #tpu.memory_space<vmem>>, %arg5: memref<80x8xf32, #tpu.memory_space<vmem>>, %arg6: memref<80x72xbf16, #tpu.memory_space<vmem>>) attributes {dimension_semantics = [#tpu.dimension_semantics<parallel>], iteration_bounds = array<i64: 2>, scalar_prefetch = 0 : i64, scratch_operands = 2 : i64, tpu.core_type = #tpu.core_type<tc>, window_params = [{transform_indices = @transform_0, window_bounds = array<i64: 1, 102, 8>}, {pipeline_mode = #tpu.pipeline_mode<synchronous>, transform_indices = @transform_1, window_bounds = array<i64: 72, 8>}, {pipeline_mode = #tpu.pipeline_mode<synchronous>, transform_indices = @transform_2, window_bounds = array<i64: 80, 1>}, {transform_indices = @transform_3, window_bounds = array<i64: 1, 2, 8>}]} {
    %c0 = arith.constant 0 : index
    %c0_0 = arith.constant 0 : index
    %c0_1 = arith.constant 0 : index
    %0 = vector.load %arg1[%c0, %c0_0, %c0_1] : memref<1x102x8xbf16, #tpu.memory_space<vmem>>, vector<1x80x8xbf16>
    %1 = vector.shape_cast %0 : vector<1x80x8xbf16> to vector<80x8xbf16>
    %c0_2 = arith.constant 0 : index
    %c0_3 = arith.constant 0 : index
    %2 = vector.load %arg6[%c0_2, %c0_3] : memref<80x72xbf16, #tpu.memory_space<vmem>>, vector<80x8xbf16>
    tpu.vector_store %arg6[%c0_2, %c0_3], %1 {strides = array<i32>} : memref<80x72xbf16, #tpu.memory_space<vmem>>, vector<80x8xbf16>,
    %c0_4 = arith.constant 0 : index
    %c1 = arith.constant 1 : index
    %c0_5 = arith.constant 0 : index
    %3 = vector.load %arg1[%c0_4, %c1, %c0_5] : memref<1x102x8xbf16, #tpu.memory_space<vmem>>, vector<1x80x8xbf16>
    %4 = vector.shape_cast %3 : vector<1x80x8xbf16> to vector<80x8xbf16>
    %c0_6 = arith.constant 0 : index
    %c8 = arith.constant 8 : index
    %5 = vector.load %arg6[%c0_6, %c8] : memref<80x72xbf16, #tpu.memory_space<vmem>>, vector<80x8xbf16>
    tpu.vector_store %arg6[%c0_6, %c8], %4 {strides = array<i32>} : memref<80x72xbf16, #tpu.memory_space<vmem>>, vector<80x8xbf16>,
    %c0_7 = arith.constant 0 : index
    %c2 = arith.constant 2 : index
    %c0_8 = arith.constant 0 : index
    %6 = vector.load %arg1[%c0_7, %c2, %c0_8] : memref<1x102x8xbf16, #tpu.memory_space<vmem>>, vector<1x80x8xbf16>
    %7 = vector.shape_cast %6 : vector<1x80x8xbf16> to vector<80x8xbf16>
    %c0_9 = arith.constant 0 : index
    %c16 = arith.constant 16 : index
    %8 = vector.load %arg6[%c0_9, %c16] : memref<80x72xbf16, #tpu.memory_space<vmem>>, vector<80x8xbf16>
    tpu.vector_store %arg6[%c0_9, %c16], %7 {strides = array<i32>} : memref<80x72xbf16, #tpu.memory_space<vmem>>, vector<80x8xbf16>,
    %c0_10 = arith.constant 0 : index
    %c10 = arith.constant 10 : index
    %c0_11 = arith.constant 0 : index
    %9 = vector.load %arg1[%c0_10, %c10, %c0_11] : memref<1x102x8xbf16, #tpu.memory_space<vmem>>, vector<1x80x8xbf16>
    %10 = vector.shape_cast %9 : vector<1x80x8xbf16> to vector<80x8xbf16>
    %c0_12 = arith.constant 0 : index
    %c24 = arith.constant 24 : index
    %11 = vector.load %arg6[%c0_12, %c24] : memref<80x72xbf16, #tpu.memory_space<vmem>>, vector<80x8xbf16>
    tpu.vector_store %arg6[%c0_12, %c24], %10 {strides = array<i32>} : memref<80x72xbf16, #tpu.memory_space<vmem>>, vector<80x8xbf16>,
    %c0_13 = arith.constant 0 : index
    %c11 = arith.constant 11 : index
    %c0_14 = arith.constant 0 : index
    %12 = vector.load %arg1[%c0_13, %c11, %c0_14] : memref<1x102x8xbf16, #tpu.memory_space<vmem>>, vector<1x80x8xbf16>
    %13 = vector.shape_cast %12 : vector<1x80x8xbf16> to vector<80x8xbf16>
    %c0_15 = arith.constant 0 : index
    %c32 = arith.constant 32 : index
    %14 = vector.load %arg6[%c0_15, %c32] : memref<80x72xbf16, #tpu.memory_space<vmem>>, vector<80x8xbf16>
    tpu.vector_store %arg6[%c0_15, %c32], %13 {strides = array<i32>} : memref<80x72xbf16, #tpu.memory_space<vmem>>, vector<80x8xbf16>,
    %c0_16 = arith.constant 0 : index
    %c12 = arith.constant 12 : index
    %c0_17 = arith.constant 0 : index
    %15 = vector.load %arg1[%c0_16, %c12, %c0_17] : memref<1x102x8xbf16, #tpu.memory_space<vmem>>, vector<1x80x8xbf16>
    %16 = vector.shape_cast %15 : vector<1x80x8xbf16> to vector<80x8xbf16>
    %c0_18 = arith.constant 0 : index
    %c40 = arith.constant 40 : index
    %17 = vector.load %arg6[%c0_18, %c40] : memref<80x72xbf16, #tpu.memory_space<vmem>>, vector<80x8xbf16>
    tpu.vector_store %arg6[%c0_18, %c40], %16 {strides = array<i32>} : memref<80x72xbf16, #tpu.memory_space<vmem>>, vector<80x8xbf16>,
    %c0_19 = arith.constant 0 : index
    %c20 = arith.constant 20 : index
    %c0_20 = arith.constant 0 : index
    %18 = vector.load %arg1[%c0_19, %c20, %c0_20] : memref<1x102x8xbf16, #tpu.memory_space<vmem>>, vector<1x80x8xbf16>
    %19 = vector.shape_cast %18 : vector<1x80x8xbf16> to vector<80x8xbf16>
    %c0_21 = arith.constant 0 : index
    %c48 = arith.constant 48 : index
    %20 = vector.load %arg6[%c0_21, %c48] : memref<80x72xbf16, #tpu.memory_space<vmem>>, vector<80x8xbf16>
    tpu.vector_store %arg6[%c0_21, %c48], %19 {strides = array<i32>} : memref<80x72xbf16, #tpu.memory_space<vmem>>, vector<80x8xbf16>,
    %c0_22 = arith.constant 0 : index
    %c21 = arith.constant 21 : index
    %c0_23 = arith.constant 0 : index
    %21 = vector.load %arg1[%c0_22, %c21, %c0_23] : memref<1x102x8xbf16, #tpu.memory_space<vmem>>, vector<1x80x8xbf16>
    %22 = vector.shape_cast %21 : vector<1x80x8xbf16> to vector<80x8xbf16>
    %c0_24 = arith.constant 0 : index
    %c56 = arith.constant 56 : index
    %23 = vector.load %arg6[%c0_24, %c56] : memref<80x72xbf16, #tpu.memory_space<vmem>>, vector<80x8xbf16>
    tpu.vector_store %arg6[%c0_24, %c56], %22 {strides = array<i32>} : memref<80x72xbf16, #tpu.memory_space<vmem>>, vector<80x8xbf16>,
    %c0_25 = arith.constant 0 : index
    %c22 = arith.constant 22 : index
    %c0_26 = arith.constant 0 : index
    %24 = vector.load %arg1[%c0_25, %c22, %c0_26] : memref<1x102x8xbf16, #tpu.memory_space<vmem>>, vector<1x80x8xbf16>
    %25 = vector.shape_cast %24 : vector<1x80x8xbf16> to vector<80x8xbf16>
    %c0_27 = arith.constant 0 : index
    %c64 = arith.constant 64 : index
    %26 = vector.load %arg6[%c0_27, %c64] : memref<80x72xbf16, #tpu.memory_space<vmem>>, vector<80x8xbf16>
    tpu.vector_store %arg6[%c0_27, %c64], %25 {strides = array<i32>} : memref<80x72xbf16, #tpu.memory_space<vmem>>, vector<80x8xbf16>,
    %c0_28 = arith.constant 0 : index
    %c0_29 = arith.constant 0 : index
    %27 = vector.load %arg6[%c0_28, %c0_29] : memref<80x72xbf16, #tpu.memory_space<vmem>>, vector<80x72xbf16>
    %c0_30 = arith.constant 0 : index
    %c0_31 = arith.constant 0 : index
    %28 = vector.load %arg2[%c0_30, %c0_31] : memref<72x8xbf16, #tpu.memory_space<vmem>>, vector<72x8xbf16>
    %cst = arith.constant dense<0.000000e+00> : vector<80x8xf32>
    %29 = tpu.matmul %27, %28, %cst {dimension_numbers = #tpu.dot_dimension_numbers<[1], [0], [0], [1], [0, 0, 1, 1], [], []>} : vector<80x72xbf16>, vector<72x8xbf16>, vector<80x8xf32> -> vector<80x8xf32>
    %c0_32 = arith.constant 0 : index
    %c0_33 = arith.constant 0 : index
    %30 = vector.load %arg5[%c0_32, %c0_33] : memref<80x8xf32, #tpu.memory_space<vmem>>, vector<80x8xf32>
    tpu.vector_store %arg5[%c0_32, %c0_33], %29 {strides = array<i32>} : memref<80x8xf32, #tpu.memory_space<vmem>>, vector<80x8xf32>,
    %c0_34 = arith.constant 0 : index
    %c0_35 = arith.constant 0 : index
    %31 = vector.load %arg5[%c0_34, %c0_35] : memref<80x8xf32, #tpu.memory_space<vmem>>, vector<80x8xf32>
    %c0_36 = arith.constant 0 : index
    %c0_37 = arith.constant 0 : index
    %32 = vector.load %arg3[%c0_36, %c0_37] : memref<80x1xf32, #tpu.memory_space<vmem>>, vector<80x1xf32>
    %33 = vector.broadcast %32 : vector<80x1xf32> to vector<80x8xf32>
    %34 = arith.mulf %31, %33 : vector<80x8xf32>
    %cst_38 = arith.constant dense<0.000000e+00> : vector<8xf32>
    %35 = vector.multi_reduction <add>, %34, %cst_38 [0] : vector<80x8xf32> to vector<8xf32>
    %36 = vector.shape_cast %35 : vector<8xf32> to vector<1x8xf32>
    %cst_39 = arith.constant 1.562500e-02 : f32
    %37 = vector.broadcast %cst_39 : f32 to vector<1x8xf32>
    %38 = arith.mulf %36, %37 : vector<1x8xf32>
    %c0_40 = arith.constant 0 : index
    %c0_41 = arith.constant 0 : index
    %39 = vector.load %arg5[%c0_40, %c0_41] : memref<80x8xf32, #tpu.memory_space<vmem>>, vector<80x8xf32>
    %40 = vector.broadcast %38 : vector<1x8xf32> to vector<80x8xf32>
    %41 = arith.subf %39, %40 : vector<80x8xf32>
    %c0_42 = arith.constant 0 : index
    %c0_43 = arith.constant 0 : index
    %42 = vector.load %arg3[%c0_42, %c0_43] : memref<80x1xf32, #tpu.memory_space<vmem>>, vector<80x1xf32>
    %43 = vector.broadcast %42 : vector<80x1xf32> to vector<80x8xf32>
    %44 = arith.mulf %41, %43 : vector<80x8xf32>
    %c0_44 = arith.constant 0 : index
    %c0_45 = arith.constant 0 : index
    %c0_46 = arith.constant 0 : index
    %45 = vector.load %arg4[%c0_44, %c0_45, %c0_46] : memref<1x2x8xf32, #tpu.memory_space<vmem>>, vector<1x1x8xf32>
    %46 = vector.shape_cast %45 : vector<1x1x8xf32> to vector<1x8xf32>
    %47 = vector.shape_cast %36 : vector<1x8xf32> to vector<1x1x8xf32>
    tpu.vector_store %arg4[%c0_44, %c0_45, %c0_46], %47 {strides = array<i32>} : memref<1x2x8xf32, #tpu.memory_space<vmem>>, vector<1x1x8xf32>,
    %48 = arith.mulf %44, %44 : vector<80x8xf32>
    %cst_47 = arith.constant dense<0.000000e+00> : vector<8xf32>
    %49 = vector.multi_reduction <add>, %48, %cst_47 [0] : vector<80x8xf32> to vector<8xf32>
    %50 = vector.shape_cast %49 : vector<8xf32> to vector<1x8xf32>
    %c0_48 = arith.constant 0 : index
    %c1_49 = arith.constant 1 : index
    %c0_50 = arith.constant 0 : index
    %51 = vector.load %arg4[%c0_48, %c1_49, %c0_50] : memref<1x2x8xf32, #tpu.memory_space<vmem>>, vector<1x1x8xf32>
    %52 = vector.shape_cast %51 : vector<1x1x8xf32> to vector<1x8xf32>
    %53 = vector.shape_cast %50 : vector<1x8xf32> to vector<1x1x8xf32>
    tpu.vector_store %arg4[%c0_48, %c1_49, %c0_50], %53 {strides = array<i32>} : memref<1x2x8xf32, #tpu.memory_space<vmem>>, vector<1x1x8xf32>,
    return
  }
  func.func @transform_0(%arg0: i32) -> (i32, i32, i32) {
    %c0_i32 = arith.constant 0 : i32
    %c0_i32_0 = arith.constant 0 : i32
    %c0_i32_1 = arith.constant 0 : i32
    return %arg0, %c0_i32, %c0_i32_0 : i32, i32, i32
  }
  func.func @transform_1(%arg0: i32) -> (i32, i32) {
    %c0_i32 = arith.constant 0 : i32
    %c0_i32_0 = arith.constant 0 : i32
    %c0_i32_1 = arith.constant 0 : i32
    return %c0_i32, %c0_i32_0 : i32, i32
  }
  func.func @transform_2(%arg0: i32) -> (i32, i32) {
    %c0_i32 = arith.constant 0 : i32
    %c0_i32_0 = arith.constant 0 : i32
    %c0_i32_1 = arith.constant 0 : i32
    return %c0_i32, %c0_i32_0 : i32, i32
  }
  func.func @transform_3(%arg0: i32) -> (i32, i32, i32) {
    %c0_i32 = arith.constant 0 : i32
    %c0_i32_0 = arith.constant 0 : i32
    %c0_i32_1 = arith.constant 0 : i32
    return %arg0, %c0_i32, %c0_i32_0 : i32, i32, i32
  }
}

</mosaic_0001>

<llo_original>
// kernel: down_forward.4
$region0: #{down_forward.4}
  #allocation0 [shape = 'u32[]', space=smem, size = 0x4, offset = 0x4, fixed_abs, tag = 'smem constant byte address 0x4 - core index']
  #allocation1 [shape = 'u32[144,128]{1,0:T(1,128)}', space=vmem, size = 0x12000, scoped, tag = 'internal scratch']
  #allocation2 [shape = 'f32[80,8]{1,0:T(8,128)}', space=vmem, size = 0xa000, scoped, tag = 'scratch operand']
  #allocation3 [shape = 'bf16[80,36]{1,0:T(8,128)(2,1)}', space=vmem, size = 0x5000, scoped, tag = 'scratch operand']
  %s0 = inlined_call_operand.vmem [shape: bf16[2,102,4], index: 0, kind: input, shape index: {}]
  %s1 = inlined_call_operand.vmem [shape: bf16[36,8], index: 1, kind: input, shape index: {}]
  %s2 = inlined_call_operand.vmem [shape: f32[80,1], index: 2, kind: input, shape index: {}]
  %s3 = inlined_call_operand.vmem [shape: f32[2,2,8], index: 3, kind: output, shape index: {}]
  %s4 = sld [smem:[#allocation0]]
  $region45: #{down_forward.4} parent=0
    _
  %s6 = ssub.s32 1, %s4
  %s7 = scalar_select 0, %s6, %s4
  loop: start=0, step=1, limit=4
  $region2: #{down_forward.4} parent=0 // loop_pre_header
    _
  $region3: #{down_forward.4} parent=0 // loop_header
    %s9 = sphi 0, %s13
    %p10 = scmp.ge.s32.totalorder %s9, 4
    %s19 = sphi 0, %s21
    %s22 = sphi 0, %s19
    %s23 = sphi 0, %s22
    %s39 = sphi 0, %s23
    %s43 = sphi 0, %s43
    %s45 = sphi 0, %s43
    %s46 = sphi 0, %s45
    %s60 = sphi 0, %s46
    %s64 = sphi 0, %s64
    %s66 = sphi 0, %s64
    %s67 = sphi 0, %s66
    %s81 = sphi 0, %s67
    %s87 = sphi 0, %s89
    %s90 = sphi 0, %s87
    %s91 = sphi 0, %s90
    %s107 = sphi 0, %s91
  $region4: #{down_forward.4} parent=0 // loop_header_branch
    %12 = sbr.rel (%p10) target = $region8
  $region5: #{down_forward.4} parent=0 // loop_body
    %s14 = ssub.s32 %s9, 1
    %s15 = ssub.s32 %s9, 2
    %s16 = sadd.s32 %s9, 1
    %s17 = ssub.s32 %s9, %s16
    %p18 = scmp.eq.s32.totalorder %s17, 0
    %s20 = sadd.s32 %s19, 1
    %s21 = scalar_select %p18, %s19, %s20
    %p24 = pneg %p18
    %p25 = scmp.eq.s32.totalorder %s9, 1
    %p26 = por %p24, %p25
    %p27 = scmp.ne.s32.totalorder %s19, %s22
    %p28 = scmp.eq.s32.totalorder %s9, 0
    %p29 = por %p27, %p28
    %p30 = scmp.ne.s32.totalorder %s19, %s22
    %p31 = scmp.eq.s32.totalorder %s14, 1
    %p32 = por %p30, %p31
    %p33 = scmp.ne.s32.totalorder %s22, %s23
    %p34 = scmp.eq.s32.totalorder %s14, 0
    %p35 = por %p33, %p34
    %p36 = scmp.ne.s32.totalorder %s22, %s23
    %p37 = scmp.eq.s32.totalorder %s15, 1
    %p38 = por %p36, %p37
    %p40 = scmp.ne.s32.totalorder %s23, %s39
    %p41 = scmp.eq.s32.totalorder %s15, 0
    %p42 = por %p40, %p41
    %s44 = sadd.s32 %s43, 1
    %p47 = scmp.eq.s32.totalorder %s9, 1
    %p48 = scmp.ne.s32.totalorder %s43, %s45
    %p49 = scmp.eq.s32.totalorder %s9, 0
    %p50 = por %p48, %p49
    %p51 = scmp.ne.s32.totalorder %s43, %s45
    %p52 = scmp.eq.s32.totalorder %s14, 1
    %p53 = por %p51, %p52
    %p54 = scmp.ne.s32.totalorder %s45, %s46
    %p55 = scmp.eq.s32.totalorder %s14, 0
    %p56 = por %p54, %p55
    %p57 = scmp.ne.s32.totalorder %s45, %s46
    %p58 = scmp.eq.s32.totalorder %s15, 1
    %p59 = por %p57, %p58
    %p61 = scmp.ne.s32.totalorder %s46, %s60
    %p62 = scmp.eq.s32.totalorder %s15, 0
    %p63 = por %p61, %p62
    %s65 = sadd.s32 %s64, 1
    %p68 = scmp.eq.s32.totalorder %s9, 1
    %p69 = scmp.ne.s32.totalorder %s64, %s66
    %p70 = scmp.eq.s32.totalorder %s9, 0
    %p71 = por %p69, %p70
    %p72 = scmp.ne.s32.totalorder %s64, %s66
    %p73 = scmp.eq.s32.totalorder %s14, 1
    %p74 = por %p72, %p73
    %p75 = scmp.ne.s32.totalorder %s66, %s67
    %p76 = scmp.eq.s32.totalorder %s14, 0
    %p77 = por %p75, %p76
    %p78 = scmp.ne.s32.totalorder %s66, %s67
    %p79 = scmp.eq.s32.totalorder %s15, 1
    %p80 = por %p78, %p79
    %p82 = scmp.ne.s32.totalorder %s67, %s81
    %p83 = scmp.eq.s32.totalorder %s15, 0
    %p84 = por %p82, %p83
    %s85 = ssub.s32 %s9, %s16
    %p86 = scmp.eq.s32.totalorder %s85, 0
    %s88 = sadd.s32 %s87, 1
    %s89 = scalar_select %p86, %s87, %s88
    %p92 = pneg %p86
    %p93 = scmp.eq.s32.totalorder %s9, 1
    %p94 = por %p92, %p93
    %p95 = scmp.ne.s32.totalorder %s87, %s90
    %p96 = scmp.eq.s32.totalorder %s9, 0
    %p97 = por %p95, %p96
    %p98 = scmp.ne.s32.totalorder %s87, %s90
    %p99 = scmp.eq.s32.totalorder %s14, 1
    %p100 = por %p98, %p99
    %p101 = scmp.ne.s32.totalorder %s90, %s91
    %p102 = scmp.eq.s32.totalorder %s14, 0
    %p103 = por %p101, %p102
    %p104 = scmp.ne.s32.totalorder %s90, %s91
    %p105 = scmp.eq.s32.totalorder %s15, 1
    %p106 = por %p104, %p105
    %p108 = scmp.ne.s32.totalorder %s91, %s107
    %p109 = scmp.eq.s32.totalorder %s15, 0
    %p110 = por %p108, %p109
    %p111 = scmp.le.s32.totalorder 1, %s9
    %p112 = scmp.lt.s32.totalorder %s9, 3
    %p113 = pnand %p111, %p112
    %p114 = pneg %p113
    // Predicated region
    $region9: #{down_forward.4} parent=5 // pred_check
      _
    $region10: #{down_forward.4} parent=5 // pred_check_branch
      %116 = sbr.rel (%p113) target = $region12
    $region11: #{down_forward.4} parent=5 // pred_region
      %s117 = ssub.s32 %s9, 1
      // Predicated region
      $region13: #{down_forward.4} parent=11 // pred_check
        %p118 = pneg %p56
      $region14: #{down_forward.4} parent=11 // pred_check_branch
        %120 = sbr.rel (%p118) target = $region16
      $region15: #{down_forward.4} parent=11 // pred_region
        _
      $region16: #{down_forward.4} parent=11 // pred_fallthru
        _
      // Predicated region
      $region17: #{down_forward.4} parent=11 // pred_check
        %p121 = pneg %p77
      $region18: #{down_forward.4} parent=11 // pred_check_branch
        %123 = sbr.rel (%p121) target = $region20
      $region19: #{down_forward.4} parent=11 // pred_region
        _
      $region20: #{down_forward.4} parent=11 // pred_fallthru
        _
    $region12: #{down_forward.4} parent=5 // pred_fallthru
      _
    %p124 = scmp.lt.s32.totalorder %s9, 2
    // Predicated region
    $region21: #{down_forward.4} parent=5 // pred_check
      %p125 = pneg %p124
    $region22: #{down_forward.4} parent=5 // pred_check_branch
      %127 = sbr.rel (%p125) target = $region24
    $region23: #{down_forward.4} parent=5 // pred_region
      // Predicated region
      $region25: #{down_forward.4} parent=23 // pred_check
        %p128 = pneg %p29
      $region26: #{down_forward.4} parent=23 // pred_check_branch
        %130 = sbr.rel (%p128) target = $region28
      $region27: #{down_forward.4} parent=23 // pred_region
        %p131 = scmp.lt.s32.totalorder %s9, 1
        %s132 = scalar_select %p131, %s9, 1
        %s133 = smul.addr %s132, 13
        %s134 = smul.addr %s133, 4
        %s135 = scalar_lea.vmem %s0, %s134
      $region28: #{down_forward.4} parent=23 // pred_fallthru
        _
    $region24: #{down_forward.4} parent=5 // pred_fallthru
      _
    %p136 = scmp.le.s32.totalorder 1, %s9
    %p137 = scmp.lt.s32.totalorder %s9, 3
    %p138 = pnand %p136, %p137
    %p139 = pneg %p138
    // Predicated region
    $region29: #{down_forward.4} parent=5 // pred_check
      _
    $region30: #{down_forward.4} parent=5 // pred_check_branch
      %141 = sbr.rel (%p138) target = $region32
    $region31: #{down_forward.4} parent=5 // pred_region
      %s142 = ssub.s32 %s9, 1
      %p143 = scmp.lt.s32.totalorder %s14, 1
      %s144 = scalar_select %p143, %s14, 1
      %s145 = smul.addr %s144, 13
      %s146 = smul.addr %s145, 4
      %s147 = scalar_lea.vmem %s0, %s146
      %p148 = pneg %p35
      %p149 = pneg %p32
      %p150 = pneg %p56
      %p151 = pneg %p53
      %p152 = pneg %p77
      %p153 = pneg %p74
      %p154 = pneg %p103
      %p155 = pneg %p100
      %p156 = scmp.lt.s32.totalorder %s14, 1
      %s157 = scalar_select %p156, %s14, 1
      %s158 = smul.addr %s157, 2
      %s159 = scalar_lea.vmem %s3, %s158
      %p160 = scmp.lt.s32.totalorder %s14, 1
      %s161 = scalar_select %p160, %s14, 1
      %s162 = smul.addr %s161, 13
      %s163 = smul.addr %s162, 4
      %s164 = scalar_lea.vmem %s0, %s163
      %p165 = scmp.lt.s32.totalorder %s14, 1
      %s166 = scalar_select %p165, %s14, 1
      %s167 = smul.addr %s166, 2
      %s168 = scalar_lea.vmem %s3, %s167
      %v170 = vld [vmem:[%s164] sm:$0xf]
      %v171 = vld [vmem:[%s164 + $0x4] sm:$0xf]
      %v172 = vld [vmem:[%s164 + $0x8] sm:$0xf]
      %v173 = vld [vmem:[%s164 + $0xc] sm:$0xf]
      %v174 = vld [vmem:[%s164 + $0x10] sm:$0xf]
      %v175 = vld [vmem:[%s164 + $0x14] sm:$0xf]
      %v176 = vld [vmem:[%s164 + $0x18] sm:$0xf]
      %v177 = vld [vmem:[%s164 + $0x1c] sm:$0xf]
      %v178 = vld [vmem:[%s164 + $0x20] sm:$0xf]
      %v179 = vld [vmem:[%s164 + $0x24] sm:$0xf]
      %vm180 = vcmask 27648
      %181 = vst.msk [vmem:[#allocation3] sm:$0xf] %vm180, %v170
      %182 = vst.msk [vmem:[#allocation3 + $0x4] sm:$0xf] %vm180, %v171
      %183 = vst.msk [vmem:[#allocation3 + $0x8] sm:$0xf] %vm180, %v172
      %184 = vst.msk [vmem:[#allocation3 + $0xc] sm:$0xf] %vm180, %v173
      %185 = vst.msk [vmem:[#allocation3 + $0x10] sm:$0xf] %vm180, %v174
      %186 = vst.msk [vmem:[#allocation3 + $0x14] sm:$0xf] %vm180, %v175
      %187 = vst.msk [vmem:[#allocation3 + $0x18] sm:$0xf] %vm180, %v176
      %188 = vst.msk [vmem:[#allocation3 + $0x1c] sm:$0xf] %vm180, %v177
      %189 = vst.msk [vmem:[#allocation3 + $0x20] sm:$0xf] %vm180, %v178
      %190 = vst.msk [vmem:[#allocation3 + $0x24] sm:$0xf] %vm180, %v179
      %v191 = vld [vmem:[%s164] sm:$0xf]
      %v192 = vld [vmem:[%s164 + $0x4] sm:$0xf]
      %v193 = vld [vmem:[%s164 + $0x8] sm:$0xf]
      %v194 = vld [vmem:[%s164 + $0xc] sm:$0xf]
      %v195 = vld [vmem:[%s164 + $0x10] sm:$0xf]
      %v196 = vld [vmem:[%s164 + $0x14] sm:$0xf]
      %v197 = vld [vmem:[%s164 + $0x18] sm:$0xf]
      %v198 = vld [vmem:[%s164 + $0x1c] sm:$0xf]
      %v199 = vld [vmem:[%s164 + $0x20] sm:$0xf]
      %v200 = vld [vmem:[%s164 + $0x24] sm:$0xf]
      %v201 = vld [vmem:[%s164 + $0x28] sm:$0x1]
      %vm202 = vsmask.f32 3328
      %vm203 = vsmask.f32 7440
      %vm204 = vmor %vm202, %vm203
      %v206 = vshrl.u32 %v191, 16
      %v208 = vrot.slane %v206, 4
      %v209 = vshll.u32 %v191, 16
      %v211 = vrot.slane %v209, 5
      %v212 = vor.u32 %v208, %v211
      %v213 = vrot.slane %v212, 4
      %v215 = vshll.u32 %v192, 16
      %v217 = vrot.slane %v215, 5
      %v218 = vsel %vm204, %v213, %v217
      %v219 = vshrl.u32 %v192, 16
      %v221 = vrot.slane %v219, 4
      %v222 = vor.u32 %v221, %v217
      %v223 = vrot.slane %v222, 4
      %v225 = vshll.u32 %v193, 16
      %v227 = vrot.slane %v225, 5
      %v228 = vsel %vm204, %v223, %v227
      %v229 = vshrl.u32 %v193, 16
      %v231 = vrot.slane %v229, 4
      %v232 = vor.u32 %v231, %v227
      %v233 = vrot.slane %v232, 4
      %v235 = vshll.u32 %v194, 16
      %v237 = vrot.slane %v235, 5
      %v238 = vsel %vm204, %v233, %v237
      %v239 = vshrl.u32 %v194, 16
      %v241 = vrot.slane %v239, 4
      %v242 = vor.u32 %v241, %v237
      %v243 = vrot.slane %v242, 4
      %v245 = vshll.u32 %v195, 16
      %v247 = vrot.slane %v245, 5
      %v248 = vsel %vm204, %v243, %v247
      %v249 = vshrl.u32 %v195, 16
      %v251 = vrot.slane %v249, 4
      %v252 = vor.u32 %v251, %v247
      %v253 = vrot.slane %v252, 4
      %v255 = vshll.u32 %v196, 16
      %v257 = vrot.slane %v255, 5
      %v258 = vsel %vm204, %v253, %v257
      %v259 = vshrl.u32 %v196, 16
      %v261 = vrot.slane %v259, 4
      %v262 = vor.u32 %v261, %v257
      %v263 = vrot.slane %v262, 4
      %v265 = vshll.u32 %v197, 16
      %v267 = vrot.slane %v265, 5
      %v268 = vsel %vm204, %v263, %v267
      %v269 = vshrl.u32 %v197, 16
      %v271 = vrot.slane %v269, 4
      %v272 = vor.u32 %v271, %v267
      %v273 = vrot.slane %v272, 4
      %v275 = vshll.u32 %v198, 16
      %v277 = vrot.slane %v275, 5
      %v278 = vsel %vm204, %v273, %v277
      %v279 = vshrl.u32 %v198, 16
      %v281 = vrot.slane %v279, 4
      %v282 = vor.u32 %v281, %v277
      %v283 = vrot.slane %v282, 4
      %v285 = vshll.u32 %v199, 16
      %v287 = vrot.slane %v285, 5
      %v288 = vsel %vm204, %v283, %v287
      %v289 = vshrl.u32 %v199, 16
      %v291 = vrot.slane %v289, 4
      %v292 = vor.u32 %v291, %v287
      %v293 = vrot.slane %v292, 4
      %v295 = vshll.u32 %v200, 16
      %v297 = vrot.slane %v295, 5
      %v298 = vsel %vm204, %v293, %v297
      %v299 = vshrl.u32 %v200, 16
      %v301 = vrot.slane %v299, 4
      %v302 = vor.u32 %v301, %v297
      %v303 = vrot.slane %v302, 4
      %v305 = vshll.u32 %v201, 16
      %v307 = vrot.slane %v305, 5
      %v308 = vsel %vm204, %v303, %v307
      %309 = vrot.lane.b32.xlu0 %v218, 4
      %v310 = vpop.permute.xlu0 %309
      %311 = vrot.lane.b32.xlu0 %v228, 4
      %v312 = vpop.permute.xlu0 %311
      %313 = vrot.lane.b32.xlu0 %v238, 4
      %v314 = vpop.permute.xlu0 %313
      %315 = vrot.lane.b32.xlu0 %v248, 4
      %v316 = vpop.permute.xlu0 %315
      %317 = vrot.lane.b32.xlu0 %v258, 4
      %v318 = vpop.permute.xlu0 %317
      %319 = vrot.lane.b32.xlu0 %v268, 4
      %v320 = vpop.permute.xlu0 %319
      %321 = vrot.lane.b32.xlu0 %v278, 4
      %v322 = vpop.permute.xlu0 %321
      %323 = vrot.lane.b32.xlu0 %v288, 4
      %v324 = vpop.permute.xlu0 %323
      %325 = vrot.lane.b32.xlu0 %v298, 4
      %v326 = vpop.permute.xlu0 %325
      %327 = vrot.lane.b32.xlu0 %v308, 4
      %v328 = vpop.permute.xlu0 %327
      %vm339 = vcmask 60448
      %340 = vst.msk [vmem:[#allocation3] sm:$0xf] %vm339, %v310
      %341 = vst.msk [vmem:[#allocation3 + $0x4] sm:$0xf] %vm339, %v312
      %342 = vst.msk [vmem:[#allocation3 + $0x8] sm:$0xf] %vm339, %v314
      %343 = vst.msk [vmem:[#allocation3 + $0xc] sm:$0xf] %vm339, %v316
      %344 = vst.msk [vmem:[#allocation3 + $0x10] sm:$0xf] %vm339, %v318
      %345 = vst.msk [vmem:[#allocation3 + $0x14] sm:$0xf] %vm339, %v320
      %346 = vst.msk [vmem:[#allocation3 + $0x18] sm:$0xf] %vm339, %v322
      %347 = vst.msk [vmem:[#allocation3 + $0x1c] sm:$0xf] %vm339, %v324
      %348 = vst.msk [vmem:[#allocation3 + $0x20] sm:$0xf] %vm339, %v326
      %349 = vst.msk [vmem:[#allocation3 + $0x24] sm:$0xf] %vm339, %v328
      %v350 = vld [vmem:[%s164] sm:$0xe]
      %v351 = vld [vmem:[%s164 + $0x4] sm:$0xf]
      %v352 = vld [vmem:[%s164 + $0x8] sm:$0xf]
      %v353 = vld [vmem:[%s164 + $0xc] sm:$0xf]
      %v354 = vld [vmem:[%s164 + $0x10] sm:$0xf]
      %v355 = vld [vmem:[%s164 + $0x14] sm:$0xf]
      %v356 = vld [vmem:[%s164 + $0x18] sm:$0xf]
      %v357 = vld [vmem:[%s164 + $0x1c] sm:$0xf]
      %v358 = vld [vmem:[%s164 + $0x20] sm:$0xf]
      %v359 = vld [vmem:[%s164 + $0x24] sm:$0xf]
      %v360 = vld [vmem:[%s164 + $0x28] sm:$0x1]
      %vm372 = vcmask 1042432
      %vm373 = vcmask 1046532
      %vm374 = vmor %vm372, %vm373
      %v375 = vrot.slane %v350, 5
      %v376 = vrot.slane %v375, 4
      %v377 = vrot.slane %v351, 5
      %v378 = vsel %vm374, %v376, %v377
      %v379 = vrot.slane %v377, 4
      %v380 = vrot.slane %v352, 5
      %v381 = vsel %vm374, %v379, %v380
      %v382 = vrot.slane %v380, 4
      %v383 = vrot.slane %v353, 5
      %v384 = vsel %vm374, %v382, %v383
      %v385 = vrot.slane %v383, 4
      %v386 = vrot.slane %v354, 5
      %v387 = vsel %vm374, %v385, %v386
      %v388 = vrot.slane %v386, 4
      %v389 = vrot.slane %v355, 5
      %v390 = vsel %vm374, %v388, %v389
      %v391 = vrot.slane %v389, 4
      %v392 = vrot.slane %v356, 5
      %v393 = vsel %vm374, %v391, %v392
      %v394 = vrot.slane %v392, 4
      %v395 = vrot.slane %v357, 5
      %v396 = vsel %vm374, %v394, %v395
      %v397 = vrot.slane %v395, 4
      %v398 = vrot.slane %v358, 5
      %v399 = vsel %vm374, %v397, %v398
      %v400 = vrot.slane %v398, 4
      %v401 = vrot.slane %v359, 5
      %v402 = vsel %vm374, %v400, %v401
      %v403 = vrot.slane %v401, 4
      %v404 = vrot.slane %v360, 5
      %v405 = vsel %vm374, %v403, %v404
      %406 = vrot.lane.b32.xlu0 %v378, 8
      %v407 = vpop.permute.xlu0 %406
      %408 = vrot.lane.b32.xlu0 %v381, 8
      %v409 = vpop.permute.xlu0 %408
      %410 = vrot.lane.b32.xlu0 %v384, 8
      %v411 = vpop.permute.xlu0 %410
      %412 = vrot.lane.b32.xlu0 %v387, 8
      %v413 = vpop.permute.xlu0 %412
      %414 = vrot.lane.b32.xlu0 %v390, 8
      %v415 = vpop.permute.xlu0 %414
      %416 = vrot.lane.b32.xlu0 %v393, 8
      %v417 = vpop.permute.xlu0 %416
      %418 = vrot.lane.b32.xlu0 %v396, 8
      %v419 = vpop.permute.xlu0 %418
      %420 = vrot.lane.b32.xlu0 %v399, 8
      %v421 = vpop.permute.xlu0 %420
      %422 = vrot.lane.b32.xlu0 %v402, 8
      %v423 = vpop.permute.xlu0 %422
      %424 = vrot.lane.b32.xlu0 %v405, 8
      %v425 = vpop.permute.xlu0 %424
      %vm436 = vcmask 93248
      %437 = vst.msk [vmem:[#allocation3] sm:$0xf] %vm436, %v407
      %438 = vst.msk [vmem:[#allocation3 + $0x4] sm:$0xf] %vm436, %v409
      %439 = vst.msk [vmem:[#allocation3 + $0x8] sm:$0xf] %vm436, %v411
      %440 = vst.msk [vmem:[#allocation3 + $0xc] sm:$0xf] %vm436, %v413
      %441 = vst.msk [vmem:[#allocation3 + $0x10] sm:$0xf] %vm436, %v415
      %442 = vst.msk [vmem:[#allocation3 + $0x14] sm:$0xf] %vm436, %v417
      %443 = vst.msk [vmem:[#allocation3 + $0x18] sm:$0xf] %vm436, %v419
      %444 = vst.msk [vmem:[#allocation3 + $0x1c] sm:$0xf] %vm436, %v421
      %445 = vst.msk [vmem:[#allocation3 + $0x20] sm:$0xf] %vm436, %v423
      %446 = vst.msk [vmem:[#allocation3 + $0x24] sm:$0xf] %vm436, %v425
      %v447 = vld [vmem:[%s164 + $0x4] sm:$0xe]
      %v448 = vld [vmem:[%s164 + $0x8] sm:$0xf]
      %v449 = vld [vmem:[%s164 + $0xc] sm:$0xf]
      %v450 = vld [vmem:[%s164 + $0x10] sm:$0xf]
      %v451 = vld [vmem:[%s164 + $0x14] sm:$0xf]
      %v452 = vld [vmem:[%s164 + $0x18] sm:$0xf]
      %v453 = vld [vmem:[%s164 + $0x1c] sm:$0xf]
      %v454 = vld [vmem:[%s164 + $0x20] sm:$0xf]
      %v455 = vld [vmem:[%s164 + $0x24] sm:$0xf]
      %v456 = vld [vmem:[%s164 + $0x28] sm:$0xf]
      %v457 = vld [vmem:[%s164 + $0x2c] sm:$0x1]
      %v469 = vrot.slane %v447, 5
      %v470 = vrot.slane %v469, 4
      %v471 = vrot.slane %v448, 5
      %v472 = vsel %vm374, %v470, %v471
      %v473 = vrot.slane %v471, 4
      %v474 = vrot.slane %v449, 5
      %v475 = vsel %vm374, %v473, %v474
      %v476 = vrot.slane %v474, 4
      %v477 = vrot.slane %v450, 5
      %v478 = vsel %vm374, %v476, %v477
      %v479 = vrot.slane %v477, 4
      %v480 = vrot.slane %v451, 5
      %v481 = vsel %vm374, %v479, %v480
      %v482 = vrot.slane %v480, 4
      %v483 = vrot.slane %v452, 5
      %v484 = vsel %vm374, %v482, %v483
      %v485 = vrot.slane %v483, 4
      %v486 = vrot.slane %v453, 5
      %v487 = vsel %vm374, %v485, %v486
      %v488 = vrot.slane %v486, 4
      %v489 = vrot.slane %v454, 5
      %v490 = vsel %vm374, %v488, %v489
      %v491 = vrot.slane %v489, 4
      %v492 = vrot.slane %v455, 5
      %v493 = vsel %vm374, %v491, %v492
      %v494 = vrot.slane %v492, 4
      %v495 = vrot.slane %v456, 5
      %v496 = vsel %vm374, %v494, %v495
      %v497 = vrot.slane %v495, 4
      %v498 = vrot.slane %v457, 5
      %v499 = vsel %vm374, %v497, %v498
      %500 = vrot.lane.b32.xlu0 %v472, 12
      %v501 = vpop.permute.xlu0 %500
      %502 = vrot.lane.b32.xlu0 %v475, 12
      %v503 = vpop.permute.xlu0 %502
      %504 = vrot.lane.b32.xlu0 %v478, 12
      %v505 = vpop.permute.xlu0 %504
      %506 = vrot.lane.b32.xlu0 %v481, 12
      %v507 = vpop.permute.xlu0 %506
      %508 = vrot.lane.b32.xlu0 %v484, 12
      %v509 = vpop.permute.xlu0 %508
      %510 = vrot.lane.b32.xlu0 %v487, 12
      %v511 = vpop.permute.xlu0 %510
      %512 = vrot.lane.b32.xlu0 %v490, 12
      %v513 = vpop.permute.xlu0 %512
      %514 = vrot.lane.b32.xlu0 %v493, 12
      %v515 = vpop.permute.xlu0 %514
      %516 = vrot.lane.b32.xlu0 %v496, 12
      %v517 = vpop.permute.xlu0 %516
      %518 = vrot.lane.b32.xlu0 %v499, 12
      %v519 = vpop.permute.xlu0 %518
      %vm530 = vcmask 126048
      %531 = vst.msk [vmem:[#allocation3] sm:$0xf] %vm530, %v501
      %532 = vst.msk [vmem:[#allocation3 + $0x4] sm:$0xf] %vm530, %v503
      %533 = vst.msk [vmem:[#allocation3 + $0x8] sm:$0xf] %vm530, %v505
      %534 = vst.msk [vmem:[#allocation3 + $0xc] sm:$0xf] %vm530, %v507
      %535 = vst.msk [vmem:[#allocation3 + $0x10] sm:$0xf] %vm530, %v509
      %536 = vst.msk [vmem:[#allocation3 + $0x14] sm:$0xf] %vm530, %v511
      %537 = vst.msk [vmem:[#allocation3 + $0x18] sm:$0xf] %vm530, %v513
      %538 = vst.msk [vmem:[#allocation3 + $0x1c] sm:$0xf] %vm530, %v515
      %539 = vst.msk [vmem:[#allocation3 + $0x20] sm:$0xf] %vm530, %v517
      %540 = vst.msk [vmem:[#allocation3 + $0x24] sm:$0xf] %vm530, %v519
      %v541 = vld [vmem:[%s164 + $0x4] sm:$0xe]
      %v542 = vld [vmem:[%s164 + $0x8] sm:$0xf]
      %v543 = vld [vmem:[%s164 + $0xc] sm:$0xf]
      %v544 = vld [vmem:[%s164 + $0x10] sm:$0xf]
      %v545 = vld [vmem:[%s164 + $0x14] sm:$0xf]
      %v546 = vld [vmem:[%s164 + $0x18] sm:$0xf]
      %v547 = vld [vmem:[%s164 + $0x1c] sm:$0xf]
      %v548 = vld [vmem:[%s164 + $0x20] sm:$0xf]
      %v549 = vld [vmem:[%s164 + $0x24] sm:$0xf]
      %v550 = vld [vmem:[%s164 + $0x28] sm:$0xf]
      %v551 = vld [vmem:[%s164 + $0x2c] sm:$0x3]
      %vm552 = vsmask.f32 2304
      %vm553 = vsmask.f32 6416
      %vm554 = vmor %vm552, %vm553
      %v556 = vshrl.u32 %v541, 16
      %v558 = vrot.slane %v556, 5
      %v559 = vshll.u32 %v541, 16
      %v561 = vrot.slane %v559, 6
      %v562 = vor.u32 %v558, %v561
      %v563 = vrot.slane %v562, 4
      %v565 = vshrl.u32 %v542, 16
      %v567 = vrot.slane %v565, 5
      %v568 = vshll.u32 %v542, 16
      %v570 = vrot.slane %v568, 6
      %v571 = vor.u32 %v567, %v570
      %v572 = vsel %vm554, %v563, %v571
      %v573 = vrot.slane %v571, 4
      %v575 = vshrl.u32 %v543, 16
      %v577 = vrot.slane %v575, 5
      %v578 = vshll.u32 %v543, 16
      %v580 = vrot.slane %v578, 6
      %v581 = vor.u32 %v577, %v580
      %v582 = vsel %vm554, %v573, %v581
      %v583 = vrot.slane %v581, 4
      %v585 = vshrl.u32 %v544, 16
      %v587 = vrot.slane %v585, 5
      %v588 = vshll.u32 %v544, 16
      %v590 = vrot.slane %v588, 6
      %v591 = vor.u32 %v587, %v590
      %v592 = vsel %vm554, %v583, %v591
      %v593 = vrot.slane %v591, 4
      %v595 = vshrl.u32 %v545, 16
      %v597 = vrot.slane %v595, 5
      %v598 = vshll.u32 %v545, 16
      %v600 = vrot.slane %v598, 6
      %v601 = vor.u32 %v597, %v600
      %v602 = vsel %vm554, %v593, %v601
      %v603 = vrot.slane %v601, 4
      %v605 = vshrl.u32 %v546, 16
      %v607 = vrot.slane %v605, 5
      %v608 = vshll.u32 %v546, 16
      %v610 = vrot.slane %v608, 6
      %v611 = vor.u32 %v607, %v610
      %v612 = vsel %vm554, %v603, %v611
      %v613 = vrot.slane %v611, 4
      %v615 = vshrl.u32 %v547, 16
      %v617 = vrot.slane %v615, 5
      %v618 = vshll.u32 %v547, 16
      %v620 = vrot.slane %v618, 6
      %v621 = vor.u32 %v617, %v620
      %v622 = vsel %vm554, %v613, %v621
      %v623 = vrot.slane %v621, 4
      %v625 = vshrl.u32 %v548, 16
      %v627 = vrot.slane %v625, 5
      %v628 = vshll.u32 %v548, 16
      %v630 = vrot.slane %v628, 6
      %v631 = vor.u32 %v627, %v630
      %v632 = vsel %vm554, %v623, %v631
      %v633 = vrot.slane %v631, 4
      %v635 = vshrl.u32 %v549, 16
      %v637 = vrot.slane %v635, 5
      %v638 = vshll.u32 %v549, 16
      %v640 = vrot.slane %v638, 6
      %v641 = vor.u32 %v637, %v640
      %v642 = vsel %vm554, %v633, %v641
      %v643 = vrot.slane %v641, 4
      %v645 = vshrl.u32 %v550, 16
      %v647 = vrot.slane %v645, 5
      %v648 = vshll.u32 %v550, 16
      %v650 = vrot.slane %v648, 6
      %v651 = vor.u32 %v647, %v650
      %v652 = vsel %vm554, %v643, %v651
      %v653 = vrot.slane %v651, 4
      %v655 = vshrl.u32 %v551, 16
      %v657 = vrot.slane %v655, 5
      %v658 = vshll.u32 %v551, 16
      %v660 = vrot.slane %v658, 6
      %v661 = vor.u32 %v657, %v660
      %v662 = vsel %vm554, %v653, %v661
      %663 = vrot.lane.b32.xlu0 %v572, 16
      %v664 = vpop.permute.xlu0 %663
      %665 = vrot.lane.b32.xlu0 %v582, 16
      %v666 = vpop.permute.xlu0 %665
      %667 = vrot.lane.b32.xlu0 %v592, 16
      %v668 = vpop.permute.xlu0 %667
      %669 = vrot.lane.b32.xlu0 %v602, 16
      %v670 = vpop.permute.xlu0 %669
      %671 = vrot.lane.b32.xlu0 %v612, 16
      %v672 = vpop.permute.xlu0 %671
      %673 = vrot.lane.b32.xlu0 %v622, 16
      %v674 = vpop.permute.xlu0 %673
      %675 = vrot.lane.b32.xlu0 %v632, 16
      %v676 = vpop.permute.xlu0 %675
      %677 = vrot.lane.b32.xlu0 %v642, 16
      %v678 = vpop.permute.xlu0 %677
      %679 = vrot.lane.b32.xlu0 %v652, 16
      %v680 = vpop.permute.xlu0 %679
      %681 = vrot.lane.b32.xlu0 %v662, 16
      %v682 = vpop.permute.xlu0 %681
      %vm693 = vcmask 158848
      %694 = vst.msk [vmem:[#allocation3] sm:$0xf] %vm693, %v664
      %695 = vst.msk [vmem:[#allocation3 + $0x4] sm:$0xf] %vm693, %v666
      %696 = vst.msk [vmem:[#allocation3 + $0x8] sm:$0xf] %vm693, %v668
      %697 = vst.msk [vmem:[#allocation3 + $0xc] sm:$0xf] %vm693, %v670
      %698 = vst.msk [vmem:[#allocation3 + $0x10] sm:$0xf] %vm693, %v672
      %699 = vst.msk [vmem:[#allocation3 + $0x14] sm:$0xf] %vm693, %v674
      %700 = vst.msk [vmem:[#allocation3 + $0x18] sm:$0xf] %vm693, %v676
      %701 = vst.msk [vmem:[#allocation3 + $0x1c] sm:$0xf] %vm693, %v678
      %702 = vst.msk [vmem:[#allocation3 + $0x20] sm:$0xf] %vm693, %v680
      %703 = vst.msk [vmem:[#allocation3 + $0x24] sm:$0xf] %vm693, %v682
      %v704 = vld [vmem:[%s164 + $0x4] sm:$0xc]
      %v705 = vld [vmem:[%s164 + $0x8] sm:$0xf]
      %v706 = vld [vmem:[%s164 + $0xc] sm:$0xf]
      %v707 = vld [vmem:[%s164 + $0x10] sm:$0xf]
      %v708 = vld [vmem:[%s164 + $0x14] sm:$0xf]
      %v709 = vld [vmem:[%s164 + $0x18] sm:$0xf]
      %v710 = vld [vmem:[%s164 + $0x1c] sm:$0xf]
      %v711 = vld [vmem:[%s164 + $0x20] sm:$0xf]
      %v712 = vld [vmem:[%s164 + $0x24] sm:$0xf]
      %v713 = vld [vmem:[%s164 + $0x28] sm:$0xf]
      %v714 = vld [vmem:[%s164 + $0x2c] sm:$0x3]
      %vm726 = vcmask 1041408
      %vm727 = vcmask 1045508
      %vm728 = vmor %vm726, %vm727
      %v729 = vrot.slane %v704, 6
      %v730 = vrot.slane %v729, 4
      %v731 = vrot.slane %v705, 6
      %v732 = vsel %vm728, %v730, %v731
      %v733 = vrot.slane %v731, 4
      %v734 = vrot.slane %v706, 6
      %v735 = vsel %vm728, %v733, %v734
      %v736 = vrot.slane %v734, 4
      %v737 = vrot.slane %v707, 6
      %v738 = vsel %vm728, %v736, %v737
      %v739 = vrot.slane %v737, 4
      %v740 = vrot.slane %v708, 6
      %v741 = vsel %vm728, %v739, %v740
      %v742 = vrot.slane %v740, 4
      %v743 = vrot.slane %v709, 6
      %v744 = vsel %vm728, %v742, %v743
      %v745 = vrot.slane %v743, 4
      %v746 = vrot.slane %v710, 6
      %v747 = vsel %vm728, %v745, %v746
      %v748 = vrot.slane %v746, 4
      %v749 = vrot.slane %v711, 6
      %v750 = vsel %vm728, %v748, %v749
      %v751 = vrot.slane %v749, 4
      %v752 = vrot.slane %v712, 6
      %v753 = vsel %vm728, %v751, %v752
      %v754 = vrot.slane %v752, 4
      %v755 = vrot.slane %v713, 6
      %v756 = vsel %vm728, %v754, %v755
      %v757 = vrot.slane %v755, 4
      %v758 = vrot.slane %v714, 6
      %v759 = vsel %vm728, %v757, %v758
      %760 = vrot.lane.b32.xlu0 %v732, 20
      %v761 = vpop.permute.xlu0 %760
      %762 = vrot.lane.b32.xlu0 %v735, 20
      %v763 = vpop.permute.xlu0 %762
      %764 = vrot.lane.b32.xlu0 %v738, 20
      %v765 = vpop.permute.xlu0 %764
      %766 = vrot.lane.b32.xlu0 %v741, 20
      %v767 = vpop.permute.xlu0 %766
      %768 = vrot.lane.b32.xlu0 %v744, 20
      %v769 = vpop.permute.xlu0 %768
      %770 = vrot.lane.b32.xlu0 %v747, 20
      %v771 = vpop.permute.xlu0 %770
      %772 = vrot.lane.b32.xlu0 %v750, 20
      %v773 = vpop.permute.xlu0 %772
      %774 = vrot.lane.b32.xlu0 %v753, 20
      %v775 = vpop.permute.xlu0 %774
      %776 = vrot.lane.b32.xlu0 %v756, 20
      %v777 = vpop.permute.xlu0 %776
      %778 = vrot.lane.b32.xlu0 %v759, 20
      %v779 = vpop.permute.xlu0 %778
      %vm790 = vcmask 191648
      %791 = vst.msk [vmem:[#allocation3] sm:$0xf] %vm790, %v761
      %792 = vst.msk [vmem:[#allocation3 + $0x4] sm:$0xf] %vm790, %v763
      %793 = vst.msk [vmem:[#allocation3 + $0x8] sm:$0xf] %vm790, %v765
      %794 = vst.msk [vmem:[#allocation3 + $0xc] sm:$0xf] %vm790, %v767
      %795 = vst.msk [vmem:[#allocation3 + $0x10] sm:$0xf] %vm790, %v769
      %796 = vst.msk [vmem:[#allocation3 + $0x14] sm:$0xf] %vm790, %v771
      %797 = vst.msk [vmem:[#allocation3 + $0x18] sm:$0xf] %vm790, %v773
      %798 = vst.msk [vmem:[#allocation3 + $0x1c] sm:$0xf] %vm790, %v775
      %799 = vst.msk [vmem:[#allocation3 + $0x20] sm:$0xf] %vm790, %v777
      %800 = vst.msk [vmem:[#allocation3 + $0x24] sm:$0xf] %vm790, %v779
      %v801 = vld [vmem:[%s164 + $0x8] sm:$0xc]
      %v802 = vld [vmem:[%s164 + $0xc] sm:$0xf]
      %v803 = vld [vmem:[%s164 + $0x10] sm:$0xf]
      %v804 = vld [vmem:[%s164 + $0x14] sm:$0xf]
      %v805 = vld [vmem:[%s164 + $0x18] sm:$0xf]
      %v806 = vld [vmem:[%s164 + $0x1c] sm:$0xf]
      %v807 = vld [vmem:[%s164 + $0x20] sm:$0xf]
      %v808 = vld [vmem:[%s164 + $0x24] sm:$0xf]
      %v809 = vld [vmem:[%s164 + $0x28] sm:$0xf]
      %v810 = vld [vmem:[%s164 + $0x2c] sm:$0xf]
      %v811 = vld [vmem:[%s164 + $0x30] sm:$0x3]
      %v823 = vrot.slane %v801, 6
      %v824 = vrot.slane %v823, 4
      %v825 = vrot.slane %v802, 6
      %v826 = vsel %vm728, %v824, %v825
      %v827 = vrot.slane %v825, 4
      %v828 = vrot.slane %v803, 6
      %v829 = vsel %vm728, %v827, %v828
      %v830 = vrot.slane %v828, 4
      %v831 = vrot.slane %v804, 6
      %v832 = vsel %vm728, %v830, %v831
      %v833 = vrot.slane %v831, 4
      %v834 = vrot.slane %v805, 6
      %v835 = vsel %vm728, %v833, %v834
      %v836 = vrot.slane %v834, 4
      %v837 = vrot.slane %v806, 6
      %v838 = vsel %vm728, %v836, %v837
      %v839 = vrot.slane %v837, 4
      %v840 = vrot.slane %v807, 6
      %v841 = vsel %vm728, %v839, %v840
      %v842 = vrot.slane %v840, 4
      %v843 = vrot.slane %v808, 6
      %v844 = vsel %vm728, %v842, %v843
      %v845 = vrot.slane %v843, 4
      %v846 = vrot.slane %v809, 6
      %v847 = vsel %vm728, %v845, %v846
      %v848 = vrot.slane %v846, 4
      %v849 = vrot.slane %v810, 6
      %v850 = vsel %vm728, %v848, %v849
      %v851 = vrot.slane %v849, 4
      %v852 = vrot.slane %v811, 6
      %v853 = vsel %vm728, %v851, %v852
      %854 = vrot.lane.b32.xlu0 %v826, 24
      %v855 = vpop.permute.xlu0 %854
      %856 = vrot.lane.b32.xlu0 %v829, 24
      %v857 = vpop.permute.xlu0 %856
      %858 = vrot.lane.b32.xlu0 %v832, 24
      %v859 = vpop.permute.xlu0 %858
      %860 = vrot.lane.b32.xlu0 %v835, 24
      %v861 = vpop.permute.xlu0 %860
      %862 = vrot.lane.b32.xlu0 %v838, 24
      %v863 = vpop.permute.xlu0 %862
      %864 = vrot.lane.b32.xlu0 %v841, 24
      %v865 = vpop.permute.xlu0 %864
      %866 = vrot.lane.b32.xlu0 %v844, 24
      %v867 = vpop.permute.xlu0 %866
      %868 = vrot.lane.b32.xlu0 %v847, 24
      %v869 = vpop.permute.xlu0 %868
      %870 = vrot.lane.b32.xlu0 %v850, 24
      %v871 = vpop.permute.xlu0 %870
      %872 = vrot.lane.b32.xlu0 %v853, 24
      %v873 = vpop.permute.xlu0 %872
      %vm884 = vcmask 224448
      %885 = vst.msk [vmem:[#allocation3] sm:$0xf] %vm884, %v855
      %886 = vst.msk [vmem:[#allocation3 + $0x4] sm:$0xf] %vm884, %v857
      %887 = vst.msk [vmem:[#allocation3 + $0x8] sm:$0xf] %vm884, %v859
      %888 = vst.msk [vmem:[#allocation3 + $0xc] sm:$0xf] %vm884, %v861
      %889 = vst.msk [vmem:[#allocation3 + $0x10] sm:$0xf] %vm884, %v863
      %890 = vst.msk [vmem:[#allocation3 + $0x14] sm:$0xf] %vm884, %v865
      %891 = vst.msk [vmem:[#allocation3 + $0x18] sm:$0xf] %vm884, %v867
      %892 = vst.msk [vmem:[#allocation3 + $0x1c] sm:$0xf] %vm884, %v869
      %893 = vst.msk [vmem:[#allocation3 + $0x20] sm:$0xf] %vm884, %v871
      %894 = vst.msk [vmem:[#allocation3 + $0x24] sm:$0xf] %vm884, %v873
      %v895 = vld [vmem:[%s164 + $0x8] sm:$0xc]
      %v896 = vld [vmem:[%s164 + $0xc] sm:$0xf]
      %v897 = vld [vmem:[%s164 + $0x10] sm:$0xf]
      %v898 = vld [vmem:[%s164 + $0x14] sm:$0xf]
      %v899 = vld [vmem:[%s164 + $0x18] sm:$0xf]
      %v900 = vld [vmem:[%s164 + $0x1c] sm:$0xf]
      %v901 = vld [vmem:[%s164 + $0x20] sm:$0xf]
      %v902 = vld [vmem:[%s164 + $0x24] sm:$0xf]
      %v903 = vld [vmem:[%s164 + $0x28] sm:$0xf]
      %v904 = vld [vmem:[%s164 + $0x2c] sm:$0xf]
      %v905 = vld [vmem:[%s164 + $0x30] sm:$0x7]
      %vm906 = vsmask.f32 1280
      %vm907 = vsmask.f32 5392
      %vm908 = vmor %vm906, %vm907
      %v910 = vshrl.u32 %v895, 16
      %v912 = vrot.slane %v910, 6
      %v913 = vshll.u32 %v895, 16
      %v915 = vrot.slane %v913, 7
      %v916 = vor.u32 %v912, %v915
      %v917 = vrot.slane %v916, 4
      %v919 = vshrl.u32 %v896, 16
      %v921 = vrot.slane %v919, 6
      %v922 = vshll.u32 %v896, 16
      %v924 = vrot.slane %v922, 7
      %v925 = vor.u32 %v921, %v924
      %v926 = vsel %vm908, %v917, %v925
      %v927 = vrot.slane %v925, 4
      %v929 = vshrl.u32 %v897, 16
      %v931 = vrot.slane %v929, 6
      %v932 = vshll.u32 %v897, 16
      %v934 = vrot.slane %v932, 7
      %v935 = vor.u32 %v931, %v934
      %v936 = vsel %vm908, %v927, %v935
      %v937 = vrot.slane %v935, 4
      %v939 = vshrl.u32 %v898, 16
      %v941 = vrot.slane %v939, 6
      %v942 = vshll.u32 %v898, 16
      %v944 = vrot.slane %v942, 7
      %v945 = vor.u32 %v941, %v944
      %v946 = vsel %vm908, %v937, %v945
      %v947 = vrot.slane %v945, 4
      %v949 = vshrl.u32 %v899, 16
      %v951 = vrot.slane %v949, 6
      %v952 = vshll.u32 %v899, 16
      %v954 = vrot.slane %v952, 7
      %v955 = vor.u32 %v951, %v954
      %v956 = vsel %vm908, %v947, %v955
      %v957 = vrot.slane %v955, 4
      %v959 = vshrl.u32 %v900, 16
      %v961 = vrot.slane %v959, 6
      %v962 = vshll.u32 %v900, 16
      %v964 = vrot.slane %v962, 7
      %v965 = vor.u32 %v961, %v964
      %v966 = vsel %vm908, %v957, %v965
      %v967 = vrot.slane %v965, 4
      %v969 = vshrl.u32 %v901, 16
      %v971 = vrot.slane %v969, 6
      %v972 = vshll.u32 %v901, 16
      %v974 = vrot.slane %v972, 7
      %v975 = vor.u32 %v971, %v974
      %v976 = vsel %vm908, %v967, %v975
      %v977 = vrot.slane %v975, 4
      %v979 = vshrl.u32 %v902, 16
      %v981 = vrot.slane %v979, 6
      %v982 = vshll.u32 %v902, 16
      %v984 = vrot.slane %v982, 7
      %v985 = vor.u32 %v981, %v984
      %v986 = vsel %vm908, %v977, %v985
      %v987 = vrot.slane %v985, 4
      %v989 = vshrl.u32 %v903, 16
      %v991 = vrot.slane %v989, 6
      %v992 = vshll.u32 %v903, 16
      %v994 = vrot.slane %v992, 7
      %v995 = vor.u32 %v991, %v994
      %v996 = vsel %vm908, %v987, %v995
      %v997 = vrot.slane %v995, 4
      %v999 = vshrl.u32 %v904, 16
      %v1001 = vrot.slane %v999, 6
      %v1002 = vshll.u32 %v904, 16
      %v1004 = vrot.slane %v1002, 7
      %v1005 = vor.u32 %v1001, %v1004
      %v1006 = vsel %vm908, %v997, %v1005
      %v1007 = vrot.slane %v1005, 4
      %v1009 = vshrl.u32 %v905, 16
      %v1011 = vrot.slane %v1009, 6
      %v1012 = vshll.u32 %v905, 16
      %v1014 = vrot.slane %v1012, 7
      %v1015 = vor.u32 %v1011, %v1014
      %v1016 = vsel %vm908, %v1007, %v1015
      %1017 = vrot.lane.b32.xlu0 %v926, 28
      %v1018 = vpop.permute.xlu0 %1017
      %1019 = vrot.lane.b32.xlu0 %v936, 28
      %v1020 = vpop.permute.xlu0 %1019
      %1021 = vrot.lane.b32.xlu0 %v946, 28
      %v1022 = vpop.permute.xlu0 %1021
      %1023 = vrot.lane.b32.xlu0 %v956, 28
      %v1024 = vpop.permute.xlu0 %1023
      %1025 = vrot.lane.b32.xlu0 %v966, 28
      %v1026 = vpop.permute.xlu0 %1025
      %1027 = vrot.lane.b32.xlu0 %v976, 28
      %v1028 = vpop.permute.xlu0 %1027
      %1029 = vrot.lane.b32.xlu0 %v986, 28
      %v1030 = vpop.permute.xlu0 %1029
      %1031 = vrot.lane.b32.xlu0 %v996, 28
      %v1032 = vpop.permute.xlu0 %1031
      %1033 = vrot.lane.b32.xlu0 %v1006, 28
      %v1034 = vpop.permute.xlu0 %1033
      %1035 = vrot.lane.b32.xlu0 %v1016, 28
      %v1036 = vpop.permute.xlu0 %1035
      %vm1047 = vcmask 257248
      %1048 = vst.msk [vmem:[#allocation3] sm:$0xf] %vm1047, %v1018
      %1049 = vst.msk [vmem:[#allocation3 + $0x4] sm:$0xf] %vm1047, %v1020
      %1050 = vst.msk [vmem:[#allocation3 + $0x8] sm:$0xf] %vm1047, %v1022
      %1051 = vst.msk [vmem:[#allocation3 + $0xc] sm:$0xf] %vm1047, %v1024
      %1052 = vst.msk [vmem:[#allocation3 + $0x10] sm:$0xf] %vm1047, %v1026
      %1053 = vst.msk [vmem:[#allocation3 + $0x14] sm:$0xf] %vm1047, %v1028
      %1054 = vst.msk [vmem:[#allocation3 + $0x18] sm:$0xf] %vm1047, %v1030
      %1055 = vst.msk [vmem:[#allocation3 + $0x1c] sm:$0xf] %vm1047, %v1032
      %1056 = vst.msk [vmem:[#allocation3 + $0x20] sm:$0xf] %vm1047, %v1034
      %1057 = vst.msk [vmem:[#allocation3 + $0x24] sm:$0xf] %vm1047, %v1036
      %v1058 = vld [vmem:[%s164 + $0x8] sm:$0x8]
      %v1059 = vld [vmem:[%s164 + $0xc] sm:$0xf]
      %v1060 = vld [vmem:[%s164 + $0x10] sm:$0xf]
      %v1061 = vld [vmem:[%s164 + $0x14] sm:$0xf]
      %v1062 = vld [vmem:[%s164 + $0x18] sm:$0xf]
      %v1063 = vld [vmem:[%s164 + $0x1c] sm:$0xf]
      %v1064 = vld [vmem:[%s164 + $0x20] sm:$0xf]
      %v1065 = vld [vmem:[%s164 + $0x24] sm:$0xf]
      %v1066 = vld [vmem:[%s164 + $0x28] sm:$0xf]
      %v1067 = vld [vmem:[%s164 + $0x2c] sm:$0xf]
      %v1068 = vld [vmem:[%s164 + $0x30] sm:$0x7]
      %vm1080 = vcmask 1040384
      %vm1081 = vcmask 1044484
      %vm1082 = vmor %vm1080, %vm1081
      %v1083 = vrot.slane %v1058, 7
      %v1084 = vrot.slane %v1083, 4
      %v1085 = vrot.slane %v1059, 7
      %v1086 = vsel %vm1082, %v1084, %v1085
      %v1087 = vrot.slane %v1085, 4
      %v1088 = vrot.slane %v1060, 7
      %v1089 = vsel %vm1082, %v1087, %v1088
      %v1090 = vrot.slane %v1088, 4
      %v1091 = vrot.slane %v1061, 7
      %v1092 = vsel %vm1082, %v1090, %v1091
      %v1093 = vrot.slane %v1091, 4
      %v1094 = vrot.slane %v1062, 7
      %v1095 = vsel %vm1082, %v1093, %v1094
      %v1096 = vrot.slane %v1094, 4
      %v1097 = vrot.slane %v1063, 7
      %v1098 = vsel %vm1082, %v1096, %v1097
      %v1099 = vrot.slane %v1097, 4
      %v1100 = vrot.slane %v1064, 7
      %v1101 = vsel %vm1082, %v1099, %v1100
      %v1102 = vrot.slane %v1100, 4
      %v1103 = vrot.slane %v1065, 7
      %v1104 = vsel %vm1082, %v1102, %v1103
      %v1105 = vrot.slane %v1103, 4
      %v1106 = vrot.slane %v1066, 7
      %v1107 = vsel %vm1082, %v1105, %v1106
      %v1108 = vrot.slane %v1106, 4
      %v1109 = vrot.slane %v1067, 7
      %v1110 = vsel %vm1082, %v1108, %v1109
      %v1111 = vrot.slane %v1109, 4
      %v1112 = vrot.slane %v1068, 7
      %v1113 = vsel %vm1082, %v1111, %v1112
      %1114 = vrot.lane.b32.xlu0 %v1086, 32
      %v1115 = vpop.permute.xlu0 %1114
      %1116 = vrot.lane.b32.xlu0 %v1089, 32
      %v1117 = vpop.permute.xlu0 %1116
      %1118 = vrot.lane.b32.xlu0 %v1092, 32
      %v1119 = vpop.permute.xlu0 %1118
      %1120 = vrot.lane.b32.xlu0 %v1095, 32
      %v1121 = vpop.permute.xlu0 %1120
      %1122 = vrot.lane.b32.xlu0 %v1098, 32
      %v1123 = vpop.permute.xlu0 %1122
      %1124 = vrot.lane.b32.xlu0 %v1101, 32
      %v1125 = vpop.permute.xlu0 %1124
      %1126 = vrot.lane.b32.xlu0 %v1104, 32
      %v1127 = vpop.permute.xlu0 %1126
      %1128 = vrot.lane.b32.xlu0 %v1107, 32
      %v1129 = vpop.permute.xlu0 %1128
      %1130 = vrot.lane.b32.xlu0 %v1110, 32
      %v1131 = vpop.permute.xlu0 %1130
      %1132 = vrot.lane.b32.xlu0 %v1113, 32
      %v1133 = vpop.permute.xlu0 %1132
      %vm1144 = vcmask 290048
      %1145 = vst.msk [vmem:[#allocation3] sm:$0xf] %vm1144, %v1115
      %1146 = vst.msk [vmem:[#allocation3 + $0x4] sm:$0xf] %vm1144, %v1117
      %1147 = vst.msk [vmem:[#allocation3 + $0x8] sm:$0xf] %vm1144, %v1119
      %1148 = vst.msk [vmem:[#allocation3 + $0xc] sm:$0xf] %vm1144, %v1121
      %1149 = vst.msk [vmem:[#allocation3 + $0x10] sm:$0xf] %vm1144, %v1123
      %1150 = vst.msk [vmem:[#allocation3 + $0x14] sm:$0xf] %vm1144, %v1125
      %1151 = vst.msk [vmem:[#allocation3 + $0x18] sm:$0xf] %vm1144, %v1127
      %1152 = vst.msk [vmem:[#allocation3 + $0x1c] sm:$0xf] %vm1144, %v1129
      %1153 = vst.msk [vmem:[#allocation3 + $0x20] sm:$0xf] %vm1144, %v1131
      %1154 = vst.msk [vmem:[#allocation3 + $0x24] sm:$0xf] %vm1144, %v1133
      %v1155 = vld [vmem:[#allocation3] sm:$0xf]
      %v1156 = vld [vmem:[#allocation3 + $0x4] sm:$0xf]
      %v1157 = vld [vmem:[#allocation3 + $0x8] sm:$0xf]
      %v1158 = vld [vmem:[#allocation3 + $0xc] sm:$0xf]
      %v1159 = vld [vmem:[#allocation3 + $0x10] sm:$0xf]
      %v1160 = vld [vmem:[#allocation3 + $0x14] sm:$0xf]
      %v1161 = vld [vmem:[#allocation3 + $0x18] sm:$0xf]
      %v1162 = vld [vmem:[#allocation3 + $0x1c] sm:$0xf]
      %v1163 = vld [vmem:[#allocation3 + $0x20] sm:$0xf]
      %v1164 = vld [vmem:[#allocation3 + $0x24] sm:$0xf]
      %v1165 = vld [vmem:[%s1] sm:$0xf]
      %v1166 = vld [vmem:[%s1 + $0x4] sm:$0xf]
      %v1167 = vld [vmem:[%s1 + $0x8] sm:$0xf]
      %v1168 = vld [vmem:[%s1 + $0xc] sm:$0xf]
      %v1169 = vld [vmem:[%s1 + $0x10] sm:$0x3]
      %v1180 = vunpack.c.l.b16 %v1155
      %v1181 = vunpack.c.l.b16 %v1156
      %v1182 = vunpack.c.l.b16 %v1157
      %v1183 = vunpack.c.l.b16 %v1158
      %v1184 = vunpack.c.l.b16 %v1159
      %v1185 = vunpack.c.l.b16 %v1160
      %v1186 = vunpack.c.l.b16 %v1161
      %v1187 = vunpack.c.l.b16 %v1162
      %v1188 = vunpack.c.l.b16 %v1163
      %v1189 = vunpack.c.l.b16 %v1164
      %v1190 = vpack.c.b16 %v1181, %v1180
      %v1191 = vpack.c.b16 %v1183, %v1182
      %v1192 = vpack.c.b16 %v1185, %v1184
      %v1193 = vpack.c.b16 %v1187, %v1186
      %v1194 = vpack.c.b16 %v1189, %v1188
      %v1200 = vunpack.c.l.b16 %v1165
      %v1201 = vunpack.c.l.b16 %v1166
      %v1202 = vunpack.c.l.b16 %v1167
      %v1203 = vunpack.c.l.b16 %v1168
      %v1204 = vunpack.c.l.b16 %v1169
      %v1205 = vpack.c.b16 %v1201, %v1200
      %v1206 = vpack.c.b16 %v1203, %v1202
      %v1207 = vpack.c.b16 %v1204, %v1204
      %vm1210 = vcmask 293888
      %v1212 = vsel %vm1210, %v1190, 0
      %v1215 = vsel %vm1210, %v1191, 0
      %v1218 = vsel %vm1210, %v1192, 0
      %v1221 = vsel %vm1210, %v1193, 0
      %v1224 = vsel %vm1210, %v1194, 0
      %vm1226 = vcmask 1041408
      %v1228 = vsel %vm1226, %v1207, 0
      %1230 = vmatprep.subr.bf16.mxu0 0
      %1231 = vmatpush1.bf16.msra.mxu0 0
      %1232 = vmatprep.subr.bf16.mxu0 0
      %1233 = vmatpush1.bf16.msra.mxu0 0
      %1234 = vmatprep.subr.bf16.mxu0 0
      %1235 = vmatpush1.bf16.msra.mxu0 0
      %1236 = vmatprep.subr.bf16.mxu0 0
      %1237 = vmatpush1.bf16.msra.mxu0 0
      %1238 = vmatprep.subr.bf16.mxu0 0
      %1239 = vmatpush1.bf16.msra.mxu0 0
      %1240 = vmatprep.subr.bf16.mxu0 0
      %1241 = vmatpush1.bf16.msra.mxu0 %v1228
      %1242 = vmatprep.subr.bf16.mxu0 0
      %1243 = vmatpush1.bf16.msra.mxu0 %v1206
      %1244 = vmatprep.subr.bf16.mxu0 0
      %1245 = vmatpush1.bf16.msra.mxu0 %v1205
      %1246 = vmatprep.subr.bf16.mxu0 0
      %1247 = vmatpush2.bf16.msra.mxu0 0
      %1248 = vmatprep.subr.bf16.mxu0 0
      %1249 = vmatpush2.bf16.msra.mxu0 0
      %1250 = vmatprep.subr.bf16.mxu0 0
      %1251 = vmatpush2.bf16.msra.mxu0 0
      %1252 = vmatprep.subr.bf16.mxu0 0
      %1253 = vmatpush2.bf16.msra.mxu0 0
      %1254 = vmatprep.subr.bf16.mxu0 0
      %1255 = vmatpush2.bf16.msra.mxu0 0
      %1256 = vmatprep.subr.bf16.mxu0 0
      %1257 = vmatpush2.bf16.msra.mxu0 0
      %1258 = vmatprep.subr.bf16.mxu0 0
      %1259 = vmatpush2.bf16.msra.mxu0 0
      %1260 = vmatprep.subr.bf16.mxu0 0
      %1261 = vmatpush2.bf16.msra.mxu0 0
      %1262 = vmatprep.mubr.bf16.mxu0 0
      %1263 = vmatmul.mubr.bf16.gmra.mxu0 %v1212
      %v1264 = vpop.f32.mrf.mxu0
      %v1265 = vadd.f32 0.0, %v1264
      %v1266 = vpop.f32.mrf.mxu0
      %v1267 = vpop.f32.mrf.mxu0
      %v1268 = vadd.f32 0.0, %v1267
      %v1269 = vpop.f32.mrf.mxu0
      %1270 = vmatprep.mubr.bf16.mxu0 0
      %1271 = vmatmul.mubr.bf16.gmra.mxu0 %v1215
      %v1272 = vpop.f32.mrf.mxu0
      %v1273 = vadd.f32 0.0, %v1272
      %v1274 = vpop.f32.mrf.mxu0
      %v1275 = vpop.f32.mrf.mxu0
      %v1276 = vadd.f32 0.0, %v1275
      %v1277 = vpop.f32.mrf.mxu0
      %1278 = vmatprep.mubr.bf16.mxu0 0
      %1279 = vmatmul.mubr.bf16.gmra.mxu0 %v1218
      %v1280 = vpop.f32.mrf.mxu0
      %v1281 = vadd.f32 0.0, %v1280
      %v1282 = vpop.f32.mrf.mxu0
      %v1283 = vpop.f32.mrf.mxu0
      %v1284 = vadd.f32 0.0, %v1283
      %v1285 = vpop.f32.mrf.mxu0
      %1286 = vmatprep.mubr.bf16.mxu0 0
      %1287 = vmatmul.mubr.bf16.gmra.mxu0 %v1221
      %v1288 = vpop.f32.mrf.mxu0
      %v1289 = vadd.f32 0.0, %v1288
      %v1290 = vpop.f32.mrf.mxu0
      %v1291 = vpop.f32.mrf.mxu0
      %v1292 = vadd.f32 0.0, %v1291
      %v1293 = vpop.f32.mrf.mxu0
      %1294 = vmatprep.mubr.bf16.mxu0 0
      %1295 = vmatmul.mubr.bf16.gmra.mxu0 %v1224
      %v1296 = vpop.f32.mrf.mxu0
      %v1297 = vadd.f32 0.0, %v1296
      %v1298 = vpop.f32.mrf.mxu0
      %v1299 = vpop.f32.mrf.mxu0
      %v1300 = vadd.f32 0.0, %v1299
      %v1301 = vpop.f32.mrf.mxu0
      %1302 = vdwg.mxu0
      %vm1303 = vcmask 64512
      %1304 = vst.msk [vmem:[#allocation2] sm:$0xff] %vm1303, %v1265
      %1305 = vst.msk [vmem:[#allocation2 + $0x8] sm:$0xff] %vm1303, %v1268
      %1306 = vst.msk [vmem:[#allocation2 + $0x10] sm:$0xff] %vm1303, %v1273
      %1307 = vst.msk [vmem:[#allocation2 + $0x18] sm:$0xff] %vm1303, %v1276
      %1308 = vst.msk [vmem:[#allocation2 + $0x20] sm:$0xff] %vm1303, %v1281
      %1309 = vst.msk [vmem:[#allocation2 + $0x28] sm:$0xff] %vm1303, %v1284
      %1310 = vst.msk [vmem:[#allocation2 + $0x30] sm:$0xff] %vm1303, %v1289
      %1311 = vst.msk [vmem:[#allocation2 + $0x38] sm:$0xff] %vm1303, %v1292
      %1312 = vst.msk [vmem:[#allocation2 + $0x40] sm:$0xff] %vm1303, %v1297
      %1313 = vst.msk [vmem:[#allocation2 + $0x48] sm:$0xff] %vm1303, %v1300
      %v1314 = vld [vmem:[#allocation2] sm:$0xff]
      %v1315 = vld [vmem:[#allocation2 + $0x8] sm:$0xff]
      %v1316 = vld [vmem:[#allocation2 + $0x10] sm:$0xff]
      %v1317 = vld [vmem:[#allocation2 + $0x18] sm:$0xff]
      %v1318 = vld [vmem:[#allocation2 + $0x20] sm:$0xff]
      %v1319 = vld [vmem:[#allocation2 + $0x28] sm:$0xff]
      %v1320 = vld [vmem:[#allocation2 + $0x30] sm:$0xff]
      %v1321 = vld [vmem:[#allocation2 + $0x38] sm:$0xff]
      %v1322 = vld [vmem:[#allocation2 + $0x40] sm:$0xff]
      %v1323 = vld [vmem:[#allocation2 + $0x48] sm:$0xff]
      %v1324 = vld [vmem:[%s2] sm:$0xff]
      %v1325 = vld [vmem:[%s2 + $0x8] sm:$0xff]
      %v1326 = vld [vmem:[%s2 + $0x10] sm:$0xff]
      %v1327 = vld [vmem:[%s2 + $0x18] sm:$0xff]
      %v1328 = vld [vmem:[%s2 + $0x20] sm:$0xff]
      %v1329 = vld [vmem:[%s2 + $0x28] sm:$0xff]
      %v1330 = vld [vmem:[%s2 + $0x30] sm:$0xff]
      %v1331 = vld [vmem:[%s2 + $0x38] sm:$0xff]
      %v1332 = vld [vmem:[%s2 + $0x40] sm:$0xff]
      %v1333 = vld [vmem:[%s2 + $0x48] sm:$0xff]
      %1335 = vset.pattern.permute.xlu0 0
      %1336 = vperm.xlu0 %1335, %v1324
      %v1337 = vpop.permute.xlu0 %1336
      %1340 = vset.pattern.permute.xlu0 0
      %1341 = vperm.xlu0 %1340, %v1325
      %v1342 = vpop.permute.xlu0 %1341
      %1345 = vset.pattern.permute.xlu0 0
      %1346 = vperm.xlu0 %1345, %v1326
      %v1347 = vpop.permute.xlu0 %1346
      %1350 = vset.pattern.permute.xlu0 0
      %1351 = vperm.xlu0 %1350, %v1327
      %v1352 = vpop.permute.xlu0 %1351
      %1355 = vset.pattern.permute.xlu0 0
      %1356 = vperm.xlu0 %1355, %v1328
      %v1357 = vpop.permute.xlu0 %1356
      %1360 = vset.pattern.permute.xlu0 0
      %1361 = vperm.xlu0 %1360, %v1329
      %v1362 = vpop.permute.xlu0 %1361
      %1365 = vset.pattern.permute.xlu0 0
      %1366 = vperm.xlu0 %1365, %v1330
      %v1367 = vpop.permute.xlu0 %1366
      %1370 = vset.pattern.permute.xlu0 0
      %1371 = vperm.xlu0 %1370, %v1331
      %v1372 = vpop.permute.xlu0 %1371
      %1375 = vset.pattern.permute.xlu0 0
      %1376 = vperm.xlu0 %1375, %v1332
      %v1377 = vpop.permute.xlu0 %1376
      %1380 = vset.pattern.permute.xlu0 0
      %1381 = vperm.xlu0 %1380, %v1333
      %v1382 = vpop.permute.xlu0 %1381
      %v1384 = vmul.f32 %v1314, %v1337
      %v1385 = vmul.f32 %v1315, %v1342
      %v1386 = vmul.f32 %v1316, %v1347
      %v1387 = vmul.f32 %v1317, %v1352
      %v1388 = vmul.f32 %v1318, %v1357
      %v1389 = vmul.f32 %v1319, %v1362
      %v1390 = vmul.f32 %v1320, %v1367
      %v1391 = vmul.f32 %v1321, %v1372
      %v1392 = vmul.f32 %v1322, %v1377
      %v1393 = vmul.f32 %v1323, %v1382
      %v1394 = vsel %vm1303, %v1384, 0.0
      %v1395 = vsel %vm1303, %v1385, 0.0
      %v1396 = vadd.f32 %v1394, %v1395
      %v1397 = vsel %vm1303, %v1386, 0.0
      %v1398 = vadd.f32 %v1396, %v1397
      %v1399 = vsel %vm1303, %v1387, 0.0
      %v1400 = vadd.f32 %v1398, %v1399
      %v1401 = vsel %vm1303, %v1388, 0.0
      %v1402 = vadd.f32 %v1400, %v1401
      %v1403 = vsel %vm1303, %v1389, 0.0
      %v1404 = vadd.f32 %v1402, %v1403
      %v1405 = vsel %vm1303, %v1390, 0.0
      %v1406 = vadd.f32 %v1404, %v1405
      %v1407 = vsel %vm1303, %v1391, 0.0
      %v1408 = vadd.f32 %v1406, %v1407
      %v1409 = vsel %vm1303, %v1392, 0.0
      %v1410 = vadd.f32 %v1408, %v1409
      %v1411 = vsel %vm1303, %v1393, 0.0
      %v1412 = vadd.f32 %v1410, %v1411
      %v1413 = vrot.slane %v1412, 4
      %v1414 = vadd.f32 %v1412, %v1413
      %v1415 = vrot.slane %v1414, 2
      %v1416 = vadd.f32 %v1414, %v1415
      %v1417 = vrot.slane %v1416, 1
      %v1418 = vadd.f32 %v1416, %v1417
      %v1419 = vmul.f32 %v1418, 0.015625
      %v1420 = vsub.f32 %v1314, %v1419
      %v1421 = vsub.f32 %v1315, %v1419
      %v1422 = vsub.f32 %v1316, %v1419
      %v1423 = vsub.f32 %v1317, %v1419
      %v1424 = vsub.f32 %v1318, %v1419
      %v1425 = vsub.f32 %v1319, %v1419
      %v1426 = vsub.f32 %v1320, %v1419
      %v1427 = vsub.f32 %v1321, %v1419
      %v1428 = vsub.f32 %v1322, %v1419
      %v1429 = vsub.f32 %v1323, %v1419
      %v1430 = vmul.f32 %v1420, %v1337
      %v1431 = vmul.f32 %v1421, %v1342
      %v1432 = vmul.f32 %v1422, %v1347
      %v1433 = vmul.f32 %v1423, %v1352
      %v1434 = vmul.f32 %v1424, %v1357
      %v1435 = vmul.f32 %v1425, %v1362
      %v1436 = vmul.f32 %v1426, %v1367
      %v1437 = vmul.f32 %v1427, %v1372
      %v1438 = vmul.f32 %v1428, %v1377
      %v1439 = vmul.f32 %v1429, %v1382
      %vm1440 = vcmask 57344
      %1441 = vst.msk [vmem:[%s168] sm:$0x1] %vm1440, %v1418
      %v1442 = vmul.f32 %v1430, %v1430
      %v1443 = vmul.f32 %v1431, %v1431
      %v1444 = vmul.f32 %v1432, %v1432
      %v1445 = vmul.f32 %v1433, %v1433
      %v1446 = vmul.f32 %v1434, %v1434
      %v1447 = vmul.f32 %v1435, %v1435
      %v1448 = vmul.f32 %v1436, %v1436
      %v1449 = vmul.f32 %v1437, %v1437
      %v1450 = vmul.f32 %v1438, %v1438
      %v1451 = vmul.f32 %v1439, %v1439
      %v1452 = vsel %vm1303, %v1442, 0.0
      %v1453 = vsel %vm1303, %v1443, 0.0
      %v1454 = vadd.f32 %v1452, %v1453
      %v1455 = vsel %vm1303, %v1444, 0.0
      %v1456 = vadd.f32 %v1454, %v1455
      %v1457 = vsel %vm1303, %v1445, 0.0
      %v1458 = vadd.f32 %v1456, %v1457
      %v1459 = vsel %vm1303, %v1446, 0.0
      %v1460 = vadd.f32 %v1458, %v1459
      %v1461 = vsel %vm1303, %v1447, 0.0
      %v1462 = vadd.f32 %v1460, %v1461
      %v1463 = vsel %vm1303, %v1448, 0.0
      %v1464 = vadd.f32 %v1462, %v1463
      %v1465 = vsel %vm1303, %v1449, 0.0
      %v1466 = vadd.f32 %v1464, %v1465
      %v1467 = vsel %vm1303, %v1450, 0.0
      %v1468 = vadd.f32 %v1466, %v1467
      %v1469 = vsel %vm1303, %v1451, 0.0
      %v1470 = vadd.f32 %v1468, %v1469
      %v1471 = vrot.slane %v1470, 4
      %v1472 = vadd.f32 %v1470, %v1471
      %v1473 = vrot.slane %v1472, 2
      %v1474 = vadd.f32 %v1472, %v1473
      %v1475 = vrot.slane %v1474, 1
      %v1476 = vadd.f32 %v1474, %v1475
      %1477 = vst.msk [vmem:[%s168 + $0x1] sm:$0x1] %vm1440, %v1476
      %p1478 = scmp.lt.s32.totalorder %s14, 1
      %s1479 = scalar_select %p1478, %s14, 1
      %s1480 = smul.addr %s1479, 2
      %s1481 = scalar_lea.vmem %s3, %s1480
      // Predicated region
      $region33: #{down_forward.4} parent=31 // pred_check
        %p1482 = pneg %p100
      $region34: #{down_forward.4} parent=31 // pred_check_branch
        %1484 = sbr.rel (%p1482) target = $region36
      $region35: #{down_forward.4} parent=31 // pred_region
        _
      $region36: #{down_forward.4} parent=31 // pred_fallthru
        _
    $region32: #{down_forward.4} parent=5 // pred_fallthru
      _
    %p1485 = scmp.le.s32.totalorder 2, %s9
    // Predicated region
    $region37: #{down_forward.4} parent=5 // pred_check
      %p1486 = pneg %p1485
    $region38: #{down_forward.4} parent=5 // pred_check_branch
      %1488 = sbr.rel (%p1486) target = $region40
    $region39: #{down_forward.4} parent=5 // pred_region
      %s1489 = ssub.s32 %s9, 2
      // Predicated region
      $region41: #{down_forward.4} parent=39 // pred_check
        %p1490 = pneg %p106
      $region42: #{down_forward.4} parent=39 // pred_check_branch
        %1492 = sbr.rel (%p1490) target = $region44
      $region43: #{down_forward.4} parent=39 // pred_region
        %p1493 = scmp.lt.s32.totalorder %s15, 1
        %s1494 = scalar_select %p1493, %s15, 1
        %s1495 = smul.addr %s1494, 2
        %s1496 = scalar_lea.vmem %s3, %s1495
      $region44: #{down_forward.4} parent=39 // pred_fallthru
        _
    $region40: #{down_forward.4} parent=5 // pred_fallthru
      _
  $region6: #{down_forward.4} parent=0 // loop_footer
    %s13 = sadd.s32 1, %s9
  $region7: #{down_forward.4} parent=0 // loop_footer_branch
    %8 = sbr.rel target = $region3
  $region8: #{down_forward.4} parent=0 // loop_exit
    _

// kernel: down_forward.5
$region0: #{down_forward.5}
  #allocation0 [shape = 'u32[]', space=smem, size = 0x4, offset = 0x4, fixed_abs, tag = 'smem constant byte address 0x4 - core index']
  #allocation1 [shape = 'u32[144,128]{1,0:T(1,128)}', space=vmem, size = 0x12000, scoped, tag = 'internal scratch']
  #allocation2 [shape = 'f32[80,8]{1,0:T(8,128)}', space=vmem, size = 0xa000, scoped, tag = 'scratch operand']
  #allocation3 [shape = 'bf16[80,36]{1,0:T(8,128)(2,1)}', space=vmem, size = 0x5000, scoped, tag = 'scratch operand']
  %s0 = inlined_call_operand.vmem [shape: bf16[2,102,4], index: 0, kind: input, shape index: {}]
  %s1 = inlined_call_operand.vmem [shape: bf16[36,8], index: 1, kind: input, shape index: {}]
  %s2 = inlined_call_operand.vmem [shape: f32[1,8], index: 2, kind: input, shape index: {}]
  %s3 = inlined_call_operand.vmem [shape: f32[1,8], index: 3, kind: input, shape index: {}]
  %s4 = inlined_call_operand.vmem [shape: bf16[2,80,8], index: 4, kind: output, shape index: {}]
  %s5 = sld [smem:[#allocation0]]
  $region49: #{down_forward.5} parent=0
    _
  %s7 = ssub.s32 1, %s5
  %s8 = scalar_select 0, %s7, %s5
  loop: start=0, step=1, limit=4
  $region2: #{down_forward.5} parent=0 // loop_pre_header
    _
  $region3: #{down_forward.5} parent=0 // loop_header
    %s10 = sphi 0, %s14
    %p11 = scmp.ge.s32.totalorder %s10, 4
    %s20 = sphi 0, %s22
    %s23 = sphi 0, %s20
    %s24 = sphi 0, %s23
    %s40 = sphi 0, %s24
    %s44 = sphi 0, %s44
    %s46 = sphi 0, %s44
    %s47 = sphi 0, %s46
    %s61 = sphi 0, %s47
    %s65 = sphi 0, %s65
    %s67 = sphi 0, %s65
    %s68 = sphi 0, %s67
    %s82 = sphi 0, %s68
    %s86 = sphi 0, %s86
    %s88 = sphi 0, %s86
    %s89 = sphi 0, %s88
    %s103 = sphi 0, %s89
    %s109 = sphi 0, %s111
    %s112 = sphi 0, %s109
    %s113 = sphi 0, %s112
    %s129 = sphi 0, %s113
  $region4: #{down_forward.5} parent=0 // loop_header_branch
    %13 = sbr.rel (%p11) target = $region8
  $region5: #{down_forward.5} parent=0 // loop_body
    %s15 = ssub.s32 %s10, 1
    %s16 = ssub.s32 %s10, 2
    %s17 = sadd.s32 %s10, 1
    %s18 = ssub.s32 %s10, %s17
    %p19 = scmp.eq.s32.totalorder %s18, 0
    %s21 = sadd.s32 %s20, 1
    %s22 = scalar_select %p19, %s20, %s21
    %p25 = pneg %p19
    %p26 = scmp.eq.s32.totalorder %s10, 1
    %p27 = por %p25, %p26
    %p28 = scmp.ne.s32.totalorder %s20, %s23
    %p29 = scmp.eq.s32.totalorder %s10, 0
    %p30 = por %p28, %p29
    %p31 = scmp.ne.s32.totalorder %s20, %s23
    %p32 = scmp.eq.s32.totalorder %s15, 1
    %p33 = por %p31, %p32
    %p34 = scmp.ne.s32.totalorder %s23, %s24
    %p35 = scmp.eq.s32.totalorder %s15, 0
    %p36 = por %p34, %p35
    %p37 = scmp.ne.s32.totalorder %s23, %s24
    %p38 = scmp.eq.s32.totalorder %s16, 1
    %p39 = por %p37, %p38
    %p41 = scmp.ne.s32.totalorder %s24, %s40
    %p42 = scmp.eq.s32.totalorder %s16, 0
    %p43 = por %p41, %p42
    %s45 = sadd.s32 %s44, 1
    %p48 = scmp.eq.s32.totalorder %s10, 1
    %p49 = scmp.ne.s32.totalorder %s44, %s46
    %p50 = scmp.eq.s32.totalorder %s10, 0
    %p51 = por %p49, %p50
    %p52 = scmp.ne.s32.totalorder %s44, %s46
    %p53 = scmp.eq.s32.totalorder %s15, 1
    %p54 = por %p52, %p53
    %p55 = scmp.ne.s32.totalorder %s46, %s47
    %p56 = scmp.eq.s32.totalorder %s15, 0
    %p57 = por %p55, %p56
    %p58 = scmp.ne.s32.totalorder %s46, %s47
    %p59 = scmp.eq.s32.totalorder %s16, 1
    %p60 = por %p58, %p59
    %p62 = scmp.ne.s32.totalorder %s47, %s61
    %p63 = scmp.eq.s32.totalorder %s16, 0
    %p64 = por %p62, %p63
    %s66 = sadd.s32 %s65, 1
    %p69 = scmp.eq.s32.totalorder %s10, 1
    %p70 = scmp.ne.s32.totalorder %s65, %s67
    %p71 = scmp.eq.s32.totalorder %s10, 0
    %p72 = por %p70, %p71
    %p73 = scmp.ne.s32.totalorder %s65, %s67
    %p74 = scmp.eq.s32.totalorder %s15, 1
    %p75 = por %p73, %p74
    %p76 = scmp.ne.s32.totalorder %s67, %s68
    %p77 = scmp.eq.s32.totalorder %s15, 0
    %p78 = por %p76, %p77
    %p79 = scmp.ne.s32.totalorder %s67, %s68
    %p80 = scmp.eq.s32.totalorder %s16, 1
    %p81 = por %p79, %p80
    %p83 = scmp.ne.s32.totalorder %s68, %s82
    %p84 = scmp.eq.s32.totalorder %s16, 0
    %p85 = por %p83, %p84
    %s87 = sadd.s32 %s86, 1
    %p90 = scmp.eq.s32.totalorder %s10, 1
    %p91 = scmp.ne.s32.totalorder %s86, %s88
    %p92 = scmp.eq.s32.totalorder %s10, 0
    %p93 = por %p91, %p92
    %p94 = scmp.ne.s32.totalorder %s86, %s88
    %p95 = scmp.eq.s32.totalorder %s15, 1
    %p96 = por %p94, %p95
    %p97 = scmp.ne.s32.totalorder %s88, %s89
    %p98 = scmp.eq.s32.totalorder %s15, 0
    %p99 = por %p97, %p98
    %p100 = scmp.ne.s32.totalorder %s88, %s89
    %p101 = scmp.eq.s32.totalorder %s16, 1
    %p102 = por %p100, %p101
    %p104 = scmp.ne.s32.totalorder %s89, %s103
    %p105 = scmp.eq.s32.totalorder %s16, 0
    %p106 = por %p104, %p105
    %s107 = ssub.s32 %s10, %s17
    %p108 = scmp.eq.s32.totalorder %s107, 0
    %s110 = sadd.s32 %s109, 1
    %s111 = scalar_select %p108, %s109, %s110
    %p114 = pneg %p108
    %p115 = scmp.eq.s32.totalorder %s10, 1
    %p116 = por %p114, %p115
    %p117 = scmp.ne.s32.totalorder %s109, %s112
    %p118 = scmp.eq.s32.totalorder %s10, 0
    %p119 = por %p117, %p118
    %p120 = scmp.ne.s32.totalorder %s109, %s112
    %p121 = scmp.eq.s32.totalorder %s15, 1
    %p122 = por %p120, %p121
    %p123 = scmp.ne.s32.totalorder %s112, %s113
    %p124 = scmp.eq.s32.totalorder %s15, 0
    %p125 = por %p123, %p124
    %p126 = scmp.ne.s32.totalorder %s112, %s113
    %p127 = scmp.eq.s32.totalorder %s16, 1
    %p128 = por %p126, %p127
    %p130 = scmp.ne.s32.totalorder %s113, %s129
    %p131 = scmp.eq.s32.totalorder %s16, 0
    %p132 = por %p130, %p131
    %p133 = scmp.le.s32.totalorder 1, %s10
    %p134 = scmp.lt.s32.totalorder %s10, 3
    %p135 = pnand %p133, %p134
    %p136 = pneg %p135
    // Predicated region
    $region9: #{down_forward.5} parent=5 // pred_check
      _
    $region10: #{down_forward.5} parent=5 // pred_check_branch
      %138 = sbr.rel (%p135) target = $region12
    $region11: #{down_forward.5} parent=5 // pred_region
      %s139 = ssub.s32 %s10, 1
      // Predicated region
      $region13: #{down_forward.5} parent=11 // pred_check
        %p140 = pneg %p57
      $region14: #{down_forward.5} parent=11 // pred_check_branch
        %142 = sbr.rel (%p140) target = $region16
      $region15: #{down_forward.5} parent=11 // pred_region
        _
      $region16: #{down_forward.5} parent=11 // pred_fallthru
        _
      // Predicated region
      $region17: #{down_forward.5} parent=11 // pred_check
        %p143 = pneg %p78
      $region18: #{down_forward.5} parent=11 // pred_check_branch
        %145 = sbr.rel (%p143) target = $region20
      $region19: #{down_forward.5} parent=11 // pred_region
        _
      $region20: #{down_forward.5} parent=11 // pred_fallthru
        _
      // Predicated region
      $region21: #{down_forward.5} parent=11 // pred_check
        %p146 = pneg %p99
      $region22: #{down_forward.5} parent=11 // pred_check_branch
        %148 = sbr.rel (%p146) target = $region24
      $region23: #{down_forward.5} parent=11 // pred_region
        _
      $region24: #{down_forward.5} parent=11 // pred_fallthru
        _
    $region12: #{down_forward.5} parent=5 // pred_fallthru
      _
    %p149 = scmp.lt.s32.totalorder %s10, 2
    // Predicated region
    $region25: #{down_forward.5} parent=5 // pred_check
      %p150 = pneg %p149
    $region26: #{down_forward.5} parent=5 // pred_check_branch
      %152 = sbr.rel (%p150) target = $region28
    $region27: #{down_forward.5} parent=5 // pred_region
      // Predicated region
      $region29: #{down_forward.5} parent=27 // pred_check
        %p153 = pneg %p30
      $region30: #{down_forward.5} parent=27 // pred_check_branch
        %155 = sbr.rel (%p153) target = $region32
      $region31: #{down_forward.5} parent=27 // pred_region
        %p156 = scmp.lt.s32.totalorder %s10, 1
        %s157 = scalar_select %p156, %s10, 1
        %s158 = smul.addr %s157, 13
        %s159 = smul.addr %s158, 4
        %s160 = scalar_lea.vmem %s0, %s159
      $region32: #{down_forward.5} parent=27 // pred_fallthru
        _
    $region28: #{down_forward.5} parent=5 // pred_fallthru
      _
    %p161 = scmp.le.s32.totalorder 1, %s10
    %p162 = scmp.lt.s32.totalorder %s10, 3
    %p163 = pnand %p161, %p162
    %p164 = pneg %p163
    // Predicated region
    $region33: #{down_forward.5} parent=5 // pred_check
      _
    $region34: #{down_forward.5} parent=5 // pred_check_branch
      %166 = sbr.rel (%p163) target = $region36
    $region35: #{down_forward.5} parent=5 // pred_region
      %s167 = ssub.s32 %s10, 1
      %p168 = scmp.lt.s32.totalorder %s15, 1
      %s169 = scalar_select %p168, %s15, 1
      %s170 = smul.addr %s169, 13
      %s171 = smul.addr %s170, 4
      %s172 = scalar_lea.vmem %s0, %s171
      %p173 = pneg %p36
      %p174 = pneg %p33
      %p175 = pneg %p57
      %p176 = pneg %p54
      %p177 = pneg %p78
      %p178 = pneg %p75
      %p179 = pneg %p99
      %p180 = pneg %p96
      %p181 = pneg %p125
      %p182 = pneg %p122
      %p183 = scmp.lt.s32.totalorder %s15, 1
      %s184 = scalar_select %p183, %s15, 1
      %s185 = smul.addr %s184, 10
      %s186 = smul.addr %s185, 4
      %s187 = scalar_lea.vmem %s4, %s186
      %p188 = scmp.lt.s32.totalorder %s15, 1
      %s189 = scalar_select %p188, %s15, 1
      %s190 = smul.addr %s189, 13
      %s191 = smul.addr %s190, 4
      %s192 = scalar_lea.vmem %s0, %s191
      %p193 = scmp.lt.s32.totalorder %s15, 1
      %s194 = scalar_select %p193, %s15, 1
      %s195 = smul.addr %s194, 10
      %s196 = smul.addr %s195, 4
      %s197 = scalar_lea.vmem %s4, %s196
      %v199 = vld [vmem:[%s192] sm:$0xf]
      %v200 = vld [vmem:[%s192 + $0x4] sm:$0xf]
      %v201 = vld [vmem:[%s192 + $0x8] sm:$0xf]
      %v202 = vld [vmem:[%s192 + $0xc] sm:$0xf]
      %v203 = vld [vmem:[%s192 + $0x10] sm:$0xf]
      %v204 = vld [vmem:[%s192 + $0x14] sm:$0xf]
      %v205 = vld [vmem:[%s192 + $0x18] sm:$0xf]
      %v206 = vld [vmem:[%s192 + $0x1c] sm:$0xf]
      %v207 = vld [vmem:[%s192 + $0x20] sm:$0xf]
      %v208 = vld [vmem:[%s192 + $0x24] sm:$0xf]
      %vm209 = vcmask 27648
      %210 = vst.msk [vmem:[#allocation3] sm:$0xf] %vm209, %v199
      %211 = vst.msk [vmem:[#allocation3 + $0x4] sm:$0xf] %vm209, %v200
      %212 = vst.msk [vmem:[#allocation3 + $0x8] sm:$0xf] %vm209, %v201
      %213 = vst.msk [vmem:[#allocation3 + $0xc] sm:$0xf] %vm209, %v202
      %214 = vst.msk [vmem:[#allocation3 + $0x10] sm:$0xf] %vm209, %v203
      %215 = vst.msk [vmem:[#allocation3 + $0x14] sm:$0xf] %vm209, %v204
      %216 = vst.msk [vmem:[#allocation3 + $0x18] sm:$0xf] %vm209, %v205
      %217 = vst.msk [vmem:[#allocation3 + $0x1c] sm:$0xf] %vm209, %v206
      %218 = vst.msk [vmem:[#allocation3 + $0x20] sm:$0xf] %vm209, %v207
      %219 = vst.msk [vmem:[#allocation3 + $0x24] sm:$0xf] %vm209, %v208
      %v220 = vld [vmem:[%s192] sm:$0xf]
      %v221 = vld [vmem:[%s192 + $0x4] sm:$0xf]
      %v222 = vld [vmem:[%s192 + $0x8] sm:$0xf]
      %v223 = vld [vmem:[%s192 + $0xc] sm:$0xf]
      %v224 = vld [vmem:[%s192 + $0x10] sm:$0xf]
      %v225 = vld [vmem:[%s192 + $0x14] sm:$0xf]
      %v226 = vld [vmem:[%s192 + $0x18] sm:$0xf]
      %v227 = vld [vmem:[%s192 + $0x1c] sm:$0xf]
      %v228 = vld [vmem:[%s192 + $0x20] sm:$0xf]
      %v229 = vld [vmem:[%s192 + $0x24] sm:$0xf]
      %v230 = vld [vmem:[%s192 + $0x28] sm:$0x1]
      %vm231 = vsmask.f32 3328
      %vm232 = vsmask.f32 7440
      %vm233 = vmor %vm231, %vm232
      %v235 = vshrl.u32 %v220, 16
      %v237 = vrot.slane %v235, 4
      %v238 = vshll.u32 %v220, 16
      %v240 = vrot.slane %v238, 5
      %v241 = vor.u32 %v237, %v240
      %v242 = vrot.slane %v241, 4
      %v244 = vshll.u32 %v221, 16
      %v246 = vrot.slane %v244, 5
      %v247 = vsel %vm233, %v242, %v246
      %v248 = vshrl.u32 %v221, 16
      %v250 = vrot.slane %v248, 4
      %v251 = vor.u32 %v250, %v246
      %v252 = vrot.slane %v251, 4
      %v254 = vshll.u32 %v222, 16
      %v256 = vrot.slane %v254, 5
      %v257 = vsel %vm233, %v252, %v256
      %v258 = vshrl.u32 %v222, 16
      %v260 = vrot.slane %v258, 4
      %v261 = vor.u32 %v260, %v256
      %v262 = vrot.slane %v261, 4
      %v264 = vshll.u32 %v223, 16
      %v266 = vrot.slane %v264, 5
      %v267 = vsel %vm233, %v262, %v266
      %v268 = vshrl.u32 %v223, 16
      %v270 = vrot.slane %v268, 4
      %v271 = vor.u32 %v270, %v266
      %v272 = vrot.slane %v271, 4
      %v274 = vshll.u32 %v224, 16
      %v276 = vrot.slane %v274, 5
      %v277 = vsel %vm233, %v272, %v276
      %v278 = vshrl.u32 %v224, 16
      %v280 = vrot.slane %v278, 4
      %v281 = vor.u32 %v280, %v276
      %v282 = vrot.slane %v281, 4
      %v284 = vshll.u32 %v225, 16
      %v286 = vrot.slane %v284, 5
      %v287 = vsel %vm233, %v282, %v286
      %v288 = vshrl.u32 %v225, 16
      %v290 = vrot.slane %v288, 4
      %v291 = vor.u32 %v290, %v286
      %v292 = vrot.slane %v291, 4
      %v294 = vshll.u32 %v226, 16
      %v296 = vrot.slane %v294, 5
      %v297 = vsel %vm233, %v292, %v296
      %v298 = vshrl.u32 %v226, 16
      %v300 = vrot.slane %v298, 4
      %v301 = vor.u32 %v300, %v296
      %v302 = vrot.slane %v301, 4
      %v304 = vshll.u32 %v227, 16
      %v306 = vrot.slane %v304, 5
      %v307 = vsel %vm233, %v302, %v306
      %v308 = vshrl.u32 %v227, 16
      %v310 = vrot.slane %v308, 4
      %v311 = vor.u32 %v310, %v306
      %v312 = vrot.slane %v311, 4
      %v314 = vshll.u32 %v228, 16
      %v316 = vrot.slane %v314, 5
      %v317 = vsel %vm233, %v312, %v316
      %v318 = vshrl.u32 %v228, 16
      %v320 = vrot.slane %v318, 4
      %v321 = vor.u32 %v320, %v316
      %v322 = vrot.slane %v321, 4
      %v324 = vshll.u32 %v229, 16
      %v326 = vrot.slane %v324, 5
      %v327 = vsel %vm233, %v322, %v326
      %v328 = vshrl.u32 %v229, 16
      %v330 = vrot.slane %v328, 4
      %v331 = vor.u32 %v330, %v326
      %v332 = vrot.slane %v331, 4
      %v334 = vshll.u32 %v230, 16
      %v336 = vrot.slane %v334, 5
      %v337 = vsel %vm233, %v332, %v336
      %338 = vrot.lane.b32.xlu0 %v247, 4
      %v339 = vpop.permute.xlu0 %338
      %340 = vrot.lane.b32.xlu0 %v257, 4
      %v341 = vpop.permute.xlu0 %340
      %342 = vrot.lane.b32.xlu0 %v267, 4
      %v343 = vpop.permute.xlu0 %342
      %344 = vrot.lane.b32.xlu0 %v277, 4
      %v345 = vpop.permute.xlu0 %344
      %346 = vrot.lane.b32.xlu0 %v287, 4
      %v347 = vpop.permute.xlu0 %346
      %348 = vrot.lane.b32.xlu0 %v297, 4
      %v349 = vpop.permute.xlu0 %348
      %350 = vrot.lane.b32.xlu0 %v307, 4
      %v351 = vpop.permute.xlu0 %350
      %352 = vrot.lane.b32.xlu0 %v317, 4
      %v353 = vpop.permute.xlu0 %352
      %354 = vrot.lane.b32.xlu0 %v327, 4
      %v355 = vpop.permute.xlu0 %354
      %356 = vrot.lane.b32.xlu0 %v337, 4
      %v357 = vpop.permute.xlu0 %356
      %vm368 = vcmask 60448
      %369 = vst.msk [vmem:[#allocation3] sm:$0xf] %vm368, %v339
      %370 = vst.msk [vmem:[#allocation3 + $0x4] sm:$0xf] %vm368, %v341
      %371 = vst.msk [vmem:[#allocation3 + $0x8] sm:$0xf] %vm368, %v343
      %372 = vst.msk [vmem:[#allocation3 + $0xc] sm:$0xf] %vm368, %v345
      %373 = vst.msk [vmem:[#allocation3 + $0x10] sm:$0xf] %vm368, %v347
      %374 = vst.msk [vmem:[#allocation3 + $0x14] sm:$0xf] %vm368, %v349
      %375 = vst.msk [vmem:[#allocation3 + $0x18] sm:$0xf] %vm368, %v351
      %376 = vst.msk [vmem:[#allocation3 + $0x1c] sm:$0xf] %vm368, %v353
      %377 = vst.msk [vmem:[#allocation3 + $0x20] sm:$0xf] %vm368, %v355
      %378 = vst.msk [vmem:[#allocation3 + $0x24] sm:$0xf] %vm368, %v357
      %v379 = vld [vmem:[%s192] sm:$0xe]
      %v380 = vld [vmem:[%s192 + $0x4] sm:$0xf]
      %v381 = vld [vmem:[%s192 + $0x8] sm:$0xf]
      %v382 = vld [vmem:[%s192 + $0xc] sm:$0xf]
      %v383 = vld [vmem:[%s192 + $0x10] sm:$0xf]
      %v384 = vld [vmem:[%s192 + $0x14] sm:$0xf]
      %v385 = vld [vmem:[%s192 + $0x18] sm:$0xf]
      %v386 = vld [vmem:[%s192 + $0x1c] sm:$0xf]
      %v387 = vld [vmem:[%s192 + $0x20] sm:$0xf]
      %v388 = vld [vmem:[%s192 + $0x24] sm:$0xf]
      %v389 = vld [vmem:[%s192 + $0x28] sm:$0x1]
      %vm401 = vcmask 1042432
      %vm402 = vcmask 1046532
      %vm403 = vmor %vm401, %vm402
      %v404 = vrot.slane %v379, 5
      %v405 = vrot.slane %v404, 4
      %v406 = vrot.slane %v380, 5
      %v407 = vsel %vm403, %v405, %v406
      %v408 = vrot.slane %v406, 4
      %v409 = vrot.slane %v381, 5
      %v410 = vsel %vm403, %v408, %v409
      %v411 = vrot.slane %v409, 4
      %v412 = vrot.slane %v382, 5
      %v413 = vsel %vm403, %v411, %v412
      %v414 = vrot.slane %v412, 4
      %v415 = vrot.slane %v383, 5
      %v416 = vsel %vm403, %v414, %v415
      %v417 = vrot.slane %v415, 4
      %v418 = vrot.slane %v384, 5
      %v419 = vsel %vm403, %v417, %v418
      %v420 = vrot.slane %v418, 4
      %v421 = vrot.slane %v385, 5
      %v422 = vsel %vm403, %v420, %v421
      %v423 = vrot.slane %v421, 4
      %v424 = vrot.slane %v386, 5
      %v425 = vsel %vm403, %v423, %v424
      %v426 = vrot.slane %v424, 4
      %v427 = vrot.slane %v387, 5
      %v428 = vsel %vm403, %v426, %v427
      %v429 = vrot.slane %v427, 4
      %v430 = vrot.slane %v388, 5
      %v431 = vsel %vm403, %v429, %v430
      %v432 = vrot.slane %v430, 4
      %v433 = vrot.slane %v389, 5
      %v434 = vsel %vm403, %v432, %v433
      %435 = vrot.lane.b32.xlu0 %v407, 8
      %v436 = vpop.permute.xlu0 %435
      %437 = vrot.lane.b32.xlu0 %v410, 8
      %v438 = vpop.permute.xlu0 %437
      %439 = vrot.lane.b32.xlu0 %v413, 8
      %v440 = vpop.permute.xlu0 %439
      %441 = vrot.lane.b32.xlu0 %v416, 8
      %v442 = vpop.permute.xlu0 %441
      %443 = vrot.lane.b32.xlu0 %v419, 8
      %v444 = vpop.permute.xlu0 %443
      %445 = vrot.lane.b32.xlu0 %v422, 8
      %v446 = vpop.permute.xlu0 %445
      %447 = vrot.lane.b32.xlu0 %v425, 8
      %v448 = vpop.permute.xlu0 %447
      %449 = vrot.lane.b32.xlu0 %v428, 8
      %v450 = vpop.permute.xlu0 %449
      %451 = vrot.lane.b32.xlu0 %v431, 8
      %v452 = vpop.permute.xlu0 %451
      %453 = vrot.lane.b32.xlu0 %v434, 8
      %v454 = vpop.permute.xlu0 %453
      %vm465 = vcmask 93248
      %466 = vst.msk [vmem:[#allocation3] sm:$0xf] %vm465, %v436
      %467 = vst.msk [vmem:[#allocation3 + $0x4] sm:$0xf] %vm465, %v438
      %468 = vst.msk [vmem:[#allocation3 + $0x8] sm:$0xf] %vm465, %v440
      %469 = vst.msk [vmem:[#allocation3 + $0xc] sm:$0xf] %vm465, %v442
      %470 = vst.msk [vmem:[#allocation3 + $0x10] sm:$0xf] %vm465, %v444
      %471 = vst.msk [vmem:[#allocation3 + $0x14] sm:$0xf] %vm465, %v446
      %472 = vst.msk [vmem:[#allocation3 + $0x18] sm:$0xf] %vm465, %v448
      %473 = vst.msk [vmem:[#allocation3 + $0x1c] sm:$0xf] %vm465, %v450
      %474 = vst.msk [vmem:[#allocation3 + $0x20] sm:$0xf] %vm465, %v452
      %475 = vst.msk [vmem:[#allocation3 + $0x24] sm:$0xf] %vm465, %v454
      %v476 = vld [vmem:[%s192 + $0x4] sm:$0xe]
      %v477 = vld [vmem:[%s192 + $0x8] sm:$0xf]
      %v478 = vld [vmem:[%s192 + $0xc] sm:$0xf]
      %v479 = vld [vmem:[%s192 + $0x10] sm:$0xf]
      %v480 = vld [vmem:[%s192 + $0x14] sm:$0xf]
      %v481 = vld [vmem:[%s192 + $0x18] sm:$0xf]
      %v482 = vld [vmem:[%s192 + $0x1c] sm:$0xf]
      %v483 = vld [vmem:[%s192 + $0x20] sm:$0xf]
      %v484 = vld [vmem:[%s192 + $0x24] sm:$0xf]
      %v485 = vld [vmem:[%s192 + $0x28] sm:$0xf]
      %v486 = vld [vmem:[%s192 + $0x2c] sm:$0x1]
      %v498 = vrot.slane %v476, 5
      %v499 = vrot.slane %v498, 4
      %v500 = vrot.slane %v477, 5
      %v501 = vsel %vm403, %v499, %v500
      %v502 = vrot.slane %v500, 4
      %v503 = vrot.slane %v478, 5
      %v504 = vsel %vm403, %v502, %v503
      %v505 = vrot.slane %v503, 4
      %v506 = vrot.slane %v479, 5
      %v507 = vsel %vm403, %v505, %v506
      %v508 = vrot.slane %v506, 4
      %v509 = vrot.slane %v480, 5
      %v510 = vsel %vm403, %v508, %v509
      %v511 = vrot.slane %v509, 4
      %v512 = vrot.slane %v481, 5
      %v513 = vsel %vm403, %v511, %v512
      %v514 = vrot.slane %v512, 4
      %v515 = vrot.slane %v482, 5
      %v516 = vsel %vm403, %v514, %v515
      %v517 = vrot.slane %v515, 4
      %v518 = vrot.slane %v483, 5
      %v519 = vsel %vm403, %v517, %v518
      %v520 = vrot.slane %v518, 4
      %v521 = vrot.slane %v484, 5
      %v522 = vsel %vm403, %v520, %v521
      %v523 = vrot.slane %v521, 4
      %v524 = vrot.slane %v485, 5
      %v525 = vsel %vm403, %v523, %v524
      %v526 = vrot.slane %v524, 4
      %v527 = vrot.slane %v486, 5
      %v528 = vsel %vm403, %v526, %v527
      %529 = vrot.lane.b32.xlu0 %v501, 12
      %v530 = vpop.permute.xlu0 %529
      %531 = vrot.lane.b32.xlu0 %v504, 12
      %v532 = vpop.permute.xlu0 %531
      %533 = vrot.lane.b32.xlu0 %v507, 12
      %v534 = vpop.permute.xlu0 %533
      %535 = vrot.lane.b32.xlu0 %v510, 12
      %v536 = vpop.permute.xlu0 %535
      %537 = vrot.lane.b32.xlu0 %v513, 12
      %v538 = vpop.permute.xlu0 %537
      %539 = vrot.lane.b32.xlu0 %v516, 12
      %v540 = vpop.permute.xlu0 %539
      %541 = vrot.lane.b32.xlu0 %v519, 12
      %v542 = vpop.permute.xlu0 %541
      %543 = vrot.lane.b32.xlu0 %v522, 12
      %v544 = vpop.permute.xlu0 %543
      %545 = vrot.lane.b32.xlu0 %v525, 12
      %v546 = vpop.permute.xlu0 %545
      %547 = vrot.lane.b32.xlu0 %v528, 12
      %v548 = vpop.permute.xlu0 %547
      %vm559 = vcmask 126048
      %560 = vst.msk [vmem:[#allocation3] sm:$0xf] %vm559, %v530
      %561 = vst.msk [vmem:[#allocation3 + $0x4] sm:$0xf] %vm559, %v532
      %562 = vst.msk [vmem:[#allocation3 + $0x8] sm:$0xf] %vm559, %v534
      %563 = vst.msk [vmem:[#allocation3 + $0xc] sm:$0xf] %vm559, %v536
      %564 = vst.msk [vmem:[#allocation3 + $0x10] sm:$0xf] %vm559, %v538
      %565 = vst.msk [vmem:[#allocation3 + $0x14] sm:$0xf] %vm559, %v540
      %566 = vst.msk [vmem:[#allocation3 + $0x18] sm:$0xf] %vm559, %v542
      %567 = vst.msk [vmem:[#allocation3 + $0x1c] sm:$0xf] %vm559, %v544
      %568 = vst.msk [vmem:[#allocation3 + $0x20] sm:$0xf] %vm559, %v546
      %569 = vst.msk [vmem:[#allocation3 + $0x24] sm:$0xf] %vm559, %v548
      %v570 = vld [vmem:[%s192 + $0x4] sm:$0xe]
      %v571 = vld [vmem:[%s192 + $0x8] sm:$0xf]
      %v572 = vld [vmem:[%s192 + $0xc] sm:$0xf]
      %v573 = vld [vmem:[%s192 + $0x10] sm:$0xf]
      %v574 = vld [vmem:[%s192 + $0x14] sm:$0xf]
      %v575 = vld [vmem:[%s192 + $0x18] sm:$0xf]
      %v576 = vld [vmem:[%s192 + $0x1c] sm:$0xf]
      %v577 = vld [vmem:[%s192 + $0x20] sm:$0xf]
      %v578 = vld [vmem:[%s192 + $0x24] sm:$0xf]
      %v579 = vld [vmem:[%s192 + $0x28] sm:$0xf]
      %v580 = vld [vmem:[%s192 + $0x2c] sm:$0x3]
      %vm581 = vsmask.f32 2304
      %vm582 = vsmask.f32 6416
      %vm583 = vmor %vm581, %vm582
      %v585 = vshrl.u32 %v570, 16
      %v587 = vrot.slane %v585, 5
      %v588 = vshll.u32 %v570, 16
      %v590 = vrot.slane %v588, 6
      %v591 = vor.u32 %v587, %v590
      %v592 = vrot.slane %v591, 4
      %v594 = vshrl.u32 %v571, 16
      %v596 = vrot.slane %v594, 5
      %v597 = vshll.u32 %v571, 16
      %v599 = vrot.slane %v597, 6
      %v600 = vor.u32 %v596, %v599
      %v601 = vsel %vm583, %v592, %v600
      %v602 = vrot.slane %v600, 4
      %v604 = vshrl.u32 %v572, 16
      %v606 = vrot.slane %v604, 5
      %v607 = vshll.u32 %v572, 16
      %v609 = vrot.slane %v607, 6
      %v610 = vor.u32 %v606, %v609
      %v611 = vsel %vm583, %v602, %v610
      %v612 = vrot.slane %v610, 4
      %v614 = vshrl.u32 %v573, 16
      %v616 = vrot.slane %v614, 5
      %v617 = vshll.u32 %v573, 16
      %v619 = vrot.slane %v617, 6
      %v620 = vor.u32 %v616, %v619
      %v621 = vsel %vm583, %v612, %v620
      %v622 = vrot.slane %v620, 4
      %v624 = vshrl.u32 %v574, 16
      %v626 = vrot.slane %v624, 5
      %v627 = vshll.u32 %v574, 16
      %v629 = vrot.slane %v627, 6
      %v630 = vor.u32 %v626, %v629
      %v631 = vsel %vm583, %v622, %v630
      %v632 = vrot.slane %v630, 4
      %v634 = vshrl.u32 %v575, 16
      %v636 = vrot.slane %v634, 5
      %v637 = vshll.u32 %v575, 16
      %v639 = vrot.slane %v637, 6
      %v640 = vor.u32 %v636, %v639
      %v641 = vsel %vm583, %v632, %v640
      %v642 = vrot.slane %v640, 4
      %v644 = vshrl.u32 %v576, 16
      %v646 = vrot.slane %v644, 5
      %v647 = vshll.u32 %v576, 16
      %v649 = vrot.slane %v647, 6
      %v650 = vor.u32 %v646, %v649
      %v651 = vsel %vm583, %v642, %v650
      %v652 = vrot.slane %v650, 4
      %v654 = vshrl.u32 %v577, 16
      %v656 = vrot.slane %v654, 5
      %v657 = vshll.u32 %v577, 16
      %v659 = vrot.slane %v657, 6
      %v660 = vor.u32 %v656, %v659
      %v661 = vsel %vm583, %v652, %v660
      %v662 = vrot.slane %v660, 4
      %v664 = vshrl.u32 %v578, 16
      %v666 = vrot.slane %v664, 5
      %v667 = vshll.u32 %v578, 16
      %v669 = vrot.slane %v667, 6
      %v670 = vor.u32 %v666, %v669
      %v671 = vsel %vm583, %v662, %v670
      %v672 = vrot.slane %v670, 4
      %v674 = vshrl.u32 %v579, 16
      %v676 = vrot.slane %v674, 5
      %v677 = vshll.u32 %v579, 16
      %v679 = vrot.slane %v677, 6
      %v680 = vor.u32 %v676, %v679
      %v681 = vsel %vm583, %v672, %v680
      %v682 = vrot.slane %v680, 4
      %v684 = vshrl.u32 %v580, 16
      %v686 = vrot.slane %v684, 5
      %v687 = vshll.u32 %v580, 16
      %v689 = vrot.slane %v687, 6
      %v690 = vor.u32 %v686, %v689
      %v691 = vsel %vm583, %v682, %v690
      %692 = vrot.lane.b32.xlu0 %v601, 16
      %v693 = vpop.permute.xlu0 %692
      %694 = vrot.lane.b32.xlu0 %v611, 16
      %v695 = vpop.permute.xlu0 %694
      %696 = vrot.lane.b32.xlu0 %v621, 16
      %v697 = vpop.permute.xlu0 %696
      %698 = vrot.lane.b32.xlu0 %v631, 16
      %v699 = vpop.permute.xlu0 %698
      %700 = vrot.lane.b32.xlu0 %v641, 16
      %v701 = vpop.permute.xlu0 %700
      %702 = vrot.lane.b32.xlu0 %v651, 16
      %v703 = vpop.permute.xlu0 %702
      %704 = vrot.lane.b32.xlu0 %v661, 16
      %v705 = vpop.permute.xlu0 %704
      %706 = vrot.lane.b32.xlu0 %v671, 16
      %v707 = vpop.permute.xlu0 %706
      %708 = vrot.lane.b32.xlu0 %v681, 16
      %v709 = vpop.permute.xlu0 %708
      %710 = vrot.lane.b32.xlu0 %v691, 16
      %v711 = vpop.permute.xlu0 %710
      %vm722 = vcmask 158848
      %723 = vst.msk [vmem:[#allocation3] sm:$0xf] %vm722, %v693
      %724 = vst.msk [vmem:[#allocation3 + $0x4] sm:$0xf] %vm722, %v695
      %725 = vst.msk [vmem:[#allocation3 + $0x8] sm:$0xf] %vm722, %v697
      %726 = vst.msk [vmem:[#allocation3 + $0xc] sm:$0xf] %vm722, %v699
      %727 = vst.msk [vmem:[#allocation3 + $0x10] sm:$0xf] %vm722, %v701
      %728 = vst.msk [vmem:[#allocation3 + $0x14] sm:$0xf] %vm722, %v703
      %729 = vst.msk [vmem:[#allocation3 + $0x18] sm:$0xf] %vm722, %v705
      %730 = vst.msk [vmem:[#allocation3 + $0x1c] sm:$0xf] %vm722, %v707
      %731 = vst.msk [vmem:[#allocation3 + $0x20] sm:$0xf] %vm722, %v709
      %732 = vst.msk [vmem:[#allocation3 + $0x24] sm:$0xf] %vm722, %v711
      %v733 = vld [vmem:[%s192 + $0x4] sm:$0xc]
      %v734 = vld [vmem:[%s192 + $0x8] sm:$0xf]
      %v735 = vld [vmem:[%s192 + $0xc] sm:$0xf]
      %v736 = vld [vmem:[%s192 + $0x10] sm:$0xf]
      %v737 = vld [vmem:[%s192 + $0x14] sm:$0xf]
      %v738 = vld [vmem:[%s192 + $0x18] sm:$0xf]
      %v739 = vld [vmem:[%s192 + $0x1c] sm:$0xf]
      %v740 = vld [vmem:[%s192 + $0x20] sm:$0xf]
      %v741 = vld [vmem:[%s192 + $0x24] sm:$0xf]
      %v742 = vld [vmem:[%s192 + $0x28] sm:$0xf]
      %v743 = vld [vmem:[%s192 + $0x2c] sm:$0x3]
      %vm755 = vcmask 1041408
      %vm756 = vcmask 1045508
      %vm757 = vmor %vm755, %vm756
      %v758 = vrot.slane %v733, 6
      %v759 = vrot.slane %v758, 4
      %v760 = vrot.slane %v734, 6
      %v761 = vsel %vm757, %v759, %v760
      %v762 = vrot.slane %v760, 4
      %v763 = vrot.slane %v735, 6
      %v764 = vsel %vm757, %v762, %v763
      %v765 = vrot.slane %v763, 4
      %v766 = vrot.slane %v736, 6
      %v767 = vsel %vm757, %v765, %v766
      %v768 = vrot.slane %v766, 4
      %v769 = vrot.slane %v737, 6
      %v770 = vsel %vm757, %v768, %v769
      %v771 = vrot.slane %v769, 4
      %v772 = vrot.slane %v738, 6
      %v773 = vsel %vm757, %v771, %v772
      %v774 = vrot.slane %v772, 4
      %v775 = vrot.slane %v739, 6
      %v776 = vsel %vm757, %v774, %v775
      %v777 = vrot.slane %v775, 4
      %v778 = vrot.slane %v740, 6
      %v779 = vsel %vm757, %v777, %v778
      %v780 = vrot.slane %v778, 4
      %v781 = vrot.slane %v741, 6
      %v782 = vsel %vm757, %v780, %v781
      %v783 = vrot.slane %v781, 4
      %v784 = vrot.slane %v742, 6
      %v785 = vsel %vm757, %v783, %v784
      %v786 = vrot.slane %v784, 4
      %v787 = vrot.slane %v743, 6
      %v788 = vsel %vm757, %v786, %v787
      %789 = vrot.lane.b32.xlu0 %v761, 20
      %v790 = vpop.permute.xlu0 %789
      %791 = vrot.lane.b32.xlu0 %v764, 20
      %v792 = vpop.permute.xlu0 %791
      %793 = vrot.lane.b32.xlu0 %v767, 20
      %v794 = vpop.permute.xlu0 %793
      %795 = vrot.lane.b32.xlu0 %v770, 20
      %v796 = vpop.permute.xlu0 %795
      %797 = vrot.lane.b32.xlu0 %v773, 20
      %v798 = vpop.permute.xlu0 %797
      %799 = vrot.lane.b32.xlu0 %v776, 20
      %v800 = vpop.permute.xlu0 %799
      %801 = vrot.lane.b32.xlu0 %v779, 20
      %v802 = vpop.permute.xlu0 %801
      %803 = vrot.lane.b32.xlu0 %v782, 20
      %v804 = vpop.permute.xlu0 %803
      %805 = vrot.lane.b32.xlu0 %v785, 20
      %v806 = vpop.permute.xlu0 %805
      %807 = vrot.lane.b32.xlu0 %v788, 20
      %v808 = vpop.permute.xlu0 %807
      %vm819 = vcmask 191648
      %820 = vst.msk [vmem:[#allocation3] sm:$0xf] %vm819, %v790
      %821 = vst.msk [vmem:[#allocation3 + $0x4] sm:$0xf] %vm819, %v792
      %822 = vst.msk [vmem:[#allocation3 + $0x8] sm:$0xf] %vm819, %v794
      %823 = vst.msk [vmem:[#allocation3 + $0xc] sm:$0xf] %vm819, %v796
      %824 = vst.msk [vmem:[#allocation3 + $0x10] sm:$0xf] %vm819, %v798
      %825 = vst.msk [vmem:[#allocation3 + $0x14] sm:$0xf] %vm819, %v800
      %826 = vst.msk [vmem:[#allocation3 + $0x18] sm:$0xf] %vm819, %v802
      %827 = vst.msk [vmem:[#allocation3 + $0x1c] sm:$0xf] %vm819, %v804
      %828 = vst.msk [vmem:[#allocation3 + $0x20] sm:$0xf] %vm819, %v806
      %829 = vst.msk [vmem:[#allocation3 + $0x24] sm:$0xf] %vm819, %v808
      %v830 = vld [vmem:[%s192 + $0x8] sm:$0xc]
      %v831 = vld [vmem:[%s192 + $0xc] sm:$0xf]
      %v832 = vld [vmem:[%s192 + $0x10] sm:$0xf]
      %v833 = vld [vmem:[%s192 + $0x14] sm:$0xf]
      %v834 = vld [vmem:[%s192 + $0x18] sm:$0xf]
      %v835 = vld [vmem:[%s192 + $0x1c] sm:$0xf]
      %v836 = vld [vmem:[%s192 + $0x20] sm:$0xf]
      %v837 = vld [vmem:[%s192 + $0x24] sm:$0xf]
      %v838 = vld [vmem:[%s192 + $0x28] sm:$0xf]
      %v839 = vld [vmem:[%s192 + $0x2c] sm:$0xf]
      %v840 = vld [vmem:[%s192 + $0x30] sm:$0x3]
      %v852 = vrot.slane %v830, 6
      %v853 = vrot.slane %v852, 4
      %v854 = vrot.slane %v831, 6
      %v855 = vsel %vm757, %v853, %v854
      %v856 = vrot.slane %v854, 4
      %v857 = vrot.slane %v832, 6
      %v858 = vsel %vm757, %v856, %v857
      %v859 = vrot.slane %v857, 4
      %v860 = vrot.slane %v833, 6
      %v861 = vsel %vm757, %v859, %v860
      %v862 = vrot.slane %v860, 4
      %v863 = vrot.slane %v834, 6
      %v864 = vsel %vm757, %v862, %v863
      %v865 = vrot.slane %v863, 4
      %v866 = vrot.slane %v835, 6
      %v867 = vsel %vm757, %v865, %v866
      %v868 = vrot.slane %v866, 4
      %v869 = vrot.slane %v836, 6
      %v870 = vsel %vm757, %v868, %v869
      %v871 = vrot.slane %v869, 4
      %v872 = vrot.slane %v837, 6
      %v873 = vsel %vm757, %v871, %v872
      %v874 = vrot.slane %v872, 4
      %v875 = vrot.slane %v838, 6
      %v876 = vsel %vm757, %v874, %v875
      %v877 = vrot.slane %v875, 4
      %v878 = vrot.slane %v839, 6
      %v879 = vsel %vm757, %v877, %v878
      %v880 = vrot.slane %v878, 4
      %v881 = vrot.slane %v840, 6
      %v882 = vsel %vm757, %v880, %v881
      %883 = vrot.lane.b32.xlu0 %v855, 24
      %v884 = vpop.permute.xlu0 %883
      %885 = vrot.lane.b32.xlu0 %v858, 24
      %v886 = vpop.permute.xlu0 %885
      %887 = vrot.lane.b32.xlu0 %v861, 24
      %v888 = vpop.permute.xlu0 %887
      %889 = vrot.lane.b32.xlu0 %v864, 24
      %v890 = vpop.permute.xlu0 %889
      %891 = vrot.lane.b32.xlu0 %v867, 24
      %v892 = vpop.permute.xlu0 %891
      %893 = vrot.lane.b32.xlu0 %v870, 24
      %v894 = vpop.permute.xlu0 %893
      %895 = vrot.lane.b32.xlu0 %v873, 24
      %v896 = vpop.permute.xlu0 %895
      %897 = vrot.lane.b32.xlu0 %v876, 24
      %v898 = vpop.permute.xlu0 %897
      %899 = vrot.lane.b32.xlu0 %v879, 24
      %v900 = vpop.permute.xlu0 %899
      %901 = vrot.lane.b32.xlu0 %v882, 24
      %v902 = vpop.permute.xlu0 %901
      %vm913 = vcmask 224448
      %914 = vst.msk [vmem:[#allocation3] sm:$0xf] %vm913, %v884
      %915 = vst.msk [vmem:[#allocation3 + $0x4] sm:$0xf] %vm913, %v886
      %916 = vst.msk [vmem:[#allocation3 + $0x8] sm:$0xf] %vm913, %v888
      %917 = vst.msk [vmem:[#allocation3 + $0xc] sm:$0xf] %vm913, %v890
      %918 = vst.msk [vmem:[#allocation3 + $0x10] sm:$0xf] %vm913, %v892
      %919 = vst.msk [vmem:[#allocation3 + $0x14] sm:$0xf] %vm913, %v894
      %920 = vst.msk [vmem:[#allocation3 + $0x18] sm:$0xf] %vm913, %v896
      %921 = vst.msk [vmem:[#allocation3 + $0x1c] sm:$0xf] %vm913, %v898
      %922 = vst.msk [vmem:[#allocation3 + $0x20] sm:$0xf] %vm913, %v900
      %923 = vst.msk [vmem:[#allocation3 + $0x24] sm:$0xf] %vm913, %v902
      %v924 = vld [vmem:[%s192 + $0x8] sm:$0xc]
      %v925 = vld [vmem:[%s192 + $0xc] sm:$0xf]
      %v926 = vld [vmem:[%s192 + $0x10] sm:$0xf]
      %v927 = vld [vmem:[%s192 + $0x14] sm:$0xf]
      %v928 = vld [vmem:[%s192 + $0x18] sm:$0xf]
      %v929 = vld [vmem:[%s192 + $0x1c] sm:$0xf]
      %v930 = vld [vmem:[%s192 + $0x20] sm:$0xf]
      %v931 = vld [vmem:[%s192 + $0x24] sm:$0xf]
      %v932 = vld [vmem:[%s192 + $0x28] sm:$0xf]
      %v933 = vld [vmem:[%s192 + $0x2c] sm:$0xf]
      %v934 = vld [vmem:[%s192 + $0x30] sm:$0x7]
      %vm935 = vsmask.f32 1280
      %vm936 = vsmask.f32 5392
      %vm937 = vmor %vm935, %vm936
      %v939 = vshrl.u32 %v924, 16
      %v941 = vrot.slane %v939, 6
      %v942 = vshll.u32 %v924, 16
      %v944 = vrot.slane %v942, 7
      %v945 = vor.u32 %v941, %v944
      %v946 = vrot.slane %v945, 4
      %v948 = vshrl.u32 %v925, 16
      %v950 = vrot.slane %v948, 6
      %v951 = vshll.u32 %v925, 16
      %v953 = vrot.slane %v951, 7
      %v954 = vor.u32 %v950, %v953
      %v955 = vsel %vm937, %v946, %v954
      %v956 = vrot.slane %v954, 4
      %v958 = vshrl.u32 %v926, 16
      %v960 = vrot.slane %v958, 6
      %v961 = vshll.u32 %v926, 16
      %v963 = vrot.slane %v961, 7
      %v964 = vor.u32 %v960, %v963
      %v965 = vsel %vm937, %v956, %v964
      %v966 = vrot.slane %v964, 4
      %v968 = vshrl.u32 %v927, 16
      %v970 = vrot.slane %v968, 6
      %v971 = vshll.u32 %v927, 16
      %v973 = vrot.slane %v971, 7
      %v974 = vor.u32 %v970, %v973
      %v975 = vsel %vm937, %v966, %v974
      %v976 = vrot.slane %v974, 4
      %v978 = vshrl.u32 %v928, 16
      %v980 = vrot.slane %v978, 6
      %v981 = vshll.u32 %v928, 16
      %v983 = vrot.slane %v981, 7
      %v984 = vor.u32 %v980, %v983
      %v985 = vsel %vm937, %v976, %v984
      %v986 = vrot.slane %v984, 4
      %v988 = vshrl.u32 %v929, 16
      %v990 = vrot.slane %v988, 6
      %v991 = vshll.u32 %v929, 16
      %v993 = vrot.slane %v991, 7
      %v994 = vor.u32 %v990, %v993
      %v995 = vsel %vm937, %v986, %v994
      %v996 = vrot.slane %v994, 4
      %v998 = vshrl.u32 %v930, 16
      %v1000 = vrot.slane %v998, 6
      %v1001 = vshll.u32 %v930, 16
      %v1003 = vrot.slane %v1001, 7
      %v1004 = vor.u32 %v1000, %v1003
      %v1005 = vsel %vm937, %v996, %v1004
      %v1006 = vrot.slane %v1004, 4
      %v1008 = vshrl.u32 %v931, 16
      %v1010 = vrot.slane %v1008, 6
      %v1011 = vshll.u32 %v931, 16
      %v1013 = vrot.slane %v1011, 7
      %v1014 = vor.u32 %v1010, %v1013
      %v1015 = vsel %vm937, %v1006, %v1014
      %v1016 = vrot.slane %v1014, 4
      %v1018 = vshrl.u32 %v932, 16
      %v1020 = vrot.slane %v1018, 6
      %v1021 = vshll.u32 %v932, 16
      %v1023 = vrot.slane %v1021, 7
      %v1024 = vor.u32 %v1020, %v1023
      %v1025 = vsel %vm937, %v1016, %v1024
      %v1026 = vrot.slane %v1024, 4
      %v1028 = vshrl.u32 %v933, 16
      %v1030 = vrot.slane %v1028, 6
      %v1031 = vshll.u32 %v933, 16
      %v1033 = vrot.slane %v1031, 7
      %v1034 = vor.u32 %v1030, %v1033
      %v1035 = vsel %vm937, %v1026, %v1034
      %v1036 = vrot.slane %v1034, 4
      %v1038 = vshrl.u32 %v934, 16
      %v1040 = vrot.slane %v1038, 6
      %v1041 = vshll.u32 %v934, 16
      %v1043 = vrot.slane %v1041, 7
      %v1044 = vor.u32 %v1040, %v1043
      %v1045 = vsel %vm937, %v1036, %v1044
      %1046 = vrot.lane.b32.xlu0 %v955, 28
      %v1047 = vpop.permute.xlu0 %1046
      %1048 = vrot.lane.b32.xlu0 %v965, 28
      %v1049 = vpop.permute.xlu0 %1048
      %1050 = vrot.lane.b32.xlu0 %v975, 28
      %v1051 = vpop.permute.xlu0 %1050
      %1052 = vrot.lane.b32.xlu0 %v985, 28
      %v1053 = vpop.permute.xlu0 %1052
      %1054 = vrot.lane.b32.xlu0 %v995, 28
      %v1055 = vpop.permute.xlu0 %1054
      %1056 = vrot.lane.b32.xlu0 %v1005, 28
      %v1057 = vpop.permute.xlu0 %1056
      %1058 = vrot.lane.b32.xlu0 %v1015, 28
      %v1059 = vpop.permute.xlu0 %1058
      %1060 = vrot.lane.b32.xlu0 %v1025, 28
      %v1061 = vpop.permute.xlu0 %1060
      %1062 = vrot.lane.b32.xlu0 %v1035, 28
      %v1063 = vpop.permute.xlu0 %1062
      %1064 = vrot.lane.b32.xlu0 %v1045, 28
      %v1065 = vpop.permute.xlu0 %1064
      %vm1076 = vcmask 257248
      %1077 = vst.msk [vmem:[#allocation3] sm:$0xf] %vm1076, %v1047
      %1078 = vst.msk [vmem:[#allocation3 + $0x4] sm:$0xf] %vm1076, %v1049
      %1079 = vst.msk [vmem:[#allocation3 + $0x8] sm:$0xf] %vm1076, %v1051
      %1080 = vst.msk [vmem:[#allocation3 + $0xc] sm:$0xf] %vm1076, %v1053
      %1081 = vst.msk [vmem:[#allocation3 + $0x10] sm:$0xf] %vm1076, %v1055
      %1082 = vst.msk [vmem:[#allocation3 + $0x14] sm:$0xf] %vm1076, %v1057
      %1083 = vst.msk [vmem:[#allocation3 + $0x18] sm:$0xf] %vm1076, %v1059
      %1084 = vst.msk [vmem:[#allocation3 + $0x1c] sm:$0xf] %vm1076, %v1061
      %1085 = vst.msk [vmem:[#allocation3 + $0x20] sm:$0xf] %vm1076, %v1063
      %1086 = vst.msk [vmem:[#allocation3 + $0x24] sm:$0xf] %vm1076, %v1065
      %v1087 = vld [vmem:[%s192 + $0x8] sm:$0x8]
      %v1088 = vld [vmem:[%s192 + $0xc] sm:$0xf]
      %v1089 = vld [vmem:[%s192 + $0x10] sm:$0xf]
      %v1090 = vld [vmem:[%s192 + $0x14] sm:$0xf]
      %v1091 = vld [vmem:[%s192 + $0x18] sm:$0xf]
      %v1092 = vld [vmem:[%s192 + $0x1c] sm:$0xf]
      %v1093 = vld [vmem:[%s192 + $0x20] sm:$0xf]
      %v1094 = vld [vmem:[%s192 + $0x24] sm:$0xf]
      %v1095 = vld [vmem:[%s192 + $0x28] sm:$0xf]
      %v1096 = vld [vmem:[%s192 + $0x2c] sm:$0xf]
      %v1097 = vld [vmem:[%s192 + $0x30] sm:$0x7]
      %vm1109 = vcmask 1040384
      %vm1110 = vcmask 1044484
      %vm1111 = vmor %vm1109, %vm1110
      %v1112 = vrot.slane %v1087, 7
      %v1113 = vrot.slane %v1112, 4
      %v1114 = vrot.slane %v1088, 7
      %v1115 = vsel %vm1111, %v1113, %v1114
      %v1116 = vrot.slane %v1114, 4
      %v1117 = vrot.slane %v1089, 7
      %v1118 = vsel %vm1111, %v1116, %v1117
      %v1119 = vrot.slane %v1117, 4
      %v1120 = vrot.slane %v1090, 7
      %v1121 = vsel %vm1111, %v1119, %v1120
      %v1122 = vrot.slane %v1120, 4
      %v1123 = vrot.slane %v1091, 7
      %v1124 = vsel %vm1111, %v1122, %v1123
      %v1125 = vrot.slane %v1123, 4
      %v1126 = vrot.slane %v1092, 7
      %v1127 = vsel %vm1111, %v1125, %v1126
      %v1128 = vrot.slane %v1126, 4
      %v1129 = vrot.slane %v1093, 7
      %v1130 = vsel %vm1111, %v1128, %v1129
      %v1131 = vrot.slane %v1129, 4
      %v1132 = vrot.slane %v1094, 7
      %v1133 = vsel %vm1111, %v1131, %v1132
      %v1134 = vrot.slane %v1132, 4
      %v1135 = vrot.slane %v1095, 7
      %v1136 = vsel %vm1111, %v1134, %v1135
      %v1137 = vrot.slane %v1135, 4
      %v1138 = vrot.slane %v1096, 7
      %v1139 = vsel %vm1111, %v1137, %v1138
      %v1140 = vrot.slane %v1138, 4
      %v1141 = vrot.slane %v1097, 7
      %v1142 = vsel %vm1111, %v1140, %v1141
      %1143 = vrot.lane.b32.xlu0 %v1115, 32
      %v1144 = vpop.permute.xlu0 %1143
      %1145 = vrot.lane.b32.xlu0 %v1118, 32
      %v1146 = vpop.permute.xlu0 %1145
      %1147 = vrot.lane.b32.xlu0 %v1121, 32
      %v1148 = vpop.permute.xlu0 %1147
      %1149 = vrot.lane.b32.xlu0 %v1124, 32
      %v1150 = vpop.permute.xlu0 %1149
      %1151 = vrot.lane.b32.xlu0 %v1127, 32
      %v1152 = vpop.permute.xlu0 %1151
      %1153 = vrot.lane.b32.xlu0 %v1130, 32
      %v1154 = vpop.permute.xlu0 %1153
      %1155 = vrot.lane.b32.xlu0 %v1133, 32
      %v1156 = vpop.permute.xlu0 %1155
      %1157 = vrot.lane.b32.xlu0 %v1136, 32
      %v1158 = vpop.permute.xlu0 %1157
      %1159 = vrot.lane.b32.xlu0 %v1139, 32
      %v1160 = vpop.permute.xlu0 %1159
      %1161 = vrot.lane.b32.xlu0 %v1142, 32
      %v1162 = vpop.permute.xlu0 %1161
      %vm1173 = vcmask 290048
      %1174 = vst.msk [vmem:[#allocation3] sm:$0xf] %vm1173, %v1144
      %1175 = vst.msk [vmem:[#allocation3 + $0x4] sm:$0xf] %vm1173, %v1146
      %1176 = vst.msk [vmem:[#allocation3 + $0x8] sm:$0xf] %vm1173, %v1148
      %1177 = vst.msk [vmem:[#allocation3 + $0xc] sm:$0xf] %vm1173, %v1150
      %1178 = vst.msk [vmem:[#allocation3 + $0x10] sm:$0xf] %vm1173, %v1152
      %1179 = vst.msk [vmem:[#allocation3 + $0x14] sm:$0xf] %vm1173, %v1154
      %1180 = vst.msk [vmem:[#allocation3 + $0x18] sm:$0xf] %vm1173, %v1156
      %1181 = vst.msk [vmem:[#allocation3 + $0x1c] sm:$0xf] %vm1173, %v1158
      %1182 = vst.msk [vmem:[#allocation3 + $0x20] sm:$0xf] %vm1173, %v1160
      %1183 = vst.msk [vmem:[#allocation3 + $0x24] sm:$0xf] %vm1173, %v1162
      %v1184 = vld [vmem:[#allocation3] sm:$0xf]
      %v1185 = vld [vmem:[#allocation3 + $0x4] sm:$0xf]
      %v1186 = vld [vmem:[#allocation3 + $0x8] sm:$0xf]
      %v1187 = vld [vmem:[#allocation3 + $0xc] sm:$0xf]
      %v1188 = vld [vmem:[#allocation3 + $0x10] sm:$0xf]
      %v1189 = vld [vmem:[#allocation3 + $0x14] sm:$0xf]
      %v1190 = vld [vmem:[#allocation3 + $0x18] sm:$0xf]
      %v1191 = vld [vmem:[#allocation3 + $0x1c] sm:$0xf]
      %v1192 = vld [vmem:[#allocation3 + $0x20] sm:$0xf]
      %v1193 = vld [vmem:[#allocation3 + $0x24] sm:$0xf]
      %v1194 = vld [vmem:[%s1] sm:$0xf]
      %v1195 = vld [vmem:[%s1 + $0x4] sm:$0xf]
      %v1196 = vld [vmem:[%s1 + $0x8] sm:$0xf]
      %v1197 = vld [vmem:[%s1 + $0xc] sm:$0xf]
      %v1198 = vld [vmem:[%s1 + $0x10] sm:$0x3]
      %v1209 = vunpack.c.l.b16 %v1184
      %v1210 = vunpack.c.l.b16 %v1185
      %v1211 = vunpack.c.l.b16 %v1186
      %v1212 = vunpack.c.l.b16 %v1187
      %v1213 = vunpack.c.l.b16 %v1188
      %v1214 = vunpack.c.l.b16 %v1189
      %v1215 = vunpack.c.l.b16 %v1190
      %v1216 = vunpack.c.l.b16 %v1191
      %v1217 = vunpack.c.l.b16 %v1192
      %v1218 = vunpack.c.l.b16 %v1193
      %v1219 = vpack.c.b16 %v1210, %v1209
      %v1220 = vpack.c.b16 %v1212, %v1211
      %v1221 = vpack.c.b16 %v1214, %v1213
      %v1222 = vpack.c.b16 %v1216, %v1215
      %v1223 = vpack.c.b16 %v1218, %v1217
      %v1229 = vunpack.c.l.b16 %v1194
      %v1230 = vunpack.c.l.b16 %v1195
      %v1231 = vunpack.c.l.b16 %v1196
      %v1232 = vunpack.c.l.b16 %v1197
      %v1233 = vunpack.c.l.b16 %v1198
      %v1234 = vpack.c.b16 %v1230, %v1229
      %v1235 = vpack.c.b16 %v1232, %v1231
      %v1236 = vpack.c.b16 %v1233, %v1233
      %vm1239 = vcmask 293888
      %v1241 = vsel %vm1239, %v1219, 0
      %v1244 = vsel %vm1239, %v1220, 0
      %v1247 = vsel %vm1239, %v1221, 0
      %v1250 = vsel %vm1239, %v1222, 0
      %v1253 = vsel %vm1239, %v1223, 0
      %vm1255 = vcmask 1041408
      %v1257 = vsel %vm1255, %v1236, 0
      %1259 = vmatprep.subr.bf16.mxu0 0
      %1260 = vmatpush1.bf16.msra.mxu0 0
      %1261 = vmatprep.subr.bf16.mxu0 0
      %1262 = vmatpush1.bf16.msra.mxu0 0
      %1263 = vmatprep.subr.bf16.mxu0 0
      %1264 = vmatpush1.bf16.msra.mxu0 0
      %1265 = vmatprep.subr.bf16.mxu0 0
      %1266 = vmatpush1.bf16.msra.mxu0 0
      %1267 = vmatprep.subr.bf16.mxu0 0
      %1268 = vmatpush1.bf16.msra.mxu0 0
      %1269 = vmatprep.subr.bf16.mxu0 0
      %1270 = vmatpush1.bf16.msra.mxu0 %v1257
      %1271 = vmatprep.subr.bf16.mxu0 0
      %1272 = vmatpush1.bf16.msra.mxu0 %v1235
      %1273 = vmatprep.subr.bf16.mxu0 0
      %1274 = vmatpush1.bf16.msra.mxu0 %v1234
      %1275 = vmatprep.subr.bf16.mxu0 0
      %1276 = vmatpush2.bf16.msra.mxu0 0
      %1277 = vmatprep.subr.bf16.mxu0 0
      %1278 = vmatpush2.bf16.msra.mxu0 0
      %1279 = vmatprep.subr.bf16.mxu0 0
      %1280 = vmatpush2.bf16.msra.mxu0 0
      %1281 = vmatprep.subr.bf16.mxu0 0
      %1282 = vmatpush2.bf16.msra.mxu0 0
      %1283 = vmatprep.subr.bf16.mxu0 0
      %1284 = vmatpush2.bf16.msra.mxu0 0
      %1285 = vmatprep.subr.bf16.mxu0 0
      %1286 = vmatpush2.bf16.msra.mxu0 0
      %1287 = vmatprep.subr.bf16.mxu0 0
      %1288 = vmatpush2.bf16.msra.mxu0 0
      %1289 = vmatprep.subr.bf16.mxu0 0
      %1290 = vmatpush2.bf16.msra.mxu0 0
      %1291 = vmatprep.mubr.bf16.mxu0 0
      %1292 = vmatmul.mubr.bf16.gmra.mxu0 %v1241
      %v1293 = vpop.f32.mrf.mxu0
      %v1294 = vadd.f32 0.0, %v1293
      %v1295 = vpop.f32.mrf.mxu0
      %v1296 = vpop.f32.mrf.mxu0
      %v1297 = vadd.f32 0.0, %v1296
      %v1298 = vpop.f32.mrf.mxu0
      %1299 = vmatprep.mubr.bf16.mxu0 0
      %1300 = vmatmul.mubr.bf16.gmra.mxu0 %v1244
      %v1301 = vpop.f32.mrf.mxu0
      %v1302 = vadd.f32 0.0, %v1301
      %v1303 = vpop.f32.mrf.mxu0
      %v1304 = vpop.f32.mrf.mxu0
      %v1305 = vadd.f32 0.0, %v1304
      %v1306 = vpop.f32.mrf.mxu0
      %1307 = vmatprep.mubr.bf16.mxu0 0
      %1308 = vmatmul.mubr.bf16.gmra.mxu0 %v1247
      %v1309 = vpop.f32.mrf.mxu0
      %v1310 = vadd.f32 0.0, %v1309
      %v1311 = vpop.f32.mrf.mxu0
      %v1312 = vpop.f32.mrf.mxu0
      %v1313 = vadd.f32 0.0, %v1312
      %v1314 = vpop.f32.mrf.mxu0
      %1315 = vmatprep.mubr.bf16.mxu0 0
      %1316 = vmatmul.mubr.bf16.gmra.mxu0 %v1250
      %v1317 = vpop.f32.mrf.mxu0
      %v1318 = vadd.f32 0.0, %v1317
      %v1319 = vpop.f32.mrf.mxu0
      %v1320 = vpop.f32.mrf.mxu0
      %v1321 = vadd.f32 0.0, %v1320
      %v1322 = vpop.f32.mrf.mxu0
      %1323 = vmatprep.mubr.bf16.mxu0 0
      %1324 = vmatmul.mubr.bf16.gmra.mxu0 %v1253
      %v1325 = vpop.f32.mrf.mxu0
      %v1326 = vadd.f32 0.0, %v1325
      %v1327 = vpop.f32.mrf.mxu0
      %v1328 = vpop.f32.mrf.mxu0
      %v1329 = vadd.f32 0.0, %v1328
      %v1330 = vpop.f32.mrf.mxu0
      %1331 = vdwg.mxu0
      %vm1332 = vcmask 64512
      %1333 = vst.msk [vmem:[#allocation2] sm:$0xff] %vm1332, %v1294
      %1334 = vst.msk [vmem:[#allocation2 + $0x8] sm:$0xff] %vm1332, %v1297
      %1335 = vst.msk [vmem:[#allocation2 + $0x10] sm:$0xff] %vm1332, %v1302
      %1336 = vst.msk [vmem:[#allocation2 + $0x18] sm:$0xff] %vm1332, %v1305
      %1337 = vst.msk [vmem:[#allocation2 + $0x20] sm:$0xff] %vm1332, %v1310
      %1338 = vst.msk [vmem:[#allocation2 + $0x28] sm:$0xff] %vm1332, %v1313
      %1339 = vst.msk [vmem:[#allocation2 + $0x30] sm:$0xff] %vm1332, %v1318
      %1340 = vst.msk [vmem:[#allocation2 + $0x38] sm:$0xff] %vm1332, %v1321
      %1341 = vst.msk [vmem:[#allocation2 + $0x40] sm:$0xff] %vm1332, %v1326
      %1342 = vst.msk [vmem:[#allocation2 + $0x48] sm:$0xff] %vm1332, %v1329
      %v1343 = vld [vmem:[#allocation2] sm:$0xff]
      %v1344 = vld [vmem:[#allocation2 + $0x8] sm:$0xff]
      %v1345 = vld [vmem:[#allocation2 + $0x10] sm:$0xff]
      %v1346 = vld [vmem:[#allocation2 + $0x18] sm:$0xff]
      %v1347 = vld [vmem:[#allocation2 + $0x20] sm:$0xff]
      %v1348 = vld [vmem:[#allocation2 + $0x28] sm:$0xff]
      %v1349 = vld [vmem:[#allocation2 + $0x30] sm:$0xff]
      %v1350 = vld [vmem:[#allocation2 + $0x38] sm:$0xff]
      %v1351 = vld [vmem:[#allocation2 + $0x40] sm:$0xff]
      %v1352 = vld [vmem:[#allocation2 + $0x48] sm:$0xff]
      %v1353 = vld [vmem:[%s2] sm:$0x1]
      %v1355 = vlaneseq
      %v1356 = vshrl.u32 %v1355, 7
      %v1357 = vsub.s32 0, %v1356
      %v1358 = vrot.slane %v1353, %v1357
      %v1360 = vmul.f32 %v1343, %v1358
      %v1361 = vmul.f32 %v1344, %v1358
      %v1362 = vmul.f32 %v1345, %v1358
      %v1363 = vmul.f32 %v1346, %v1358
      %v1364 = vmul.f32 %v1347, %v1358
      %v1365 = vmul.f32 %v1348, %v1358
      %v1366 = vmul.f32 %v1349, %v1358
      %v1367 = vmul.f32 %v1350, %v1358
      %v1368 = vmul.f32 %v1351, %v1358
      %v1369 = vmul.f32 %v1352, %v1358
      %v1370 = vld [vmem:[%s3] sm:$0x1]
      %v1372 = vlaneseq
      %v1373 = vshrl.u32 %v1372, 7
      %v1374 = vsub.s32 0, %v1373
      %v1375 = vrot.slane %v1370, %v1374
      %v1377 = vadd.f32 %v1360, %v1375
      %v1378 = vadd.f32 %v1361, %v1375
      %v1379 = vadd.f32 %v1362, %v1375
      %v1380 = vadd.f32 %v1363, %v1375
      %v1381 = vadd.f32 %v1364, %v1375
      %v1382 = vadd.f32 %v1365, %v1375
      %v1383 = vadd.f32 %v1366, %v1375
      %v1384 = vadd.f32 %v1367, %v1375
      %v1385 = vadd.f32 %v1368, %v1375
      %v1386 = vadd.f32 %v1369, %v1375
      %v1387 = vmax.f32 %v1377, 0.0
      %v1388 = vmax.f32 %v1378, 0.0
      %v1389 = vmax.f32 %v1379, 0.0
      %v1390 = vmax.f32 %v1380, 0.0
      %v1391 = vmax.f32 %v1381, 0.0
      %v1392 = vmax.f32 %v1382, 0.0
      %v1393 = vmax.f32 %v1383, 0.0
      %v1394 = vmax.f32 %v1384, 0.0
      %v1395 = vmax.f32 %v1385, 0.0
      %v1396 = vmax.f32 %v1386, 0.0
      %v1397 = vpack.c.bf16 %v1388, %v1387
      %v1398 = vpack.c.bf16 %v1390, %v1389
      %v1399 = vpack.c.bf16 %v1392, %v1391
      %v1400 = vpack.c.bf16 %v1394, %v1393
      %v1401 = vpack.c.bf16 %v1396, %v1395
      %v1407 = vunpack.c.l.b16 %v1397
      %v1408 = vunpack.c.h.b16 %v1397
      %v1409 = vunpack.c.l.b16 %v1398
      %v1410 = vunpack.c.h.b16 %v1398
      %v1411 = vunpack.c.l.b16 %v1399
      %v1412 = vunpack.c.h.b16 %v1399
      %v1413 = vunpack.c.l.b16 %v1400
      %v1414 = vunpack.c.h.b16 %v1400
      %v1415 = vunpack.c.l.b16 %v1401
      %v1416 = vunpack.c.h.b16 %v1401
      %v1417 = vpack.c.b16 %v1407, %v1407
      %v1418 = vpack.c.b16 %v1408, %v1408
      %v1419 = vpack.c.b16 %v1409, %v1409
      %v1420 = vpack.c.b16 %v1410, %v1410
      %v1421 = vpack.c.b16 %v1411, %v1411
      %v1422 = vpack.c.b16 %v1412, %v1412
      %v1423 = vpack.c.b16 %v1413, %v1413
      %v1424 = vpack.c.b16 %v1414, %v1414
      %v1425 = vpack.c.b16 %v1415, %v1415
      %v1426 = vpack.c.b16 %v1416, %v1416
      %vm1437 = vcmask 60416
      %1438 = vst.msk [vmem:[%s197] sm:$0xf] %vm1437, %v1417
      %1439 = vst.msk [vmem:[%s197 + $0x4] sm:$0xf] %vm1437, %v1418
      %1440 = vst.msk [vmem:[%s197 + $0x8] sm:$0xf] %vm1437, %v1419
      %1441 = vst.msk [vmem:[%s197 + $0xc] sm:$0xf] %vm1437, %v1420
      %1442 = vst.msk [vmem:[%s197 + $0x10] sm:$0xf] %vm1437, %v1421
      %1443 = vst.msk [vmem:[%s197 + $0x14] sm:$0xf] %vm1437, %v1422
      %1444 = vst.msk [vmem:[%s197 + $0x18] sm:$0xf] %vm1437, %v1423
      %1445 = vst.msk [vmem:[%s197 + $0x1c] sm:$0xf] %vm1437, %v1424
      %1446 = vst.msk [vmem:[%s197 + $0x20] sm:$0xf] %vm1437, %v1425
      %1447 = vst.msk [vmem:[%s197 + $0x24] sm:$0xf] %vm1437, %v1426
      %p1448 = scmp.lt.s32.totalorder %s15, 1
      %s1449 = scalar_select %p1448, %s15, 1
      %s1450 = smul.addr %s1449, 10
      %s1451 = smul.addr %s1450, 4
      %s1452 = scalar_lea.vmem %s4, %s1451
      // Predicated region
      $region37: #{down_forward.5} parent=35 // pred_check
        %p1453 = pneg %p122
      $region38: #{down_forward.5} parent=35 // pred_check_branch
        %1455 = sbr.rel (%p1453) target = $region40
      $region39: #{down_forward.5} parent=35 // pred_region
        _
      $region40: #{down_forward.5} parent=35 // pred_fallthru
        _
    $region36: #{down_forward.5} parent=5 // pred_fallthru
      _
    %p1456 = scmp.le.s32.totalorder 2, %s10
    // Predicated region
    $region41: #{down_forward.5} parent=5 // pred_check
      %p1457 = pneg %p1456
    $region42: #{down_forward.5} parent=5 // pred_check_branch
      %1459 = sbr.rel (%p1457) target = $region44
    $region43: #{down_forward.5} parent=5 // pred_region
      %s1460 = ssub.s32 %s10, 2
      // Predicated region
      $region45: #{down_forward.5} parent=43 // pred_check
        %p1461 = pneg %p128
      $region46: #{down_forward.5} parent=43 // pred_check_branch
        %1463 = sbr.rel (%p1461) target = $region48
      $region47: #{down_forward.5} parent=43 // pred_region
        %p1464 = scmp.lt.s32.totalorder %s16, 1
        %s1465 = scalar_select %p1464, %s16, 1
        %s1466 = smul.addr %s1465, 10
        %s1467 = smul.addr %s1466, 4
        %s1468 = scalar_lea.vmem %s4, %s1467
      $region48: #{down_forward.5} parent=43 // pred_fallthru
        _
    $region44: #{down_forward.5} parent=5 // pred_fallthru
      _
  $region6: #{down_forward.5} parent=0 // loop_footer
    %s14 = sadd.s32 1, %s10
  $region7: #{down_forward.5} parent=0 // loop_footer_branch
    %9 = sbr.rel target = $region3
  $region8: #{down_forward.5} parent=0 // loop_exit
    _

// kernel: down_forward.7
$region0: #{down_forward.7}
  #allocation0 [shape = 'u32[]', space=smem, size = 0x4, offset = 0x4, fixed_abs, tag = 'smem constant byte address 0x4 - core index']
  #allocation1 [shape = 'u32[144,128]{1,0:T(1,128)}', space=vmem, size = 0x12000, scoped, tag = 'internal scratch']
  #allocation2 [shape = 'f32[80,8]{1,0:T(8,128)}', space=vmem, size = 0xa000, scoped, tag = 'scratch operand']
  #allocation3 [shape = 'bf16[80,72]{1,0:T(8,128)(2,1)}', space=vmem, size = 0x5000, scoped, tag = 'scratch operand']
  %s0 = inlined_call_operand.vmem [shape: bf16[2,102,8], index: 0, kind: input, shape index: {}]
  %s1 = inlined_call_operand.vmem [shape: bf16[72,8], index: 1, kind: input, shape index: {}]
  %s2 = inlined_call_operand.vmem [shape: f32[1,8], index: 2, kind: input, shape index: {}]
  %s3 = inlined_call_operand.vmem [shape: f32[1,8], index: 3, kind: input, shape index: {}]
  %s4 = inlined_call_operand.vmem [shape: f32[2,80,8], index: 4, kind: output, shape index: {}]
  %s5 = sld [smem:[#allocation0]]
  $region49: #{down_forward.7} parent=0
    _
  %s7 = ssub.s32 1, %s5
  %s8 = scalar_select 0, %s7, %s5
  loop: start=0, step=1, limit=4
  $region2: #{down_forward.7} parent=0 // loop_pre_header
    _
  $region3: #{down_forward.7} parent=0 // loop_header
    %s10 = sphi 0, %s14
    %p11 = scmp.ge.s32.totalorder %s10, 4
    %s20 = sphi 0, %s22
    %s23 = sphi 0, %s20
    %s24 = sphi 0, %s23
    %s40 = sphi 0, %s24
    %s44 = sphi 0, %s44
    %s46 = sphi 0, %s44
    %s47 = sphi 0, %s46
    %s61 = sphi 0, %s47
    %s65 = sphi 0, %s65
    %s67 = sphi 0, %s65
    %s68 = sphi 0, %s67
    %s82 = sphi 0, %s68
    %s86 = sphi 0, %s86
    %s88 = sphi 0, %s86
    %s89 = sphi 0, %s88
    %s103 = sphi 0, %s89
    %s109 = sphi 0, %s111
    %s112 = sphi 0, %s109
    %s113 = sphi 0, %s112
    %s129 = sphi 0, %s113
  $region4: #{down_forward.7} parent=0 // loop_header_branch
    %13 = sbr.rel (%p11) target = $region8
  $region5: #{down_forward.7} parent=0 // loop_body
    %s15 = ssub.s32 %s10, 1
    %s16 = ssub.s32 %s10, 2
    %s17 = sadd.s32 %s10, 1
    %s18 = ssub.s32 %s10, %s17
    %p19 = scmp.eq.s32.totalorder %s18, 0
    %s21 = sadd.s32 %s20, 1
    %s22 = scalar_select %p19, %s20, %s21
    %p25 = pneg %p19
    %p26 = scmp.eq.s32.totalorder %s10, 1
    %p27 = por %p25, %p26
    %p28 = scmp.ne.s32.totalorder %s20, %s23
    %p29 = scmp.eq.s32.totalorder %s10, 0
    %p30 = por %p28, %p29
    %p31 = scmp.ne.s32.totalorder %s20, %s23
    %p32 = scmp.eq.s32.totalorder %s15, 1
    %p33 = por %p31, %p32
    %p34 = scmp.ne.s32.totalorder %s23, %s24
    %p35 = scmp.eq.s32.totalorder %s15, 0
    %p36 = por %p34, %p35
    %p37 = scmp.ne.s32.totalorder %s23, %s24
    %p38 = scmp.eq.s32.totalorder %s16, 1
    %p39 = por %p37, %p38
    %p41 = scmp.ne.s32.totalorder %s24, %s40
    %p42 = scmp.eq.s32.totalorder %s16, 0
    %p43 = por %p41, %p42
    %s45 = sadd.s32 %s44, 1
    %p48 = scmp.eq.s32.totalorder %s10, 1
    %p49 = scmp.ne.s32.totalorder %s44, %s46
    %p50 = scmp.eq.s32.totalorder %s10, 0
    %p51 = por %p49, %p50
    %p52 = scmp.ne.s32.totalorder %s44, %s46
    %p53 = scmp.eq.s32.totalorder %s15, 1
    %p54 = por %p52, %p53
    %p55 = scmp.ne.s32.totalorder %s46, %s47
    %p56 = scmp.eq.s32.totalorder %s15, 0
    %p57 = por %p55, %p56
    %p58 = scmp.ne.s32.totalorder %s46, %s47
    %p59 = scmp.eq.s32.totalorder %s16, 1
    %p60 = por %p58, %p59
    %p62 = scmp.ne.s32.totalorder %s47, %s61
    %p63 = scmp.eq.s32.totalorder %s16, 0
    %p64 = por %p62, %p63
    %s66 = sadd.s32 %s65, 1
    %p69 = scmp.eq.s32.totalorder %s10, 1
    %p70 = scmp.ne.s32.totalorder %s65, %s67
    %p71 = scmp.eq.s32.totalorder %s10, 0
    %p72 = por %p70, %p71
    %p73 = scmp.ne.s32.totalorder %s65, %s67
    %p74 = scmp.eq.s32.totalorder %s15, 1
    %p75 = por %p73, %p74
    %p76 = scmp.ne.s32.totalorder %s67, %s68
    %p77 = scmp.eq.s32.totalorder %s15, 0
    %p78 = por %p76, %p77
    %p79 = scmp.ne.s32.totalorder %s67, %s68
    %p80 = scmp.eq.s32.totalorder %s16, 1
    %p81 = por %p79, %p80
    %p83 = scmp.ne.s32.totalorder %s68, %s82
    %p84 = scmp.eq.s32.totalorder %s16, 0
    %p85 = por %p83, %p84
    %s87 = sadd.s32 %s86, 1
    %p90 = scmp.eq.s32.totalorder %s10, 1
    %p91 = scmp.ne.s32.totalorder %s86, %s88
    %p92 = scmp.eq.s32.totalorder %s10, 0
    %p93 = por %p91, %p92
    %p94 = scmp.ne.s32.totalorder %s86, %s88
    %p95 = scmp.eq.s32.totalorder %s15, 1
    %p96 = por %p94, %p95
    %p97 = scmp.ne.s32.totalorder %s88, %s89
    %p98 = scmp.eq.s32.totalorder %s15, 0
    %p99 = por %p97, %p98
    %p100 = scmp.ne.s32.totalorder %s88, %s89
    %p101 = scmp.eq.s32.totalorder %s16, 1
    %p102 = por %p100, %p101
    %p104 = scmp.ne.s32.totalorder %s89, %s103
    %p105 = scmp.eq.s32.totalorder %s16, 0
    %p106 = por %p104, %p105
    %s107 = ssub.s32 %s10, %s17
    %p108 = scmp.eq.s32.totalorder %s107, 0
    %s110 = sadd.s32 %s109, 1
    %s111 = scalar_select %p108, %s109, %s110
    %p114 = pneg %p108
    %p115 = scmp.eq.s32.totalorder %s10, 1
    %p116 = por %p114, %p115
    %p117 = scmp.ne.s32.totalorder %s109, %s112
    %p118 = scmp.eq.s32.totalorder %s10, 0
    %p119 = por %p117, %p118
    %p120 = scmp.ne.s32.totalorder %s109, %s112
    %p121 = scmp.eq.s32.totalorder %s15, 1
    %p122 = por %p120, %p121
    %p123 = scmp.ne.s32.totalorder %s112, %s113
    %p124 = scmp.eq.s32.totalorder %s15, 0
    %p125 = por %p123, %p124
    %p126 = scmp.ne.s32.totalorder %s112, %s113
    %p127 = scmp.eq.s32.totalorder %s16, 1
    %p128 = por %p126, %p127
    %p130 = scmp.ne.s32.totalorder %s113, %s129
    %p131 = scmp.eq.s32.totalorder %s16, 0
    %p132 = por %p130, %p131
    %p133 = scmp.le.s32.totalorder 1, %s10
    %p134 = scmp.lt.s32.totalorder %s10, 3
    %p135 = pnand %p133, %p134
    %p136 = pneg %p135
    // Predicated region
    $region9: #{down_forward.7} parent=5 // pred_check
      _
    $region10: #{down_forward.7} parent=5 // pred_check_branch
      %138 = sbr.rel (%p135) target = $region12
    $region11: #{down_forward.7} parent=5 // pred_region
      %s139 = ssub.s32 %s10, 1
      // Predicated region
      $region13: #{down_forward.7} parent=11 // pred_check
        %p140 = pneg %p57
      $region14: #{down_forward.7} parent=11 // pred_check_branch
        %142 = sbr.rel (%p140) target = $region16
      $region15: #{down_forward.7} parent=11 // pred_region
        _
      $region16: #{down_forward.7} parent=11 // pred_fallthru
        _
      // Predicated region
      $region17: #{down_forward.7} parent=11 // pred_check
        %p143 = pneg %p78
      $region18: #{down_forward.7} parent=11 // pred_check_branch
        %145 = sbr.rel (%p143) target = $region20
      $region19: #{down_forward.7} parent=11 // pred_region
        _
      $region20: #{down_forward.7} parent=11 // pred_fallthru
        _
      // Predicated region
      $region21: #{down_forward.7} parent=11 // pred_check
        %p146 = pneg %p99
      $region22: #{down_forward.7} parent=11 // pred_check_branch
        %148 = sbr.rel (%p146) target = $region24
      $region23: #{down_forward.7} parent=11 // pred_region
        _
      $region24: #{down_forward.7} parent=11 // pred_fallthru
        _
    $region12: #{down_forward.7} parent=5 // pred_fallthru
      _
    %p149 = scmp.lt.s32.totalorder %s10, 2
    // Predicated region
    $region25: #{down_forward.7} parent=5 // pred_check
      %p150 = pneg %p149
    $region26: #{down_forward.7} parent=5 // pred_check_branch
      %152 = sbr.rel (%p150) target = $region28
    $region27: #{down_forward.7} parent=5 // pred_region
      // Predicated region
      $region29: #{down_forward.7} parent=27 // pred_check
        %p153 = pneg %p30
      $region30: #{down_forward.7} parent=27 // pred_check_branch
        %155 = sbr.rel (%p153) target = $region32
      $region31: #{down_forward.7} parent=27 // pred_region
        %p156 = scmp.lt.s32.totalorder %s10, 1
        %s157 = scalar_select %p156, %s10, 1
        %s158 = smul.addr %s157, 13
        %s159 = smul.addr %s158, 4
        %s160 = scalar_lea.vmem %s0, %s159
      $region32: #{down_forward.7} parent=27 // pred_fallthru
        _
    $region28: #{down_forward.7} parent=5 // pred_fallthru
      _
    %p161 = scmp.le.s32.totalorder 1, %s10
    %p162 = scmp.lt.s32.totalorder %s10, 3
    %p163 = pnand %p161, %p162
    %p164 = pneg %p163
    // Predicated region
    $region33: #{down_forward.7} parent=5 // pred_check
      _
    $region34: #{down_forward.7} parent=5 // pred_check_branch
      %166 = sbr.rel (%p163) target = $region36
    $region35: #{down_forward.7} parent=5 // pred_region
      %s167 = ssub.s32 %s10, 1
      %p168 = scmp.lt.s32.totalorder %s15, 1
      %s169 = scalar_select %p168, %s15, 1
      %s170 = smul.addr %s169, 13
      %s171 = smul.addr %s170, 4
      %s172 = scalar_lea.vmem %s0, %s171
      %p173 = pneg %p36
      %p174 = pneg %p33
      %p175 = pneg %p57
      %p176 = pneg %p54
      %p177 = pneg %p78
      %p178 = pneg %p75
      %p179 = pneg %p99
      %p180 = pneg %p96
      %p181 = pneg %p125
      %p182 = pneg %p122
      %p183 = scmp.lt.s32.totalorder %s15, 1
      %s184 = scalar_select %p183, %s15, 1
      %s185 = smul.addr %s184, 10
      %s186 = smul.addr %s185, 8
      %s187 = scalar_lea.vmem %s4, %s186
      %p188 = scmp.lt.s32.totalorder %s15, 1
      %s189 = scalar_select %p188, %s15, 1
      %s190 = smul.addr %s189, 13
      %s191 = smul.addr %s190, 4
      %s192 = scalar_lea.vmem %s0, %s191
      %p193 = scmp.lt.s32.totalorder %s15, 1
      %s194 = scalar_select %p193, %s15, 1
      %s195 = smul.addr %s194, 10
      %s196 = smul.addr %s195, 8
      %s197 = scalar_lea.vmem %s4, %s196
      %v199 = vld [vmem:[%s192] sm:$0xf]
      %v200 = vld [vmem:[%s192 + $0x4] sm:$0xf]
      %v201 = vld [vmem:[%s192 + $0x8] sm:$0xf]
      %v202 = vld [vmem:[%s192 + $0xc] sm:$0xf]
      %v203 = vld [vmem:[%s192 + $0x10] sm:$0xf]
      %v204 = vld [vmem:[%s192 + $0x14] sm:$0xf]
      %v205 = vld [vmem:[%s192 + $0x18] sm:$0xf]
      %v206 = vld [vmem:[%s192 + $0x1c] sm:$0xf]
      %v207 = vld [vmem:[%s192 + $0x20] sm:$0xf]
      %v208 = vld [vmem:[%s192 + $0x24] sm:$0xf]
      %vm209 = vcmask 60416
      %210 = vst.msk [vmem:[#allocation3] sm:$0xf] %vm209, %v199
      %211 = vst.msk [vmem:[#allocation3 + $0x4] sm:$0xf] %vm209, %v200
      %212 = vst.msk [vmem:[#allocation3 + $0x8] sm:$0xf] %vm209, %v201
      %213 = vst.msk [vmem:[#allocation3 + $0xc] sm:$0xf] %vm209, %v202
      %214 = vst.msk [vmem:[#allocation3 + $0x10] sm:$0xf] %vm209, %v203
      %215 = vst.msk [vmem:[#allocation3 + $0x14] sm:$0xf] %vm209, %v204
      %216 = vst.msk [vmem:[#allocation3 + $0x18] sm:$0xf] %vm209, %v205
      %217 = vst.msk [vmem:[#allocation3 + $0x1c] sm:$0xf] %vm209, %v206
      %218 = vst.msk [vmem:[#allocation3 + $0x20] sm:$0xf] %vm209, %v207
      %219 = vst.msk [vmem:[#allocation3 + $0x24] sm:$0xf] %vm209, %v208
      %v220 = vld [vmem:[%s192] sm:$0xf]
      %v221 = vld [vmem:[%s192 + $0x4] sm:$0xf]
      %v222 = vld [vmem:[%s192 + $0x8] sm:$0xf]
      %v223 = vld [vmem:[%s192 + $0xc] sm:$0xf]
      %v224 = vld [vmem:[%s192 + $0x10] sm:$0xf]
      %v225 = vld [vmem:[%s192 + $0x14] sm:$0xf]
      %v226 = vld [vmem:[%s192 + $0x18] sm:$0xf]
      %v227 = vld [vmem:[%s192 + $0x1c] sm:$0xf]
      %v228 = vld [vmem:[%s192 + $0x20] sm:$0xf]
      %v229 = vld [vmem:[%s192 + $0x24] sm:$0xf]
      %v230 = vld [vmem:[%s192 + $0x28] sm:$0x1]
      %vm231 = vsmask.f32 3328
      %vm232 = vsmask.f32 7440
      %vm233 = vmor %vm231, %vm232
      %v235 = vshrl.u32 %v220, 16
      %v237 = vrot.slane %v235, 4
      %v238 = vshll.u32 %v220, 16
      %v240 = vrot.slane %v238, 5
      %v241 = vor.u32 %v237, %v240
      %v242 = vrot.slane %v241, 4
      %v244 = vshll.u32 %v221, 16
      %v246 = vrot.slane %v244, 5
      %v247 = vsel %vm233, %v242, %v246
      %v248 = vshrl.u32 %v221, 16
      %v250 = vrot.slane %v248, 4
      %v251 = vor.u32 %v250, %v246
      %v252 = vrot.slane %v251, 4
      %v254 = vshll.u32 %v222, 16
      %v256 = vrot.slane %v254, 5
      %v257 = vsel %vm233, %v252, %v256
      %v258 = vshrl.u32 %v222, 16
      %v260 = vrot.slane %v258, 4
      %v261 = vor.u32 %v260, %v256
      %v262 = vrot.slane %v261, 4
      %v264 = vshll.u32 %v223, 16
      %v266 = vrot.slane %v264, 5
      %v267 = vsel %vm233, %v262, %v266
      %v268 = vshrl.u32 %v223, 16
      %v270 = vrot.slane %v268, 4
      %v271 = vor.u32 %v270, %v266
      %v272 = vrot.slane %v271, 4
      %v274 = vshll.u32 %v224, 16
      %v276 = vrot.slane %v274, 5
      %v277 = vsel %vm233, %v272, %v276
      %v278 = vshrl.u32 %v224, 16
      %v280 = vrot.slane %v278, 4
      %v281 = vor.u32 %v280, %v276
      %v282 = vrot.slane %v281, 4
      %v284 = vshll.u32 %v225, 16
      %v286 = vrot.slane %v284, 5
      %v287 = vsel %vm233, %v282, %v286
      %v288 = vshrl.u32 %v225, 16
      %v290 = vrot.slane %v288, 4
      %v291 = vor.u32 %v290, %v286
      %v292 = vrot.slane %v291, 4
      %v294 = vshll.u32 %v226, 16
      %v296 = vrot.slane %v294, 5
      %v297 = vsel %vm233, %v292, %v296
      %v298 = vshrl.u32 %v226, 16
      %v300 = vrot.slane %v298, 4
      %v301 = vor.u32 %v300, %v296
      %v302 = vrot.slane %v301, 4
      %v304 = vshll.u32 %v227, 16
      %v306 = vrot.slane %v304, 5
      %v307 = vsel %vm233, %v302, %v306
      %v308 = vshrl.u32 %v227, 16
      %v310 = vrot.slane %v308, 4
      %v311 = vor.u32 %v310, %v306
      %v312 = vrot.slane %v311, 4
      %v314 = vshll.u32 %v228, 16
      %v316 = vrot.slane %v314, 5
      %v317 = vsel %vm233, %v312, %v316
      %v318 = vshrl.u32 %v228, 16
      %v320 = vrot.slane %v318, 4
      %v321 = vor.u32 %v320, %v316
      %v322 = vrot.slane %v321, 4
      %v324 = vshll.u32 %v229, 16
      %v326 = vrot.slane %v324, 5
      %v327 = vsel %vm233, %v322, %v326
      %v328 = vshrl.u32 %v229, 16
      %v330 = vrot.slane %v328, 4
      %v331 = vor.u32 %v330, %v326
      %v332 = vrot.slane %v331, 4
      %v334 = vshll.u32 %v230, 16
      %v336 = vrot.slane %v334, 5
      %v337 = vsel %vm233, %v332, %v336
      %338 = vrot.lane.b32.xlu0 %v247, 8
      %v339 = vpop.permute.xlu0 %338
      %340 = vrot.lane.b32.xlu0 %v257, 8
      %v341 = vpop.permute.xlu0 %340
      %342 = vrot.lane.b32.xlu0 %v267, 8
      %v343 = vpop.permute.xlu0 %342
      %344 = vrot.lane.b32.xlu0 %v277, 8
      %v345 = vpop.permute.xlu0 %344
      %346 = vrot.lane.b32.xlu0 %v287, 8
      %v347 = vpop.permute.xlu0 %346
      %348 = vrot.lane.b32.xlu0 %v297, 8
      %v349 = vpop.permute.xlu0 %348
      %350 = vrot.lane.b32.xlu0 %v307, 8
      %v351 = vpop.permute.xlu0 %350
      %352 = vrot.lane.b32.xlu0 %v317, 8
      %v353 = vpop.permute.xlu0 %352
      %354 = vrot.lane.b32.xlu0 %v327, 8
      %v355 = vpop.permute.xlu0 %354
      %356 = vrot.lane.b32.xlu0 %v337, 8
      %v357 = vpop.permute.xlu0 %356
      %vm368 = vcmask 126016
      %369 = vst.msk [vmem:[#allocation3] sm:$0xf] %vm368, %v339
      %370 = vst.msk [vmem:[#allocation3 + $0x4] sm:$0xf] %vm368, %v341
      %371 = vst.msk [vmem:[#allocation3 + $0x8] sm:$0xf] %vm368, %v343
      %372 = vst.msk [vmem:[#allocation3 + $0xc] sm:$0xf] %vm368, %v345
      %373 = vst.msk [vmem:[#allocation3 + $0x10] sm:$0xf] %vm368, %v347
      %374 = vst.msk [vmem:[#allocation3 + $0x14] sm:$0xf] %vm368, %v349
      %375 = vst.msk [vmem:[#allocation3 + $0x18] sm:$0xf] %vm368, %v351
      %376 = vst.msk [vmem:[#allocation3 + $0x1c] sm:$0xf] %vm368, %v353
      %377 = vst.msk [vmem:[#allocation3 + $0x20] sm:$0xf] %vm368, %v355
      %378 = vst.msk [vmem:[#allocation3 + $0x24] sm:$0xf] %vm368, %v357
      %v379 = vld [vmem:[%s192] sm:$0xe]
      %v380 = vld [vmem:[%s192 + $0x4] sm:$0xf]
      %v381 = vld [vmem:[%s192 + $0x8] sm:$0xf]
      %v382 = vld [vmem:[%s192 + $0xc] sm:$0xf]
      %v383 = vld [vmem:[%s192 + $0x10] sm:$0xf]
      %v384 = vld [vmem:[%s192 + $0x14] sm:$0xf]
      %v385 = vld [vmem:[%s192 + $0x18] sm:$0xf]
      %v386 = vld [vmem:[%s192 + $0x1c] sm:$0xf]
      %v387 = vld [vmem:[%s192 + $0x20] sm:$0xf]
      %v388 = vld [vmem:[%s192 + $0x24] sm:$0xf]
      %v389 = vld [vmem:[%s192 + $0x28] sm:$0x1]
      %vm401 = vcmask 1042432
      %vm402 = vcmask 1046532
      %vm403 = vmor %vm401, %vm402
      %v404 = vrot.slane %v379, 5
      %v405 = vrot.slane %v404, 4
      %v406 = vrot.slane %v380, 5
      %v407 = vsel %vm403, %v405, %v406
      %v408 = vrot.slane %v406, 4
      %v409 = vrot.slane %v381, 5
      %v410 = vsel %vm403, %v408, %v409
      %v411 = vrot.slane %v409, 4
      %v412 = vrot.slane %v382, 5
      %v413 = vsel %vm403, %v411, %v412
      %v414 = vrot.slane %v412, 4
      %v415 = vrot.slane %v383, 5
      %v416 = vsel %vm403, %v414, %v415
      %v417 = vrot.slane %v415, 4
      %v418 = vrot.slane %v384, 5
      %v419 = vsel %vm403, %v417, %v418
      %v420 = vrot.slane %v418, 4
      %v421 = vrot.slane %v385, 5
      %v422 = vsel %vm403, %v420, %v421
      %v423 = vrot.slane %v421, 4
      %v424 = vrot.slane %v386, 5
      %v425 = vsel %vm403, %v423, %v424
      %v426 = vrot.slane %v424, 4
      %v427 = vrot.slane %v387, 5
      %v428 = vsel %vm403, %v426, %v427
      %v429 = vrot.slane %v427, 4
      %v430 = vrot.slane %v388, 5
      %v431 = vsel %vm403, %v429, %v430
      %v432 = vrot.slane %v430, 4
      %v433 = vrot.slane %v389, 5
      %v434 = vsel %vm403, %v432, %v433
      %435 = vrot.lane.b32.xlu0 %v407, 16
      %v436 = vpop.permute.xlu0 %435
      %437 = vrot.lane.b32.xlu0 %v410, 16
      %v438 = vpop.permute.xlu0 %437
      %439 = vrot.lane.b32.xlu0 %v413, 16
      %v440 = vpop.permute.xlu0 %439
      %441 = vrot.lane.b32.xlu0 %v416, 16
      %v442 = vpop.permute.xlu0 %441
      %443 = vrot.lane.b32.xlu0 %v419, 16
      %v444 = vpop.permute.xlu0 %443
      %445 = vrot.lane.b32.xlu0 %v422, 16
      %v446 = vpop.permute.xlu0 %445
      %447 = vrot.lane.b32.xlu0 %v425, 16
      %v448 = vpop.permute.xlu0 %447
      %449 = vrot.lane.b32.xlu0 %v428, 16
      %v450 = vpop.permute.xlu0 %449
      %451 = vrot.lane.b32.xlu0 %v431, 16
      %v452 = vpop.permute.xlu0 %451
      %453 = vrot.lane.b32.xlu0 %v434, 16
      %v454 = vpop.permute.xlu0 %453
      %vm465 = vcmask 191616
      %466 = vst.msk [vmem:[#allocation3] sm:$0xf] %vm465, %v436
      %467 = vst.msk [vmem:[#allocation3 + $0x4] sm:$0xf] %vm465, %v438
      %468 = vst.msk [vmem:[#allocation3 + $0x8] sm:$0xf] %vm465, %v440
      %469 = vst.msk [vmem:[#allocation3 + $0xc] sm:$0xf] %vm465, %v442
      %470 = vst.msk [vmem:[#allocation3 + $0x10] sm:$0xf] %vm465, %v444
      %471 = vst.msk [vmem:[#allocation3 + $0x14] sm:$0xf] %vm465, %v446
      %472 = vst.msk [vmem:[#allocation3 + $0x18] sm:$0xf] %vm465, %v448
      %473 = vst.msk [vmem:[#allocation3 + $0x1c] sm:$0xf] %vm465, %v450
      %474 = vst.msk [vmem:[#allocation3 + $0x20] sm:$0xf] %vm465, %v452
      %475 = vst.msk [vmem:[#allocation3 + $0x24] sm:$0xf] %vm465, %v454
      %v476 = vld [vmem:[%s192 + $0x4] sm:$0xe]
      %v477 = vld [vmem:[%s192 + $0x8] sm:$0xf]
      %v478 = vld [vmem:[%s192 + $0xc] sm:$0xf]
      %v479 = vld [vmem:[%s192 + $0x10] sm:$0xf]
      %v480 = vld [vmem:[%s192 + $0x14] sm:$0xf]
      %v481 = vld [vmem:[%s192 + $0x18] sm:$0xf]
      %v482 = vld [vmem:[%s192 + $0x1c] sm:$0xf]
      %v483 = vld [vmem:[%s192 + $0x20] sm:$0xf]
      %v484 = vld [vmem:[%s192 + $0x24] sm:$0xf]
      %v485 = vld [vmem:[%s192 + $0x28] sm:$0xf]
      %v486 = vld [vmem:[%s192 + $0x2c] sm:$0x1]
      %v498 = vrot.slane %v476, 5
      %v499 = vrot.slane %v498, 4
      %v500 = vrot.slane %v477, 5
      %v501 = vsel %vm403, %v499, %v500
      %v502 = vrot.slane %v500, 4
      %v503 = vrot.slane %v478, 5
      %v504 = vsel %vm403, %v502, %v503
      %v505 = vrot.slane %v503, 4
      %v506 = vrot.slane %v479, 5
      %v507 = vsel %vm403, %v505, %v506
      %v508 = vrot.slane %v506, 4
      %v509 = vrot.slane %v480, 5
      %v510 = vsel %vm403, %v508, %v509
      %v511 = vrot.slane %v509, 4
      %v512 = vrot.slane %v481, 5
      %v513 = vsel %vm403, %v511, %v512
      %v514 = vrot.slane %v512, 4
      %v515 = vrot.slane %v482, 5
      %v516 = vsel %vm403, %v514, %v515
      %v517 = vrot.slane %v515, 4
      %v518 = vrot.slane %v483, 5
      %v519 = vsel %vm403, %v517, %v518
      %v520 = vrot.slane %v518, 4
      %v521 = vrot.slane %v484, 5
      %v522 = vsel %vm403, %v520, %v521
      %v523 = vrot.slane %v521, 4
      %v524 = vrot.slane %v485, 5
      %v525 = vsel %vm403, %v523, %v524
      %v526 = vrot.slane %v524, 4
      %v527 = vrot.slane %v486, 5
      %v528 = vsel %vm403, %v526, %v527
      %529 = vrot.lane.b32.xlu0 %v501, 24
      %v530 = vpop.permute.xlu0 %529
      %531 = vrot.lane.b32.xlu0 %v504, 24
      %v532 = vpop.permute.xlu0 %531
      %533 = vrot.lane.b32.xlu0 %v507, 24
      %v534 = vpop.permute.xlu0 %533
      %535 = vrot.lane.b32.xlu0 %v510, 24
      %v536 = vpop.permute.xlu0 %535
      %537 = vrot.lane.b32.xlu0 %v513, 24
      %v538 = vpop.permute.xlu0 %537
      %539 = vrot.lane.b32.xlu0 %v516, 24
      %v540 = vpop.permute.xlu0 %539
      %541 = vrot.lane.b32.xlu0 %v519, 24
      %v542 = vpop.permute.xlu0 %541
      %543 = vrot.lane.b32.xlu0 %v522, 24
      %v544 = vpop.permute.xlu0 %543
      %545 = vrot.lane.b32.xlu0 %v525, 24
      %v546 = vpop.permute.xlu0 %545
      %547 = vrot.lane.b32.xlu0 %v528, 24
      %v548 = vpop.permute.xlu0 %547
      %vm559 = vcmask 257216
      %560 = vst.msk [vmem:[#allocation3] sm:$0xf] %vm559, %v530
      %561 = vst.msk [vmem:[#allocation3 + $0x4] sm:$0xf] %vm559, %v532
      %562 = vst.msk [vmem:[#allocation3 + $0x8] sm:$0xf] %vm559, %v534
      %563 = vst.msk [vmem:[#allocation3 + $0xc] sm:$0xf] %vm559, %v536
      %564 = vst.msk [vmem:[#allocation3 + $0x10] sm:$0xf] %vm559, %v538
      %565 = vst.msk [vmem:[#allocation3 + $0x14] sm:$0xf] %vm559, %v540
      %566 = vst.msk [vmem:[#allocation3 + $0x18] sm:$0xf] %vm559, %v542
      %567 = vst.msk [vmem:[#allocation3 + $0x1c] sm:$0xf] %vm559, %v544
      %568 = vst.msk [vmem:[#allocation3 + $0x20] sm:$0xf] %vm559, %v546
      %569 = vst.msk [vmem:[#allocation3 + $0x24] sm:$0xf] %vm559, %v548
      %v570 = vld [vmem:[%s192 + $0x4] sm:$0xe]
      %v571 = vld [vmem:[%s192 + $0x8] sm:$0xf]
      %v572 = vld [vmem:[%s192 + $0xc] sm:$0xf]
      %v573 = vld [vmem:[%s192 + $0x10] sm:$0xf]
      %v574 = vld [vmem:[%s192 + $0x14] sm:$0xf]
      %v575 = vld [vmem:[%s192 + $0x18] sm:$0xf]
      %v576 = vld [vmem:[%s192 + $0x1c] sm:$0xf]
      %v577 = vld [vmem:[%s192 + $0x20] sm:$0xf]
      %v578 = vld [vmem:[%s192 + $0x24] sm:$0xf]
      %v579 = vld [vmem:[%s192 + $0x28] sm:$0xf]
      %v580 = vld [vmem:[%s192 + $0x2c] sm:$0x3]
      %vm581 = vsmask.f32 2304
      %vm582 = vsmask.f32 6416
      %vm583 = vmor %vm581, %vm582
      %v585 = vshrl.u32 %v570, 16
      %v587 = vrot.slane %v585, 5
      %v588 = vshll.u32 %v570, 16
      %v590 = vrot.slane %v588, 6
      %v591 = vor.u32 %v587, %v590
      %v592 = vrot.slane %v591, 4
      %v594 = vshrl.u32 %v571, 16
      %v596 = vrot.slane %v594, 5
      %v597 = vshll.u32 %v571, 16
      %v599 = vrot.slane %v597, 6
      %v600 = vor.u32 %v596, %v599
      %v601 = vsel %vm583, %v592, %v600
      %v602 = vrot.slane %v600, 4
      %v604 = vshrl.u32 %v572, 16
      %v606 = vrot.slane %v604, 5
      %v607 = vshll.u32 %v572, 16
      %v609 = vrot.slane %v607, 6
      %v610 = vor.u32 %v606, %v609
      %v611 = vsel %vm583, %v602, %v610
      %v612 = vrot.slane %v610, 4
      %v614 = vshrl.u32 %v573, 16
      %v616 = vrot.slane %v614, 5
      %v617 = vshll.u32 %v573, 16
      %v619 = vrot.slane %v617, 6
      %v620 = vor.u32 %v616, %v619
      %v621 = vsel %vm583, %v612, %v620
      %v622 = vrot.slane %v620, 4
      %v624 = vshrl.u32 %v574, 16
      %v626 = vrot.slane %v624, 5
      %v627 = vshll.u32 %v574, 16
      %v629 = vrot.slane %v627, 6
      %v630 = vor.u32 %v626, %v629
      %v631 = vsel %vm583, %v622, %v630
      %v632 = vrot.slane %v630, 4
      %v634 = vshrl.u32 %v575, 16
      %v636 = vrot.slane %v634, 5
      %v637 = vshll.u32 %v575, 16
      %v639 = vrot.slane %v637, 6
      %v640 = vor.u32 %v636, %v639
      %v641 = vsel %vm583, %v632, %v640
      %v642 = vrot.slane %v640, 4
      %v644 = vshrl.u32 %v576, 16
      %v646 = vrot.slane %v644, 5
      %v647 = vshll.u32 %v576, 16
      %v649 = vrot.slane %v647, 6
      %v650 = vor.u32 %v646, %v649
      %v651 = vsel %vm583, %v642, %v650
      %v652 = vrot.slane %v650, 4
      %v654 = vshrl.u32 %v577, 16
      %v656 = vrot.slane %v654, 5
      %v657 = vshll.u32 %v577, 16
      %v659 = vrot.slane %v657, 6
      %v660 = vor.u32 %v656, %v659
      %v661 = vsel %vm583, %v652, %v660
      %v662 = vrot.slane %v660, 4
      %v664 = vshrl.u32 %v578, 16
      %v666 = vrot.slane %v664, 5
      %v667 = vshll.u32 %v578, 16
      %v669 = vrot.slane %v667, 6
      %v670 = vor.u32 %v666, %v669
      %v671 = vsel %vm583, %v662, %v670
      %v672 = vrot.slane %v670, 4
      %v674 = vshrl.u32 %v579, 16
      %v676 = vrot.slane %v674, 5
      %v677 = vshll.u32 %v579, 16
      %v679 = vrot.slane %v677, 6
      %v680 = vor.u32 %v676, %v679
      %v681 = vsel %vm583, %v672, %v680
      %v682 = vrot.slane %v680, 4
      %v684 = vshrl.u32 %v580, 16
      %v686 = vrot.slane %v684, 5
      %v687 = vshll.u32 %v580, 16
      %v689 = vrot.slane %v687, 6
      %v690 = vor.u32 %v686, %v689
      %v691 = vsel %vm583, %v682, %v690
      %692 = vrot.lane.b32.xlu0 %v601, 32
      %v693 = vpop.permute.xlu0 %692
      %694 = vrot.lane.b32.xlu0 %v611, 32
      %v695 = vpop.permute.xlu0 %694
      %696 = vrot.lane.b32.xlu0 %v621, 32
      %v697 = vpop.permute.xlu0 %696
      %698 = vrot.lane.b32.xlu0 %v631, 32
      %v699 = vpop.permute.xlu0 %698
      %700 = vrot.lane.b32.xlu0 %v641, 32
      %v701 = vpop.permute.xlu0 %700
      %702 = vrot.lane.b32.xlu0 %v651, 32
      %v703 = vpop.permute.xlu0 %702
      %704 = vrot.lane.b32.xlu0 %v661, 32
      %v705 = vpop.permute.xlu0 %704
      %706 = vrot.lane.b32.xlu0 %v671, 32
      %v707 = vpop.permute.xlu0 %706
      %708 = vrot.lane.b32.xlu0 %v681, 32
      %v709 = vpop.permute.xlu0 %708
      %710 = vrot.lane.b32.xlu0 %v691, 32
      %v711 = vpop.permute.xlu0 %710
      %vm722 = vcmask 322816
      %723 = vst.msk [vmem:[#allocation3] sm:$0xf] %vm722, %v693
      %724 = vst.msk [vmem:[#allocation3 + $0x4] sm:$0xf] %vm722, %v695
      %725 = vst.msk [vmem:[#allocation3 + $0x8] sm:$0xf] %vm722, %v697
      %726 = vst.msk [vmem:[#allocation3 + $0xc] sm:$0xf] %vm722, %v699
      %727 = vst.msk [vmem:[#allocation3 + $0x10] sm:$0xf] %vm722, %v701
      %728 = vst.msk [vmem:[#allocation3 + $0x14] sm:$0xf] %vm722, %v703
      %729 = vst.msk [vmem:[#allocation3 + $0x18] sm:$0xf] %vm722, %v705
      %730 = vst.msk [vmem:[#allocation3 + $0x1c] sm:$0xf] %vm722, %v707
      %731 = vst.msk [vmem:[#allocation3 + $0x20] sm:$0xf] %vm722, %v709
      %732 = vst.msk [vmem:[#allocation3 + $0x24] sm:$0xf] %vm722, %v711
      %v733 = vld [vmem:[%s192 + $0x4] sm:$0xc]
      %v734 = vld [vmem:[%s192 + $0x8] sm:$0xf]
      %v735 = vld [vmem:[%s192 + $0xc] sm:$0xf]
      %v736 = vld [vmem:[%s192 + $0x10] sm:$0xf]
      %v737 = vld [vmem:[%s192 + $0x14] sm:$0xf]
      %v738 = vld [vmem:[%s192 + $0x18] sm:$0xf]
      %v739 = vld [vmem:[%s192 + $0x1c] sm:$0xf]
      %v740 = vld [vmem:[%s192 + $0x20] sm:$0xf]
      %v741 = vld [vmem:[%s192 + $0x24] sm:$0xf]
      %v742 = vld [vmem:[%s192 + $0x28] sm:$0xf]
      %v743 = vld [vmem:[%s192 + $0x2c] sm:$0x3]
      %vm755 = vcmask 1041408
      %vm756 = vcmask 1045508
      %vm757 = vmor %vm755, %vm756
      %v758 = vrot.slane %v733, 6
      %v759 = vrot.slane %v758, 4
      %v760 = vrot.slane %v734, 6
      %v761 = vsel %vm757, %v759, %v760
      %v762 = vrot.slane %v760, 4
      %v763 = vrot.slane %v735, 6
      %v764 = vsel %vm757, %v762, %v763
      %v765 = vrot.slane %v763, 4
      %v766 = vrot.slane %v736, 6
      %v767 = vsel %vm757, %v765, %v766
      %v768 = vrot.slane %v766, 4
      %v769 = vrot.slane %v737, 6
      %v770 = vsel %vm757, %v768, %v769
      %v771 = vrot.slane %v769, 4
      %v772 = vrot.slane %v738, 6
      %v773 = vsel %vm757, %v771, %v772
      %v774 = vrot.slane %v772, 4
      %v775 = vrot.slane %v739, 6
      %v776 = vsel %vm757, %v774, %v775
      %v777 = vrot.slane %v775, 4
      %v778 = vrot.slane %v740, 6
      %v779 = vsel %vm757, %v777, %v778
      %v780 = vrot.slane %v778, 4
      %v781 = vrot.slane %v741, 6
      %v782 = vsel %vm757, %v780, %v781
      %v783 = vrot.slane %v781, 4
      %v784 = vrot.slane %v742, 6
      %v785 = vsel %vm757, %v783, %v784
      %v786 = vrot.slane %v784, 4
      %v787 = vrot.slane %v743, 6
      %v788 = vsel %vm757, %v786, %v787
      %789 = vrot.lane.b32.xlu0 %v761, 40
      %v790 = vpop.permute.xlu0 %789
      %791 = vrot.lane.b32.xlu0 %v764, 40
      %v792 = vpop.permute.xlu0 %791
      %793 = vrot.lane.b32.xlu0 %v767, 40
      %v794 = vpop.permute.xlu0 %793
      %795 = vrot.lane.b32.xlu0 %v770, 40
      %v796 = vpop.permute.xlu0 %795
      %797 = vrot.lane.b32.xlu0 %v773, 40
      %v798 = vpop.permute.xlu0 %797
      %799 = vrot.lane.b32.xlu0 %v776, 40
      %v800 = vpop.permute.xlu0 %799
      %801 = vrot.lane.b32.xlu0 %v779, 40
      %v802 = vpop.permute.xlu0 %801
      %803 = vrot.lane.b32.xlu0 %v782, 40
      %v804 = vpop.permute.xlu0 %803
      %805 = vrot.lane.b32.xlu0 %v785, 40
      %v806 = vpop.permute.xlu0 %805
      %807 = vrot.lane.b32.xlu0 %v788, 40
      %v808 = vpop.permute.xlu0 %807
      %vm819 = vcmask 388416
      %820 = vst.msk [vmem:[#allocation3] sm:$0xf] %vm819, %v790
      %821 = vst.msk [vmem:[#allocation3 + $0x4] sm:$0xf] %vm819, %v792
      %822 = vst.msk [vmem:[#allocation3 + $0x8] sm:$0xf] %vm819, %v794
      %823 = vst.msk [vmem:[#allocation3 + $0xc] sm:$0xf] %vm819, %v796
      %824 = vst.msk [vmem:[#allocation3 + $0x10] sm:$0xf] %vm819, %v798
      %825 = vst.msk [vmem:[#allocation3 + $0x14] sm:$0xf] %vm819, %v800
      %826 = vst.msk [vmem:[#allocation3 + $0x18] sm:$0xf] %vm819, %v802
      %827 = vst.msk [vmem:[#allocation3 + $0x1c] sm:$0xf] %vm819, %v804
      %828 = vst.msk [vmem:[#allocation3 + $0x20] sm:$0xf] %vm819, %v806
      %829 = vst.msk [vmem:[#allocation3 + $0x24] sm:$0xf] %vm819, %v808
      %v830 = vld [vmem:[%s192 + $0x8] sm:$0xc]
      %v831 = vld [vmem:[%s192 + $0xc] sm:$0xf]
      %v832 = vld [vmem:[%s192 + $0x10] sm:$0xf]
      %v833 = vld [vmem:[%s192 + $0x14] sm:$0xf]
      %v834 = vld [vmem:[%s192 + $0x18] sm:$0xf]
      %v835 = vld [vmem:[%s192 + $0x1c] sm:$0xf]
      %v836 = vld [vmem:[%s192 + $0x20] sm:$0xf]
      %v837 = vld [vmem:[%s192 + $0x24] sm:$0xf]
      %v838 = vld [vmem:[%s192 + $0x28] sm:$0xf]
      %v839 = vld [vmem:[%s192 + $0x2c] sm:$0xf]
      %v840 = vld [vmem:[%s192 + $0x30] sm:$0x3]
      %v852 = vrot.slane %v830, 6
      %v853 = vrot.slane %v852, 4
      %v854 = vrot.slane %v831, 6
      %v855 = vsel %vm757, %v853, %v854
      %v856 = vrot.slane %v854, 4
      %v857 = vrot.slane %v832, 6
      %v858 = vsel %vm757, %v856, %v857
      %v859 = vrot.slane %v857, 4
      %v860 = vrot.slane %v833, 6
      %v861 = vsel %vm757, %v859, %v860
      %v862 = vrot.slane %v860, 4
      %v863 = vrot.slane %v834, 6
      %v864 = vsel %vm757, %v862, %v863
      %v865 = vrot.slane %v863, 4
      %v866 = vrot.slane %v835, 6
      %v867 = vsel %vm757, %v865, %v866
      %v868 = vrot.slane %v866, 4
      %v869 = vrot.slane %v836, 6
      %v870 = vsel %vm757, %v868, %v869
      %v871 = vrot.slane %v869, 4
      %v872 = vrot.slane %v837, 6
      %v873 = vsel %vm757, %v871, %v872
      %v874 = vrot.slane %v872, 4
      %v875 = vrot.slane %v838, 6
      %v876 = vsel %vm757, %v874, %v875
      %v877 = vrot.slane %v875, 4
      %v878 = vrot.slane %v839, 6
      %v879 = vsel %vm757, %v877, %v878
      %v880 = vrot.slane %v878, 4
      %v881 = vrot.slane %v840, 6
      %v882 = vsel %vm757, %v880, %v881
      %883 = vrot.lane.b32.xlu0 %v855, 48
      %v884 = vpop.permute.xlu0 %883
      %885 = vrot.lane.b32.xlu0 %v858, 48
      %v886 = vpop.permute.xlu0 %885
      %887 = vrot.lane.b32.xlu0 %v861, 48
      %v888 = vpop.permute.xlu0 %887
      %889 = vrot.lane.b32.xlu0 %v864, 48
      %v890 = vpop.permute.xlu0 %889
      %891 = vrot.lane.b32.xlu0 %v867, 48
      %v892 = vpop.permute.xlu0 %891
      %893 = vrot.lane.b32.xlu0 %v870, 48
      %v894 = vpop.permute.xlu0 %893
      %895 = vrot.lane.b32.xlu0 %v873, 48
      %v896 = vpop.permute.xlu0 %895
      %897 = vrot.lane.b32.xlu0 %v876, 48
      %v898 = vpop.permute.xlu0 %897
      %899 = vrot.lane.b32.xlu0 %v879, 48
      %v900 = vpop.permute.xlu0 %899
      %901 = vrot.lane.b32.xlu0 %v882, 48
      %v902 = vpop.permute.xlu0 %901
      %vm913 = vcmask 454016
      %914 = vst.msk [vmem:[#allocation3] sm:$0xf] %vm913, %v884
      %915 = vst.msk [vmem:[#allocation3 + $0x4] sm:$0xf] %vm913, %v886
      %916 = vst.msk [vmem:[#allocation3 + $0x8] sm:$0xf] %vm913, %v888
      %917 = vst.msk [vmem:[#allocation3 + $0xc] sm:$0xf] %vm913, %v890
      %918 = vst.msk [vmem:[#allocation3 + $0x10] sm:$0xf] %vm913, %v892
      %919 = vst.msk [vmem:[#allocation3 + $0x14] sm:$0xf] %vm913, %v894
      %920 = vst.msk [vmem:[#allocation3 + $0x18] sm:$0xf] %vm913, %v896
      %921 = vst.msk [vmem:[#allocation3 + $0x1c] sm:$0xf] %vm913, %v898
      %922 = vst.msk [vmem:[#allocation3 + $0x20] sm:$0xf] %vm913, %v900
      %923 = vst.msk [vmem:[#allocation3 + $0x24] sm:$0xf] %vm913, %v902
      %v924 = vld [vmem:[%s192 + $0x8] sm:$0xc]
      %v925 = vld [vmem:[%s192 + $0xc] sm:$0xf]
      %v926 = vld [vmem:[%s192 + $0x10] sm:$0xf]
      %v927 = vld [vmem:[%s192 + $0x14] sm:$0xf]
      %v928 = vld [vmem:[%s192 + $0x18] sm:$0xf]
      %v929 = vld [vmem:[%s192 + $0x1c] sm:$0xf]
      %v930 = vld [vmem:[%s192 + $0x20] sm:$0xf]
      %v931 = vld [vmem:[%s192 + $0x24] sm:$0xf]
      %v932 = vld [vmem:[%s192 + $0x28] sm:$0xf]
      %v933 = vld [vmem:[%s192 + $0x2c] sm:$0xf]
      %v934 = vld [vmem:[%s192 + $0x30] sm:$0x7]
      %vm935 = vsmask.f32 1280
      %vm936 = vsmask.f32 5392
      %vm937 = vmor %vm935, %vm936
      %v939 = vshrl.u32 %v924, 16
      %v941 = vrot.slane %v939, 6
      %v942 = vshll.u32 %v924, 16
      %v944 = vrot.slane %v942, 7
      %v945 = vor.u32 %v941, %v944
      %v946 = vrot.slane %v945, 4
      %v948 = vshrl.u32 %v925, 16
      %v950 = vrot.slane %v948, 6
      %v951 = vshll.u32 %v925, 16
      %v953 = vrot.slane %v951, 7
      %v954 = vor.u32 %v950, %v953
      %v955 = vsel %vm937, %v946, %v954
      %v956 = vrot.slane %v954, 4
      %v958 = vshrl.u32 %v926, 16
      %v960 = vrot.slane %v958, 6
      %v961 = vshll.u32 %v926, 16
      %v963 = vrot.slane %v961, 7
      %v964 = vor.u32 %v960, %v963
      %v965 = vsel %vm937, %v956, %v964
      %v966 = vrot.slane %v964, 4
      %v968 = vshrl.u32 %v927, 16
      %v970 = vrot.slane %v968, 6
      %v971 = vshll.u32 %v927, 16
      %v973 = vrot.slane %v971, 7
      %v974 = vor.u32 %v970, %v973
      %v975 = vsel %vm937, %v966, %v974
      %v976 = vrot.slane %v974, 4
      %v978 = vshrl.u32 %v928, 16
      %v980 = vrot.slane %v978, 6
      %v981 = vshll.u32 %v928, 16
      %v983 = vrot.slane %v981, 7
      %v984 = vor.u32 %v980, %v983
      %v985 = vsel %vm937, %v976, %v984
      %v986 = vrot.slane %v984, 4
      %v988 = vshrl.u32 %v929, 16
      %v990 = vrot.slane %v988, 6
      %v991 = vshll.u32 %v929, 16
      %v993 = vrot.slane %v991, 7
      %v994 = vor.u32 %v990, %v993
      %v995 = vsel %vm937, %v986, %v994
      %v996 = vrot.slane %v994, 4
      %v998 = vshrl.u32 %v930, 16
      %v1000 = vrot.slane %v998, 6
      %v1001 = vshll.u32 %v930, 16
      %v1003 = vrot.slane %v1001, 7
      %v1004 = vor.u32 %v1000, %v1003
      %v1005 = vsel %vm937, %v996, %v1004
      %v1006 = vrot.slane %v1004, 4
      %v1008 = vshrl.u32 %v931, 16
      %v1010 = vrot.slane %v1008, 6
      %v1011 = vshll.u32 %v931, 16
      %v1013 = vrot.slane %v1011, 7
      %v1014 = vor.u32 %v1010, %v1013
      %v1015 = vsel %vm937, %v1006, %v1014
      %v1016 = vrot.slane %v1014, 4
      %v1018 = vshrl.u32 %v932, 16
      %v1020 = vrot.slane %v1018, 6
      %v1021 = vshll.u32 %v932, 16
      %v1023 = vrot.slane %v1021, 7
      %v1024 = vor.u32 %v1020, %v1023
      %v1025 = vsel %vm937, %v1016, %v1024
      %v1026 = vrot.slane %v1024, 4
      %v1028 = vshrl.u32 %v933, 16
      %v1030 = vrot.slane %v1028, 6
      %v1031 = vshll.u32 %v933, 16
      %v1033 = vrot.slane %v1031, 7
      %v1034 = vor.u32 %v1030, %v1033
      %v1035 = vsel %vm937, %v1026, %v1034
      %v1036 = vrot.slane %v1034, 4
      %v1038 = vshrl.u32 %v934, 16
      %v1040 = vrot.slane %v1038, 6
      %v1041 = vshll.u32 %v934, 16
      %v1043 = vrot.slane %v1041, 7
      %v1044 = vor.u32 %v1040, %v1043
      %v1045 = vsel %vm937, %v1036, %v1044
      %1046 = vrot.lane.b32.xlu0 %v955, 56
      %v1047 = vpop.permute.xlu0 %1046
      %1048 = vrot.lane.b32.xlu0 %v965, 56
      %v1049 = vpop.permute.xlu0 %1048
      %1050 = vrot.lane.b32.xlu0 %v975, 56
      %v1051 = vpop.permute.xlu0 %1050
      %1052 = vrot.lane.b32.xlu0 %v985, 56
      %v1053 = vpop.permute.xlu0 %1052
      %1054 = vrot.lane.b32.xlu0 %v995, 56
      %v1055 = vpop.permute.xlu0 %1054
      %1056 = vrot.lane.b32.xlu0 %v1005, 56
      %v1057 = vpop.permute.xlu0 %1056
      %1058 = vrot.lane.b32.xlu0 %v1015, 56
      %v1059 = vpop.permute.xlu0 %1058
      %1060 = vrot.lane.b32.xlu0 %v1025, 56
      %v1061 = vpop.permute.xlu0 %1060
      %1062 = vrot.lane.b32.xlu0 %v1035, 56
      %v1063 = vpop.permute.xlu0 %1062
      %1064 = vrot.lane.b32.xlu0 %v1045, 56
      %v1065 = vpop.permute.xlu0 %1064
      %vm1076 = vcmask 519616
      %1077 = vst.msk [vmem:[#allocation3] sm:$0xf] %vm1076, %v1047
      %1078 = vst.msk [vmem:[#allocation3 + $0x4] sm:$0xf] %vm1076, %v1049
      %1079 = vst.msk [vmem:[#allocation3 + $0x8] sm:$0xf] %vm1076, %v1051
      %1080 = vst.msk [vmem:[#allocation3 + $0xc] sm:$0xf] %vm1076, %v1053
      %1081 = vst.msk [vmem:[#allocation3 + $0x10] sm:$0xf] %vm1076, %v1055
      %1082 = vst.msk [vmem:[#allocation3 + $0x14] sm:$0xf] %vm1076, %v1057
      %1083 = vst.msk [vmem:[#allocation3 + $0x18] sm:$0xf] %vm1076, %v1059
      %1084 = vst.msk [vmem:[#allocation3 + $0x1c] sm:$0xf] %vm1076, %v1061
      %1085 = vst.msk [vmem:[#allocation3 + $0x20] sm:$0xf] %vm1076, %v1063
      %1086 = vst.msk [vmem:[#allocation3 + $0x24] sm:$0xf] %vm1076, %v1065
      %v1087 = vld [vmem:[%s192 + $0x8] sm:$0x8]
      %v1088 = vld [vmem:[%s192 + $0xc] sm:$0xf]
      %v1089 = vld [vmem:[%s192 + $0x10] sm:$0xf]
      %v1090 = vld [vmem:[%s192 + $0x14] sm:$0xf]
      %v1091 = vld [vmem:[%s192 + $0x18] sm:$0xf]
      %v1092 = vld [vmem:[%s192 + $0x1c] sm:$0xf]
      %v1093 = vld [vmem:[%s192 + $0x20] sm:$0xf]
      %v1094 = vld [vmem:[%s192 + $0x24] sm:$0xf]
      %v1095 = vld [vmem:[%s192 + $0x28] sm:$0xf]
      %v1096 = vld [vmem:[%s192 + $0x2c] sm:$0xf]
      %v1097 = vld [vmem:[%s192 + $0x30] sm:$0x7]
      %vm1109 = vcmask 1040384
      %vm1110 = vcmask 1044484
      %vm1111 = vmor %vm1109, %vm1110
      %v1112 = vrot.slane %v1087, 7
      %v1113 = vrot.slane %v1112, 4
      %v1114 = vrot.slane %v1088, 7
      %v1115 = vsel %vm1111, %v1113, %v1114
      %v1116 = vrot.slane %v1114, 4
      %v1117 = vrot.slane %v1089, 7
      %v1118 = vsel %vm1111, %v1116, %v1117
      %v1119 = vrot.slane %v1117, 4
      %v1120 = vrot.slane %v1090, 7
      %v1121 = vsel %vm1111, %v1119, %v1120
      %v1122 = vrot.slane %v1120, 4
      %v1123 = vrot.slane %v1091, 7
      %v1124 = vsel %vm1111, %v1122, %v1123
      %v1125 = vrot.slane %v1123, 4
      %v1126 = vrot.slane %v1092, 7
      %v1127 = vsel %vm1111, %v1125, %v1126
      %v1128 = vrot.slane %v1126, 4
      %v1129 = vrot.slane %v1093, 7
      %v1130 = vsel %vm1111, %v1128, %v1129
      %v1131 = vrot.slane %v1129, 4
      %v1132 = vrot.slane %v1094, 7
      %v1133 = vsel %vm1111, %v1131, %v1132
      %v1134 = vrot.slane %v1132, 4
      %v1135 = vrot.slane %v1095, 7
      %v1136 = vsel %vm1111, %v1134, %v1135
      %v1137 = vrot.slane %v1135, 4
      %v1138 = vrot.slane %v1096, 7
      %v1139 = vsel %vm1111, %v1137, %v1138
      %v1140 = vrot.slane %v1138, 4
      %v1141 = vrot.slane %v1097, 7
      %v1142 = vsel %vm1111, %v1140, %v1141
      %1143 = vrot.lane.b32.xlu0 %v1115, 64
      %v1144 = vpop.permute.xlu0 %1143
      %1145 = vrot.lane.b32.xlu0 %v1118, 64
      %v1146 = vpop.permute.xlu0 %1145
      %1147 = vrot.lane.b32.xlu0 %v1121, 64
      %v1148 = vpop.permute.xlu0 %1147
      %1149 = vrot.lane.b32.xlu0 %v1124, 64
      %v1150 = vpop.permute.xlu0 %1149
      %1151 = vrot.lane.b32.xlu0 %v1127, 64
      %v1152 = vpop.permute.xlu0 %1151
      %1153 = vrot.lane.b32.xlu0 %v1130, 64
      %v1154 = vpop.permute.xlu0 %1153
      %1155 = vrot.lane.b32.xlu0 %v1133, 64
      %v1156 = vpop.permute.xlu0 %1155
      %1157 = vrot.lane.b32.xlu0 %v1136, 64
      %v1158 = vpop.permute.xlu0 %1157
      %1159 = vrot.lane.b32.xlu0 %v1139, 64
      %v1160 = vpop.permute.xlu0 %1159
      %1161 = vrot.lane.b32.xlu0 %v1142, 64
      %v1162 = vpop.permute.xlu0 %1161
      %vm1173 = vcmask 585216
      %1174 = vst.msk [vmem:[#allocation3] sm:$0xf] %vm1173, %v1144
      %1175 = vst.msk [vmem:[#allocation3 + $0x4] sm:$0xf] %vm1173, %v1146
      %1176 = vst.msk [vmem:[#allocation3 + $0x8] sm:$0xf] %vm1173, %v1148
      %1177 = vst.msk [vmem:[#allocation3 + $0xc] sm:$0xf] %vm1173, %v1150
      %1178 = vst.msk [vmem:[#allocation3 + $0x10] sm:$0xf] %vm1173, %v1152
      %1179 = vst.msk [vmem:[#allocation3 + $0x14] sm:$0xf] %vm1173, %v1154
      %1180 = vst.msk [vmem:[#allocation3 + $0x18] sm:$0xf] %vm1173, %v1156
      %1181 = vst.msk [vmem:[#allocation3 + $0x1c] sm:$0xf] %vm1173, %v1158
      %1182 = vst.msk [vmem:[#allocation3 + $0x20] sm:$0xf] %vm1173, %v1160
      %1183 = vst.msk [vmem:[#allocation3 + $0x24] sm:$0xf] %vm1173, %v1162
      %v1184 = vld [vmem:[#allocation3] sm:$0xf]
      %v1185 = vld [vmem:[#allocation3 + $0x4] sm:$0xf]
      %v1186 = vld [vmem:[#allocation3 + $0x8] sm:$0xf]
      %v1187 = vld [vmem:[#allocation3 + $0xc] sm:$0xf]
      %v1188 = vld [vmem:[#allocation3 + $0x10] sm:$0xf]
      %v1189 = vld [vmem:[#allocation3 + $0x14] sm:$0xf]
      %v1190 = vld [vmem:[#allocation3 + $0x18] sm:$0xf]
      %v1191 = vld [vmem:[#allocation3 + $0x1c] sm:$0xf]
      %v1192 = vld [vmem:[#allocation3 + $0x20] sm:$0xf]
      %v1193 = vld [vmem:[#allocation3 + $0x24] sm:$0xf]
      %v1194 = vld [vmem:[%s1] sm:$0xf]
      %v1195 = vld [vmem:[%s1 + $0x4] sm:$0xf]
      %v1196 = vld [vmem:[%s1 + $0x8] sm:$0xf]
      %v1197 = vld [vmem:[%s1 + $0xc] sm:$0xf]
      %v1198 = vld [vmem:[%s1 + $0x10] sm:$0xf]
      %v1199 = vld [vmem:[%s1 + $0x14] sm:$0xf]
      %v1200 = vld [vmem:[%s1 + $0x18] sm:$0xf]
      %v1201 = vld [vmem:[%s1 + $0x1c] sm:$0xf]
      %v1202 = vld [vmem:[%s1 + $0x20] sm:$0xf]
      %v1213 = vunpack.c.l.b16 %v1184
      %v1214 = vunpack.c.l.b16 %v1185
      %v1215 = vunpack.c.l.b16 %v1186
      %v1216 = vunpack.c.l.b16 %v1187
      %v1217 = vunpack.c.l.b16 %v1188
      %v1218 = vunpack.c.l.b16 %v1189
      %v1219 = vunpack.c.l.b16 %v1190
      %v1220 = vunpack.c.l.b16 %v1191
      %v1221 = vunpack.c.l.b16 %v1192
      %v1222 = vunpack.c.l.b16 %v1193
      %v1223 = vpack.c.b16 %v1214, %v1213
      %v1224 = vpack.c.b16 %v1216, %v1215
      %v1225 = vpack.c.b16 %v1218, %v1217
      %v1226 = vpack.c.b16 %v1220, %v1219
      %v1227 = vpack.c.b16 %v1222, %v1221
      %v1237 = vunpack.c.l.b16 %v1194
      %v1238 = vunpack.c.l.b16 %v1195
      %v1239 = vunpack.c.l.b16 %v1196
      %v1240 = vunpack.c.l.b16 %v1197
      %v1241 = vunpack.c.l.b16 %v1198
      %v1242 = vunpack.c.l.b16 %v1199
      %v1243 = vunpack.c.l.b16 %v1200
      %v1244 = vunpack.c.l.b16 %v1201
      %v1245 = vunpack.c.l.b16 %v1202
      %v1246 = vpack.c.b16 %v1238, %v1237
      %v1247 = vpack.c.b16 %v1240, %v1239
      %v1248 = vpack.c.b16 %v1242, %v1241
      %v1249 = vpack.c.b16 %v1244, %v1243
      %v1250 = vpack.c.b16 %v1245, %v1245
      %vm1255 = vcmask 588800
      %v1257 = vsel %vm1255, %v1223, 0
      %v1260 = vsel %vm1255, %v1224, 0
      %v1263 = vsel %vm1255, %v1225, 0
      %v1266 = vsel %vm1255, %v1226, 0
      %v1269 = vsel %vm1255, %v1227, 0
      %vm1271 = vcmask 1043456
      %v1273 = vsel %vm1271, %v1250, 0
      %1275 = vmatprep.subr.bf16.mxu0 0
      %1276 = vmatpush1.bf16.msra.mxu0 0
      %1277 = vmatprep.subr.bf16.mxu0 0
      %1278 = vmatpush1.bf16.msra.mxu0 0
      %1279 = vmatprep.subr.bf16.mxu0 0
      %1280 = vmatpush1.bf16.msra.mxu0 0
      %1281 = vmatprep.subr.bf16.mxu0 0
      %1282 = vmatpush1.bf16.msra.mxu0 %v1273
      %1283 = vmatprep.subr.bf16.mxu0 0
      %1284 = vmatpush1.bf16.msra.mxu0 %v1249
      %1285 = vmatprep.subr.bf16.mxu0 0
      %1286 = vmatpush1.bf16.msra.mxu0 %v1248
      %1287 = vmatprep.subr.bf16.mxu0 0
      %1288 = vmatpush1.bf16.msra.mxu0 %v1247
      %1289 = vmatprep.subr.bf16.mxu0 0
      %1290 = vmatpush1.bf16.msra.mxu0 %v1246
      %1291 = vmatprep.subr.bf16.mxu0 0
      %1292 = vmatpush2.bf16.msra.mxu0 0
      %1293 = vmatprep.subr.bf16.mxu0 0
      %1294 = vmatpush2.bf16.msra.mxu0 0
      %1295 = vmatprep.subr.bf16.mxu0 0
      %1296 = vmatpush2.bf16.msra.mxu0 0
      %1297 = vmatprep.subr.bf16.mxu0 0
      %1298 = vmatpush2.bf16.msra.mxu0 0
      %1299 = vmatprep.subr.bf16.mxu0 0
      %1300 = vmatpush2.bf16.msra.mxu0 0
      %1301 = vmatprep.subr.bf16.mxu0 0
      %1302 = vmatpush2.bf16.msra.mxu0 0
      %1303 = vmatprep.subr.bf16.mxu0 0
      %1304 = vmatpush2.bf16.msra.mxu0 0
      %1305 = vmatprep.subr.bf16.mxu0 0
      %1306 = vmatpush2.bf16.msra.mxu0 0
      %1307 = vmatprep.mubr.bf16.mxu0 0
      %1308 = vmatmul.mubr.bf16.gmra.mxu0 %v1257
      %v1309 = vpop.f32.mrf.mxu0
      %v1310 = vadd.f32 0.0, %v1309
      %v1311 = vpop.f32.mrf.mxu0
      %v1312 = vpop.f32.mrf.mxu0
      %v1313 = vadd.f32 0.0, %v1312
      %v1314 = vpop.f32.mrf.mxu0
      %1315 = vmatprep.mubr.bf16.mxu0 0
      %1316 = vmatmul.mubr.bf16.gmra.mxu0 %v1260
      %v1317 = vpop.f32.mrf.mxu0
      %v1318 = vadd.f32 0.0, %v1317
      %v1319 = vpop.f32.mrf.mxu0
      %v1320 = vpop.f32.mrf.mxu0
      %v1321 = vadd.f32 0.0, %v1320
      %v1322 = vpop.f32.mrf.mxu0
      %1323 = vmatprep.mubr.bf16.mxu0 0
      %1324 = vmatmul.mubr.bf16.gmra.mxu0 %v1263
      %v1325 = vpop.f32.mrf.mxu0
      %v1326 = vadd.f32 0.0, %v1325
      %v1327 = vpop.f32.mrf.mxu0
      %v1328 = vpop.f32.mrf.mxu0
      %v1329 = vadd.f32 0.0, %v1328
      %v1330 = vpop.f32.mrf.mxu0
      %1331 = vmatprep.mubr.bf16.mxu0 0
      %1332 = vmatmul.mubr.bf16.gmra.mxu0 %v1266
      %v1333 = vpop.f32.mrf.mxu0
      %v1334 = vadd.f32 0.0, %v1333
      %v1335 = vpop.f32.mrf.mxu0
      %v1336 = vpop.f32.mrf.mxu0
      %v1337 = vadd.f32 0.0, %v1336
      %v1338 = vpop.f32.mrf.mxu0
      %1339 = vmatprep.mubr.bf16.mxu0 0
      %1340 = vmatmul.mubr.bf16.gmra.mxu0 %v1269
      %v1341 = vpop.f32.mrf.mxu0
      %v1342 = vadd.f32 0.0, %v1341
      %v1343 = vpop.f32.mrf.mxu0
      %v1344 = vpop.f32.mrf.mxu0
      %v1345 = vadd.f32 0.0, %v1344
      %v1346 = vpop.f32.mrf.mxu0
      %1347 = vdwg.mxu0
      %vm1348 = vcmask 64512
      %1349 = vst.msk [vmem:[#allocation2] sm:$0xff] %vm1348, %v1310
      %1350 = vst.msk [vmem:[#allocation2 + $0x8] sm:$0xff] %vm1348, %v1313
      %1351 = vst.msk [vmem:[#allocation2 + $0x10] sm:$0xff] %vm1348, %v1318
      %1352 = vst.msk [vmem:[#allocation2 + $0x18] sm:$0xff] %vm1348, %v1321
      %1353 = vst.msk [vmem:[#allocation2 + $0x20] sm:$0xff] %vm1348, %v1326
      %1354 = vst.msk [vmem:[#allocation2 + $0x28] sm:$0xff] %vm1348, %v1329
      %1355 = vst.msk [vmem:[#allocation2 + $0x30] sm:$0xff] %vm1348, %v1334
      %1356 = vst.msk [vmem:[#allocation2 + $0x38] sm:$0xff] %vm1348, %v1337
      %1357 = vst.msk [vmem:[#allocation2 + $0x40] sm:$0xff] %vm1348, %v1342
      %1358 = vst.msk [vmem:[#allocation2 + $0x48] sm:$0xff] %vm1348, %v1345
      %v1359 = vld [vmem:[#allocation2] sm:$0xff]
      %v1360 = vld [vmem:[#allocation2 + $0x8] sm:$0xff]
      %v1361 = vld [vmem:[#allocation2 + $0x10] sm:$0xff]
      %v1362 = vld [vmem:[#allocation2 + $0x18] sm:$0xff]
      %v1363 = vld [vmem:[#allocation2 + $0x20] sm:$0xff]
      %v1364 = vld [vmem:[#allocation2 + $0x28] sm:$0xff]
      %v1365 = vld [vmem:[#allocation2 + $0x30] sm:$0xff]
      %v1366 = vld [vmem:[#allocation2 + $0x38] sm:$0xff]
      %v1367 = vld [vmem:[#allocation2 + $0x40] sm:$0xff]
      %v1368 = vld [vmem:[#allocation2 + $0x48] sm:$0xff]
      %v1369 = vld [vmem:[%s2] sm:$0x1]
      %v1371 = vlaneseq
      %v1372 = vshrl.u32 %v1371, 7
      %v1373 = vsub.s32 0, %v1372
      %v1374 = vrot.slane %v1369, %v1373
      %v1376 = vmul.f32 %v1359, %v1374
      %v1377 = vmul.f32 %v1360, %v1374
      %v1378 = vmul.f32 %v1361, %v1374
      %v1379 = vmul.f32 %v1362, %v1374
      %v1380 = vmul.f32 %v1363, %v1374
      %v1381 = vmul.f32 %v1364, %v1374
      %v1382 = vmul.f32 %v1365, %v1374
      %v1383 = vmul.f32 %v1366, %v1374
      %v1384 = vmul.f32 %v1367, %v1374
      %v1385 = vmul.f32 %v1368, %v1374
      %v1386 = vld [vmem:[%s3] sm:$0x1]
      %v1388 = vlaneseq
      %v1389 = vshrl.u32 %v1388, 7
      %v1390 = vsub.s32 0, %v1389
      %v1391 = vrot.slane %v1386, %v1390
      %v1393 = vadd.f32 %v1376, %v1391
      %v1394 = vadd.f32 %v1377, %v1391
      %v1395 = vadd.f32 %v1378, %v1391
      %v1396 = vadd.f32 %v1379, %v1391
      %v1397 = vadd.f32 %v1380, %v1391
      %v1398 = vadd.f32 %v1381, %v1391
      %v1399 = vadd.f32 %v1382, %v1391
      %v1400 = vadd.f32 %v1383, %v1391
      %v1401 = vadd.f32 %v1384, %v1391
      %v1402 = vadd.f32 %v1385, %v1391
      %v1403 = vmax.f32 %v1393, 0.0
      %v1404 = vmax.f32 %v1394, 0.0
      %v1405 = vmax.f32 %v1395, 0.0
      %v1406 = vmax.f32 %v1396, 0.0
      %v1407 = vmax.f32 %v1397, 0.0
      %v1408 = vmax.f32 %v1398, 0.0
      %v1409 = vmax.f32 %v1399, 0.0
      %v1410 = vmax.f32 %v1400, 0.0
      %v1411 = vmax.f32 %v1401, 0.0
      %v1412 = vmax.f32 %v1402, 0.0
      %1413 = vst.msk [vmem:[%s197] sm:$0xff] %vm1348, %v1403
      %1414 = vst.msk [vmem:[%s197 + $0x8] sm:$0xff] %vm1348, %v1404
      %1415 = vst.msk [vmem:[%s197 + $0x10] sm:$0xff] %vm1348, %v1405
      %1416 = vst.msk [vmem:[%s197 + $0x18] sm:$0xff] %vm1348, %v1406
      %1417 = vst.msk [vmem:[%s197 + $0x20] sm:$0xff] %vm1348, %v1407
      %1418 = vst.msk [vmem:[%s197 + $0x28] sm:$0xff] %vm1348, %v1408
      %1419 = vst.msk [vmem:[%s197 + $0x30] sm:$0xff] %vm1348, %v1409
      %1420 = vst.msk [vmem:[%s197 + $0x38] sm:$0xff] %vm1348, %v1410
      %1421 = vst.msk [vmem:[%s197 + $0x40] sm:$0xff] %vm1348, %v1411
      %1422 = vst.msk [vmem:[%s197 + $0x48] sm:$0xff] %vm1348, %v1412
      %p1423 = scmp.lt.s32.totalorder %s15, 1
      %s1424 = scalar_select %p1423, %s15, 1
      %s1425 = smul.addr %s1424, 10
      %s1426 = smul.addr %s1425, 8
      %s1427 = scalar_lea.vmem %s4, %s1426
      // Predicated region
      $region37: #{down_forward.7} parent=35 // pred_check
        %p1428 = pneg %p122
      $region38: #{down_forward.7} parent=35 // pred_check_branch
        %1430 = sbr.rel (%p1428) target = $region40
      $region39: #{down_forward.7} parent=35 // pred_region
        _
      $region40: #{down_forward.7} parent=35 // pred_fallthru
        _
    $region36: #{down_forward.7} parent=5 // pred_fallthru
      _
    %p1431 = scmp.le.s32.totalorder 2, %s10
    // Predicated region
    $region41: #{down_forward.7} parent=5 // pred_check
      %p1432 = pneg %p1431
    $region42: #{down_forward.7} parent=5 // pred_check_branch
      %1434 = sbr.rel (%p1432) target = $region44
    $region43: #{down_forward.7} parent=5 // pred_region
      %s1435 = ssub.s32 %s10, 2
      // Predicated region
      $region45: #{down_forward.7} parent=43 // pred_check
        %p1436 = pneg %p128
      $region46: #{down_forward.7} parent=43 // pred_check_branch
        %1438 = sbr.rel (%p1436) target = $region48
      $region47: #{down_forward.7} parent=43 // pred_region
        %p1439 = scmp.lt.s32.totalorder %s16, 1
        %s1440 = scalar_select %p1439, %s16, 1
        %s1441 = smul.addr %s1440, 10
        %s1442 = smul.addr %s1441, 8
        %s1443 = scalar_lea.vmem %s4, %s1442
      $region48: #{down_forward.7} parent=43 // pred_fallthru
        _
    $region44: #{down_forward.7} parent=5 // pred_fallthru
      _
  $region6: #{down_forward.7} parent=0 // loop_footer
    %s14 = sadd.s32 1, %s10
  $region7: #{down_forward.7} parent=0 // loop_footer_branch
    %9 = sbr.rel target = $region3
  $region8: #{down_forward.7} parent=0 // loop_exit
    _

// kernel: down_forward.6
$region0: #{down_forward.6}
  #allocation0 [shape = 'u32[]', space=smem, size = 0x4, offset = 0x4, fixed_abs, tag = 'smem constant byte address 0x4 - core index']
  #allocation1 [shape = 'u32[144,128]{1,0:T(1,128)}', space=vmem, size = 0x12000, scoped, tag = 'internal scratch']
  #allocation2 [shape = 'f32[80,8]{1,0:T(8,128)}', space=vmem, size = 0xa000, scoped, tag = 'scratch operand']
  #allocation3 [shape = 'bf16[80,72]{1,0:T(8,128)(2,1)}', space=vmem, size = 0x5000, scoped, tag = 'scratch operand']
  %s0 = inlined_call_operand.vmem [shape: bf16[2,102,8], index: 0, kind: input, shape index: {}]
  %s1 = inlined_call_operand.vmem [shape: bf16[72,8], index: 1, kind: input, shape index: {}]
  %s2 = inlined_call_operand.vmem [shape: f32[80,1], index: 2, kind: input, shape index: {}]
  %s3 = inlined_call_operand.vmem [shape: f32[2,2,8], index: 3, kind: output, shape index: {}]
  %s4 = sld [smem:[#allocation0]]
  $region45: #{down_forward.6} parent=0
    _
  %s6 = ssub.s32 1, %s4
  %s7 = scalar_select 0, %s6, %s4
  loop: start=0, step=1, limit=4
  $region2: #{down_forward.6} parent=0 // loop_pre_header
    _
  $region3: #{down_forward.6} parent=0 // loop_header
    %s9 = sphi 0, %s13
    %p10 = scmp.ge.s32.totalorder %s9, 4
    %s19 = sphi 0, %s21
    %s22 = sphi 0, %s19
    %s23 = sphi 0, %s22
    %s39 = sphi 0, %s23
    %s43 = sphi 0, %s43
    %s45 = sphi 0, %s43
    %s46 = sphi 0, %s45
    %s60 = sphi 0, %s46
    %s64 = sphi 0, %s64
    %s66 = sphi 0, %s64
    %s67 = sphi 0, %s66
    %s81 = sphi 0, %s67
    %s87 = sphi 0, %s89
    %s90 = sphi 0, %s87
    %s91 = sphi 0, %s90
    %s107 = sphi 0, %s91
  $region4: #{down_forward.6} parent=0 // loop_header_branch
    %12 = sbr.rel (%p10) target = $region8
  $region5: #{down_forward.6} parent=0 // loop_body
    %s14 = ssub.s32 %s9, 1
    %s15 = ssub.s32 %s9, 2
    %s16 = sadd.s32 %s9, 1
    %s17 = ssub.s32 %s9, %s16
    %p18 = scmp.eq.s32.totalorder %s17, 0
    %s20 = sadd.s32 %s19, 1
    %s21 = scalar_select %p18, %s19, %s20
    %p24 = pneg %p18
    %p25 = scmp.eq.s32.totalorder %s9, 1
    %p26 = por %p24, %p25
    %p27 = scmp.ne.s32.totalorder %s19, %s22
    %p28 = scmp.eq.s32.totalorder %s9, 0
    %p29 = por %p27, %p28
    %p30 = scmp.ne.s32.totalorder %s19, %s22
    %p31 = scmp.eq.s32.totalorder %s14, 1
    %p32 = por %p30, %p31
    %p33 = scmp.ne.s32.totalorder %s22, %s23
    %p34 = scmp.eq.s32.totalorder %s14, 0
    %p35 = por %p33, %p34
    %p36 = scmp.ne.s32.totalorder %s22, %s23
    %p37 = scmp.eq.s32.totalorder %s15, 1
    %p38 = por %p36, %p37
    %p40 = scmp.ne.s32.totalorder %s23, %s39
    %p41 = scmp.eq.s32.totalorder %s15, 0
    %p42 = por %p40, %p41
    %s44 = sadd.s32 %s43, 1
    %p47 = scmp.eq.s32.totalorder %s9, 1
    %p48 = scmp.ne.s32.totalorder %s43, %s45
    %p49 = scmp.eq.s32.totalorder %s9, 0
    %p50 = por %p48, %p49
    %p51 = scmp.ne.s32.totalorder %s43, %s45
    %p52 = scmp.eq.s32.totalorder %s14, 1
    %p53 = por %p51, %p52
    %p54 = scmp.ne.s32.totalorder %s45, %s46
    %p55 = scmp.eq.s32.totalorder %s14, 0
    %p56 = por %p54, %p55
    %p57 = scmp.ne.s32.totalorder %s45, %s46
    %p58 = scmp.eq.s32.totalorder %s15, 1
    %p59 = por %p57, %p58
    %p61 = scmp.ne.s32.totalorder %s46, %s60
    %p62 = scmp.eq.s32.totalorder %s15, 0
    %p63 = por %p61, %p62
    %s65 = sadd.s32 %s64, 1
    %p68 = scmp.eq.s32.totalorder %s9, 1
    %p69 = scmp.ne.s32.totalorder %s64, %s66
    %p70 = scmp.eq.s32.totalorder %s9, 0
    %p71 = por %p69, %p70
    %p72 = scmp.ne.s32.totalorder %s64, %s66
    %p73 = scmp.eq.s32.totalorder %s14, 1
    %p74 = por %p72, %p73
    %p75 = scmp.ne.s32.totalorder %s66, %s67
    %p76 = scmp.eq.s32.totalorder %s14, 0
    %p77 = por %p75, %p76
    %p78 = scmp.ne.s32.totalorder %s66, %s67
    %p79 = scmp.eq.s32.totalorder %s15, 1
    %p80 = por %p78, %p79
    %p82 = scmp.ne.s32.totalorder %s67, %s81
    %p83 = scmp.eq.s32.totalorder %s15, 0
    %p84 = por %p82, %p83
    %s85 = ssub.s32 %s9, %s16
    %p86 = scmp.eq.s32.totalorder %s85, 0
    %s88 = sadd.s32 %s87, 1
    %s89 = scalar_select %p86, %s87, %s88
    %p92 = pneg %p86
    %p93 = scmp.eq.s32.totalorder %s9, 1
    %p94 = por %p92, %p93
    %p95 = scmp.ne.s32.totalorder %s87, %s90
    %p96 = scmp.eq.s32.totalorder %s9, 0
    %p97 = por %p95, %p96
    %p98 = scmp.ne.s32.totalorder %s87, %s90
    %p99 = scmp.eq.s32.totalorder %s14, 1
    %p100 = por %p98, %p99
    %p101 = scmp.ne.s32.totalorder %s90, %s91
    %p102 = scmp.eq.s32.totalorder %s14, 0
    %p103 = por %p101, %p102
    %p104 = scmp.ne.s32.totalorder %s90, %s91
    %p105 = scmp.eq.s32.totalorder %s15, 1
    %p106 = por %p104, %p105
    %p108 = scmp.ne.s32.totalorder %s91, %s107
    %p109 = scmp.eq.s32.totalorder %s15, 0
    %p110 = por %p108, %p109
    %p111 = scmp.le.s32.totalorder 1, %s9
    %p112 = scmp.lt.s32.totalorder %s9, 3
    %p113 = pnand %p111, %p112
    %p114 = pneg %p113
    // Predicated region
    $region9: #{down_forward.6} parent=5 // pred_check
      _
    $region10: #{down_forward.6} parent=5 // pred_check_branch
      %116 = sbr.rel (%p113) target = $region12
    $region11: #{down_forward.6} parent=5 // pred_region
      %s117 = ssub.s32 %s9, 1
      // Predicated region
      $region13: #{down_forward.6} parent=11 // pred_check
        %p118 = pneg %p56
      $region14: #{down_forward.6} parent=11 // pred_check_branch
        %120 = sbr.rel (%p118) target = $region16
      $region15: #{down_forward.6} parent=11 // pred_region
        _
      $region16: #{down_forward.6} parent=11 // pred_fallthru
        _
      // Predicated region
      $region17: #{down_forward.6} parent=11 // pred_check
        %p121 = pneg %p77
      $region18: #{down_forward.6} parent=11 // pred_check_branch
        %123 = sbr.rel (%p121) target = $region20
      $region19: #{down_forward.6} parent=11 // pred_region
        _
      $region20: #{down_forward.6} parent=11 // pred_fallthru
        _
    $region12: #{down_forward.6} parent=5 // pred_fallthru
      _
    %p124 = scmp.lt.s32.totalorder %s9, 2
    // Predicated region
    $region21: #{down_forward.6} parent=5 // pred_check
      %p125 = pneg %p124
    $region22: #{down_forward.6} parent=5 // pred_check_branch
      %127 = sbr.rel (%p125) target = $region24
    $region23: #{down_forward.6} parent=5 // pred_region
      // Predicated region
      $region25: #{down_forward.6} parent=23 // pred_check
        %p128 = pneg %p29
      $region26: #{down_forward.6} parent=23 // pred_check_branch
        %130 = sbr.rel (%p128) target = $region28
      $region27: #{down_forward.6} parent=23 // pred_region
        %p131 = scmp.lt.s32.totalorder %s9, 1
        %s132 = scalar_select %p131, %s9, 1
        %s133 = smul.addr %s132, 13
        %s134 = smul.addr %s133, 4
        %s135 = scalar_lea.vmem %s0, %s134
      $region28: #{down_forward.6} parent=23 // pred_fallthru
        _
    $region24: #{down_forward.6} parent=5 // pred_fallthru
      _
    %p136 = scmp.le.s32.totalorder 1, %s9
    %p137 = scmp.lt.s32.totalorder %s9, 3
    %p138 = pnand %p136, %p137
    %p139 = pneg %p138
    // Predicated region
    $region29: #{down_forward.6} parent=5 // pred_check
      _
    $region30: #{down_forward.6} parent=5 // pred_check_branch
      %141 = sbr.rel (%p138) target = $region32
    $region31: #{down_forward.6} parent=5 // pred_region
      %s142 = ssub.s32 %s9, 1
      %p143 = scmp.lt.s32.totalorder %s14, 1
      %s144 = scalar_select %p143, %s14, 1
      %s145 = smul.addr %s144, 13
      %s146 = smul.addr %s145, 4
      %s147 = scalar_lea.vmem %s0, %s146
      %p148 = pneg %p35
      %p149 = pneg %p32
      %p150 = pneg %p56
      %p151 = pneg %p53
      %p152 = pneg %p77
      %p153 = pneg %p74
      %p154 = pneg %p103
      %p155 = pneg %p100
      %p156 = scmp.lt.s32.totalorder %s14, 1
      %s157 = scalar_select %p156, %s14, 1
      %s158 = smul.addr %s157, 2
      %s159 = scalar_lea.vmem %s3, %s158
      %p160 = scmp.lt.s32.totalorder %s14, 1
      %s161 = scalar_select %p160, %s14, 1
      %s162 = smul.addr %s161, 13
      %s163 = smul.addr %s162, 4
      %s164 = scalar_lea.vmem %s0, %s163
      %p165 = scmp.lt.s32.totalorder %s14, 1
      %s166 = scalar_select %p165, %s14, 1
      %s167 = smul.addr %s166, 2
      %s168 = scalar_lea.vmem %s3, %s167
      %v170 = vld [vmem:[%s164] sm:$0xf]
      %v171 = vld [vmem:[%s164 + $0x4] sm:$0xf]
      %v172 = vld [vmem:[%s164 + $0x8] sm:$0xf]
      %v173 = vld [vmem:[%s164 + $0xc] sm:$0xf]
      %v174 = vld [vmem:[%s164 + $0x10] sm:$0xf]
      %v175 = vld [vmem:[%s164 + $0x14] sm:$0xf]
      %v176 = vld [vmem:[%s164 + $0x18] sm:$0xf]
      %v177 = vld [vmem:[%s164 + $0x1c] sm:$0xf]
      %v178 = vld [vmem:[%s164 + $0x20] sm:$0xf]
      %v179 = vld [vmem:[%s164 + $0x24] sm:$0xf]
      %vm180 = vcmask 60416
      %181 = vst.msk [vmem:[#allocation3] sm:$0xf] %vm180, %v170
      %182 = vst.msk [vmem:[#allocation3 + $0x4] sm:$0xf] %vm180, %v171
      %183 = vst.msk [vmem:[#allocation3 + $0x8] sm:$0xf] %vm180, %v172
      %184 = vst.msk [vmem:[#allocation3 + $0xc] sm:$0xf] %vm180, %v173
      %185 = vst.msk [vmem:[#allocation3 + $0x10] sm:$0xf] %vm180, %v174
      %186 = vst.msk [vmem:[#allocation3 + $0x14] sm:$0xf] %vm180, %v175
      %187 = vst.msk [vmem:[#allocation3 + $0x18] sm:$0xf] %vm180, %v176
      %188 = vst.msk [vmem:[#allocation3 + $0x1c] sm:$0xf] %vm180, %v177
      %189 = vst.msk [vmem:[#allocation3 + $0x20] sm:$0xf] %vm180, %v178
      %190 = vst.msk [vmem:[#allocation3 + $0x24] sm:$0xf] %vm180, %v179
      %v191 = vld [vmem:[%s164] sm:$0xf]
      %v192 = vld [vmem:[%s164 + $0x4] sm:$0xf]
      %v193 = vld [vmem:[%s164 + $0x8] sm:$0xf]
      %v194 = vld [vmem:[%s164 + $0xc] sm:$0xf]
      %v195 = vld [vmem:[%s164 + $0x10] sm:$0xf]
      %v196 = vld [vmem:[%s164 + $0x14] sm:$0xf]
      %v197 = vld [vmem:[%s164 + $0x18] sm:$0xf]
      %v198 = vld [vmem:[%s164 + $0x1c] sm:$0xf]
      %v199 = vld [vmem:[%s164 + $0x20] sm:$0xf]
      %v200 = vld [vmem:[%s164 + $0x24] sm:$0xf]
      %v201 = vld [vmem:[%s164 + $0x28] sm:$0x1]
      %vm202 = vsmask.f32 3328
      %vm203 = vsmask.f32 7440
      %vm204 = vmor %vm202, %vm203
      %v206 = vshrl.u32 %v191, 16
      %v208 = vrot.slane %v206, 4
      %v209 = vshll.u32 %v191, 16
      %v211 = vrot.slane %v209, 5
      %v212 = vor.u32 %v208, %v211
      %v213 = vrot.slane %v212, 4
      %v215 = vshll.u32 %v192, 16
      %v217 = vrot.slane %v215, 5
      %v218 = vsel %vm204, %v213, %v217
      %v219 = vshrl.u32 %v192, 16
      %v221 = vrot.slane %v219, 4
      %v222 = vor.u32 %v221, %v217
      %v223 = vrot.slane %v222, 4
      %v225 = vshll.u32 %v193, 16
      %v227 = vrot.slane %v225, 5
      %v228 = vsel %vm204, %v223, %v227
      %v229 = vshrl.u32 %v193, 16
      %v231 = vrot.slane %v229, 4
      %v232 = vor.u32 %v231, %v227
      %v233 = vrot.slane %v232, 4
      %v235 = vshll.u32 %v194, 16
      %v237 = vrot.slane %v235, 5
      %v238 = vsel %vm204, %v233, %v237
      %v239 = vshrl.u32 %v194, 16
      %v241 = vrot.slane %v239, 4
      %v242 = vor.u32 %v241, %v237
      %v243 = vrot.slane %v242, 4
      %v245 = vshll.u32 %v195, 16
      %v247 = vrot.slane %v245, 5
      %v248 = vsel %vm204, %v243, %v247
      %v249 = vshrl.u32 %v195, 16
      %v251 = vrot.slane %v249, 4
      %v252 = vor.u32 %v251, %v247
      %v253 = vrot.slane %v252, 4
      %v255 = vshll.u32 %v196, 16
      %v257 = vrot.slane %v255, 5
      %v258 = vsel %vm204, %v253, %v257
      %v259 = vshrl.u32 %v196, 16
      %v261 = vrot.slane %v259, 4
      %v262 = vor.u32 %v261, %v257
      %v263 = vrot.slane %v262, 4
      %v265 = vshll.u32 %v197, 16
      %v267 = vrot.slane %v265, 5
      %v268 = vsel %vm204, %v263, %v267
      %v269 = vshrl.u32 %v197, 16
      %v271 = vrot.slane %v269, 4
      %v272 = vor.u32 %v271, %v267
      %v273 = vrot.slane %v272, 4
      %v275 = vshll.u32 %v198, 16
      %v277 = vrot.slane %v275, 5
      %v278 = vsel %vm204, %v273, %v277
      %v279 = vshrl.u32 %v198, 16
      %v281 = vrot.slane %v279, 4
      %v282 = vor.u32 %v281, %v277
      %v283 = vrot.slane %v282, 4
      %v285 = vshll.u32 %v199, 16
      %v287 = vrot.slane %v285, 5
      %v288 = vsel %vm204, %v283, %v287
      %v289 = vshrl.u32 %v199, 16
      %v291 = vrot.slane %v289, 4
      %v292 = vor.u32 %v291, %v287
      %v293 = vrot.slane %v292, 4
      %v295 = vshll.u32 %v200, 16
      %v297 = vrot.slane %v295, 5
      %v298 = vsel %vm204, %v293, %v297
      %v299 = vshrl.u32 %v200, 16
      %v301 = vrot.slane %v299, 4
      %v302 = vor.u32 %v301, %v297
      %v303 = vrot.slane %v302, 4
      %v305 = vshll.u32 %v201, 16
      %v307 = vrot.slane %v305, 5
      %v308 = vsel %vm204, %v303, %v307
      %309 = vrot.lane.b32.xlu0 %v218, 8
      %v310 = vpop.permute.xlu0 %309
      %311 = vrot.lane.b32.xlu0 %v228, 8
      %v312 = vpop.permute.xlu0 %311
      %313 = vrot.lane.b32.xlu0 %v238, 8
      %v314 = vpop.permute.xlu0 %313
      %315 = vrot.lane.b32.xlu0 %v248, 8
      %v316 = vpop.permute.xlu0 %315
      %317 = vrot.lane.b32.xlu0 %v258, 8
      %v318 = vpop.permute.xlu0 %317
      %319 = vrot.lane.b32.xlu0 %v268, 8
      %v320 = vpop.permute.xlu0 %319
      %321 = vrot.lane.b32.xlu0 %v278, 8
      %v322 = vpop.permute.xlu0 %321
      %323 = vrot.lane.b32.xlu0 %v288, 8
      %v324 = vpop.permute.xlu0 %323
      %325 = vrot.lane.b32.xlu0 %v298, 8
      %v326 = vpop.permute.xlu0 %325
      %327 = vrot.lane.b32.xlu0 %v308, 8
      %v328 = vpop.permute.xlu0 %327
      %vm339 = vcmask 126016
      %340 = vst.msk [vmem:[#allocation3] sm:$0xf] %vm339, %v310
      %341 = vst.msk [vmem:[#allocation3 + $0x4] sm:$0xf] %vm339, %v312
      %342 = vst.msk [vmem:[#allocation3 + $0x8] sm:$0xf] %vm339, %v314
      %343 = vst.msk [vmem:[#allocation3 + $0xc] sm:$0xf] %vm339, %v316
      %344 = vst.msk [vmem:[#allocation3 + $0x10] sm:$0xf] %vm339, %v318
      %345 = vst.msk [vmem:[#allocation3 + $0x14] sm:$0xf] %vm339, %v320
      %346 = vst.msk [vmem:[#allocation3 + $0x18] sm:$0xf] %vm339, %v322
      %347 = vst.msk [vmem:[#allocation3 + $0x1c] sm:$0xf] %vm339, %v324
      %348 = vst.msk [vmem:[#allocation3 + $0x20] sm:$0xf] %vm339, %v326
      %349 = vst.msk [vmem:[#allocation3 + $0x24] sm:$0xf] %vm339, %v328
      %v350 = vld [vmem:[%s164] sm:$0xe]
      %v351 = vld [vmem:[%s164 + $0x4] sm:$0xf]
      %v352 = vld [vmem:[%s164 + $0x8] sm:$0xf]
      %v353 = vld [vmem:[%s164 + $0xc] sm:$0xf]
      %v354 = vld [vmem:[%s164 + $0x10] sm:$0xf]
      %v355 = vld [vmem:[%s164 + $0x14] sm:$0xf]
      %v356 = vld [vmem:[%s164 + $0x18] sm:$0xf]
      %v357 = vld [vmem:[%s164 + $0x1c] sm:$0xf]
      %v358 = vld [vmem:[%s164 + $0x20] sm:$0xf]
      %v359 = vld [vmem:[%s164 + $0x24] sm:$0xf]
      %v360 = vld [vmem:[%s164 + $0x28] sm:$0x1]
      %vm372 = vcmask 1042432
      %vm373 = vcmask 1046532
      %vm374 = vmor %vm372, %vm373
      %v375 = vrot.slane %v350, 5
      %v376 = vrot.slane %v375, 4
      %v377 = vrot.slane %v351, 5
      %v378 = vsel %vm374, %v376, %v377
      %v379 = vrot.slane %v377, 4
      %v380 = vrot.slane %v352, 5
      %v381 = vsel %vm374, %v379, %v380
      %v382 = vrot.slane %v380, 4
      %v383 = vrot.slane %v353, 5
      %v384 = vsel %vm374, %v382, %v383
      %v385 = vrot.slane %v383, 4
      %v386 = vrot.slane %v354, 5
      %v387 = vsel %vm374, %v385, %v386
      %v388 = vrot.slane %v386, 4
      %v389 = vrot.slane %v355, 5
      %v390 = vsel %vm374, %v388, %v389
      %v391 = vrot.slane %v389, 4
      %v392 = vrot.slane %v356, 5
      %v393 = vsel %vm374, %v391, %v392
      %v394 = vrot.slane %v392, 4
      %v395 = vrot.slane %v357, 5
      %v396 = vsel %vm374, %v394, %v395
      %v397 = vrot.slane %v395, 4
      %v398 = vrot.slane %v358, 5
      %v399 = vsel %vm374, %v397, %v398
      %v400 = vrot.slane %v398, 4
      %v401 = vrot.slane %v359, 5
      %v402 = vsel %vm374, %v400, %v401
      %v403 = vrot.slane %v401, 4
      %v404 = vrot.slane %v360, 5
      %v405 = vsel %vm374, %v403, %v404
      %406 = vrot.lane.b32.xlu0 %v378, 16
      %v407 = vpop.permute.xlu0 %406
      %408 = vrot.lane.b32.xlu0 %v381, 16
      %v409 = vpop.permute.xlu0 %408
      %410 = vrot.lane.b32.xlu0 %v384, 16
      %v411 = vpop.permute.xlu0 %410
      %412 = vrot.lane.b32.xlu0 %v387, 16
      %v413 = vpop.permute.xlu0 %412
      %414 = vrot.lane.b32.xlu0 %v390, 16
      %v415 = vpop.permute.xlu0 %414
      %416 = vrot.lane.b32.xlu0 %v393, 16
      %v417 = vpop.permute.xlu0 %416
      %418 = vrot.lane.b32.xlu0 %v396, 16
      %v419 = vpop.permute.xlu0 %418
      %420 = vrot.lane.b32.xlu0 %v399, 16
      %v421 = vpop.permute.xlu0 %420
      %422 = vrot.lane.b32.xlu0 %v402, 16
      %v423 = vpop.permute.xlu0 %422
      %424 = vrot.lane.b32.xlu0 %v405, 16
      %v425 = vpop.permute.xlu0 %424
      %vm436 = vcmask 191616
      %437 = vst.msk [vmem:[#allocation3] sm:$0xf] %vm436, %v407
      %438 = vst.msk [vmem:[#allocation3 + $0x4] sm:$0xf] %vm436, %v409
      %439 = vst.msk [vmem:[#allocation3 + $0x8] sm:$0xf] %vm436, %v411
      %440 = vst.msk [vmem:[#allocation3 + $0xc] sm:$0xf] %vm436, %v413
      %441 = vst.msk [vmem:[#allocation3 + $0x10] sm:$0xf] %vm436, %v415
      %442 = vst.msk [vmem:[#allocation3 + $0x14] sm:$0xf] %vm436, %v417
      %443 = vst.msk [vmem:[#allocation3 + $0x18] sm:$0xf] %vm436, %v419
      %444 = vst.msk [vmem:[#allocation3 + $0x1c] sm:$0xf] %vm436, %v421
      %445 = vst.msk [vmem:[#allocation3 + $0x20] sm:$0xf] %vm436, %v423
      %446 = vst.msk [vmem:[#allocation3 + $0x24] sm:$0xf] %vm436, %v425
      %v447 = vld [vmem:[%s164 + $0x4] sm:$0xe]
      %v448 = vld [vmem:[%s164 + $0x8] sm:$0xf]
      %v449 = vld [vmem:[%s164 + $0xc] sm:$0xf]
      %v450 = vld [vmem:[%s164 + $0x10] sm:$0xf]
      %v451 = vld [vmem:[%s164 + $0x14] sm:$0xf]
      %v452 = vld [vmem:[%s164 + $0x18] sm:$0xf]
      %v453 = vld [vmem:[%s164 + $0x1c] sm:$0xf]
      %v454 = vld [vmem:[%s164 + $0x20] sm:$0xf]
      %v455 = vld [vmem:[%s164 + $0x24] sm:$0xf]
      %v456 = vld [vmem:[%s164 + $0x28] sm:$0xf]
      %v457 = vld [vmem:[%s164 + $0x2c] sm:$0x1]
      %v469 = vrot.slane %v447, 5
      %v470 = vrot.slane %v469, 4
      %v471 = vrot.slane %v448, 5
      %v472 = vsel %vm374, %v470, %v471
      %v473 = vrot.slane %v471, 4
      %v474 = vrot.slane %v449, 5
      %v475 = vsel %vm374, %v473, %v474
      %v476 = vrot.slane %v474, 4
      %v477 = vrot.slane %v450, 5
      %v478 = vsel %vm374, %v476, %v477
      %v479 = vrot.slane %v477, 4
      %v480 = vrot.slane %v451, 5
      %v481 = vsel %vm374, %v479, %v480
      %v482 = vrot.slane %v480, 4
      %v483 = vrot.slane %v452, 5
      %v484 = vsel %vm374, %v482, %v483
      %v485 = vrot.slane %v483, 4
      %v486 = vrot.slane %v453, 5
      %v487 = vsel %vm374, %v485, %v486
      %v488 = vrot.slane %v486, 4
      %v489 = vrot.slane %v454, 5
      %v490 = vsel %vm374, %v488, %v489
      %v491 = vrot.slane %v489, 4
      %v492 = vrot.slane %v455, 5
      %v493 = vsel %vm374, %v491, %v492
      %v494 = vrot.slane %v492, 4
      %v495 = vrot.slane %v456, 5
      %v496 = vsel %vm374, %v494, %v495
      %v497 = vrot.slane %v495, 4
      %v498 = vrot.slane %v457, 5
      %v499 = vsel %vm374, %v497, %v498
      %500 = vrot.lane.b32.xlu0 %v472, 24
      %v501 = vpop.permute.xlu0 %500
      %502 = vrot.lane.b32.xlu0 %v475, 24
      %v503 = vpop.permute.xlu0 %502
      %504 = vrot.lane.b32.xlu0 %v478, 24
      %v505 = vpop.permute.xlu0 %504
      %506 = vrot.lane.b32.xlu0 %v481, 24
      %v507 = vpop.permute.xlu0 %506
      %508 = vrot.lane.b32.xlu0 %v484, 24
      %v509 = vpop.permute.xlu0 %508
      %510 = vrot.lane.b32.xlu0 %v487, 24
      %v511 = vpop.permute.xlu0 %510
      %512 = vrot.lane.b32.xlu0 %v490, 24
      %v513 = vpop.permute.xlu0 %512
      %514 = vrot.lane.b32.xlu0 %v493, 24
      %v515 = vpop.permute.xlu0 %514
      %516 = vrot.lane.b32.xlu0 %v496, 24
      %v517 = vpop.permute.xlu0 %516
      %518 = vrot.lane.b32.xlu0 %v499, 24
      %v519 = vpop.permute.xlu0 %518
      %vm530 = vcmask 257216
      %531 = vst.msk [vmem:[#allocation3] sm:$0xf] %vm530, %v501
      %532 = vst.msk [vmem:[#allocation3 + $0x4] sm:$0xf] %vm530, %v503
      %533 = vst.msk [vmem:[#allocation3 + $0x8] sm:$0xf] %vm530, %v505
      %534 = vst.msk [vmem:[#allocation3 + $0xc] sm:$0xf] %vm530, %v507
      %535 = vst.msk [vmem:[#allocation3 + $0x10] sm:$0xf] %vm530, %v509
      %536 = vst.msk [vmem:[#allocation3 + $0x14] sm:$0xf] %vm530, %v511
      %537 = vst.msk [vmem:[#allocation3 + $0x18] sm:$0xf] %vm530, %v513
      %538 = vst.msk [vmem:[#allocation3 + $0x1c] sm:$0xf] %vm530, %v515
      %539 = vst.msk [vmem:[#allocation3 + $0x20] sm:$0xf] %vm530, %v517
      %540 = vst.msk [vmem:[#allocation3 + $0x24] sm:$0xf] %vm530, %v519
      %v541 = vld [vmem:[%s164 + $0x4] sm:$0xe]
      %v542 = vld [vmem:[%s164 + $0x8] sm:$0xf]
      %v543 = vld [vmem:[%s164 + $0xc] sm:$0xf]
      %v544 = vld [vmem:[%s164 + $0x10] sm:$0xf]
      %v545 = vld [vmem:[%s164 + $0x14] sm:$0xf]
      %v546 = vld [vmem:[%s164 + $0x18] sm:$0xf]
      %v547 = vld [vmem:[%s164 + $0x1c] sm:$0xf]
      %v548 = vld [vmem:[%s164 + $0x20] sm:$0xf]
      %v549 = vld [vmem:[%s164 + $0x24] sm:$0xf]
      %v550 = vld [vmem:[%s164 + $0x28] sm:$0xf]
      %v551 = vld [vmem:[%s164 + $0x2c] sm:$0x3]
      %vm552 = vsmask.f32 2304
      %vm553 = vsmask.f32 6416
      %vm554 = vmor %vm552, %vm553
      %v556 = vshrl.u32 %v541, 16
      %v558 = vrot.slane %v556, 5
      %v559 = vshll.u32 %v541, 16
      %v561 = vrot.slane %v559, 6
      %v562 = vor.u32 %v558, %v561
      %v563 = vrot.slane %v562, 4
      %v565 = vshrl.u32 %v542, 16
      %v567 = vrot.slane %v565, 5
      %v568 = vshll.u32 %v542, 16
      %v570 = vrot.slane %v568, 6
      %v571 = vor.u32 %v567, %v570
      %v572 = vsel %vm554, %v563, %v571
      %v573 = vrot.slane %v571, 4
      %v575 = vshrl.u32 %v543, 16
      %v577 = vrot.slane %v575, 5
      %v578 = vshll.u32 %v543, 16
      %v580 = vrot.slane %v578, 6
      %v581 = vor.u32 %v577, %v580
      %v582 = vsel %vm554, %v573, %v581
      %v583 = vrot.slane %v581, 4
      %v585 = vshrl.u32 %v544, 16
      %v587 = vrot.slane %v585, 5
      %v588 = vshll.u32 %v544, 16
      %v590 = vrot.slane %v588, 6
      %v591 = vor.u32 %v587, %v590
      %v592 = vsel %vm554, %v583, %v591
      %v593 = vrot.slane %v591, 4
      %v595 = vshrl.u32 %v545, 16
      %v597 = vrot.slane %v595, 5
      %v598 = vshll.u32 %v545, 16
      %v600 = vrot.slane %v598, 6
      %v601 = vor.u32 %v597, %v600
      %v602 = vsel %vm554, %v593, %v601
      %v603 = vrot.slane %v601, 4
      %v605 = vshrl.u32 %v546, 16
      %v607 = vrot.slane %v605, 5
      %v608 = vshll.u32 %v546, 16
      %v610 = vrot.slane %v608, 6
      %v611 = vor.u32 %v607, %v610
      %v612 = vsel %vm554, %v603, %v611
      %v613 = vrot.slane %v611, 4
      %v615 = vshrl.u32 %v547, 16
      %v617 = vrot.slane %v615, 5
      %v618 = vshll.u32 %v547, 16
      %v620 = vrot.slane %v618, 6
      %v621 = vor.u32 %v617, %v620
      %v622 = vsel %vm554, %v613, %v621
      %v623 = vrot.slane %v621, 4
      %v625 = vshrl.u32 %v548, 16
      %v627 = vrot.slane %v625, 5
      %v628 = vshll.u32 %v548, 16
      %v630 = vrot.slane %v628, 6
      %v631 = vor.u32 %v627, %v630
      %v632 = vsel %vm554, %v623, %v631
      %v633 = vrot.slane %v631, 4
      %v635 = vshrl.u32 %v549, 16
      %v637 = vrot.slane %v635, 5
      %v638 = vshll.u32 %v549, 16
      %v640 = vrot.slane %v638, 6
      %v641 = vor.u32 %v637, %v640
      %v642 = vsel %vm554, %v633, %v641
      %v643 = vrot.slane %v641, 4
      %v645 = vshrl.u32 %v550, 16
      %v647 = vrot.slane %v645, 5
      %v648 = vshll.u32 %v550, 16
      %v650 = vrot.slane %v648, 6
      %v651 = vor.u32 %v647, %v650
      %v652 = vsel %vm554, %v643, %v651
      %v653 = vrot.slane %v651, 4
      %v655 = vshrl.u32 %v551, 16
      %v657 = vrot.slane %v655, 5
      %v658 = vshll.u32 %v551, 16
      %v660 = vrot.slane %v658, 6
      %v661 = vor.u32 %v657, %v660
      %v662 = vsel %vm554, %v653, %v661
      %663 = vrot.lane.b32.xlu0 %v572, 32
      %v664 = vpop.permute.xlu0 %663
      %665 = vrot.lane.b32.xlu0 %v582, 32
      %v666 = vpop.permute.xlu0 %665
      %667 = vrot.lane.b32.xlu0 %v592, 32
      %v668 = vpop.permute.xlu0 %667
      %669 = vrot.lane.b32.xlu0 %v602, 32
      %v670 = vpop.permute.xlu0 %669
      %671 = vrot.lane.b32.xlu0 %v612, 32
      %v672 = vpop.permute.xlu0 %671
      %673 = vrot.lane.b32.xlu0 %v622, 32
      %v674 = vpop.permute.xlu0 %673
      %675 = vrot.lane.b32.xlu0 %v632, 32
      %v676 = vpop.permute.xlu0 %675
      %677 = vrot.lane.b32.xlu0 %v642, 32
      %v678 = vpop.permute.xlu0 %677
      %679 = vrot.lane.b32.xlu0 %v652, 32
      %v680 = vpop.permute.xlu0 %679
      %681 = vrot.lane.b32.xlu0 %v662, 32
      %v682 = vpop.permute.xlu0 %681
      %vm693 = vcmask 322816
      %694 = vst.msk [vmem:[#allocation3] sm:$0xf] %vm693, %v664
      %695 = vst.msk [vmem:[#allocation3 + $0x4] sm:$0xf] %vm693, %v666
      %696 = vst.msk [vmem:[#allocation3 + $0x8] sm:$0xf] %vm693, %v668
      %697 = vst.msk [vmem:[#allocation3 + $0xc] sm:$0xf] %vm693, %v670
      %698 = vst.msk [vmem:[#allocation3 + $0x10] sm:$0xf] %vm693, %v672
      %699 = vst.msk [vmem:[#allocation3 + $0x14] sm:$0xf] %vm693, %v674
      %700 = vst.msk [vmem:[#allocation3 + $0x18] sm:$0xf] %vm693, %v676
      %701 = vst.msk [vmem:[#allocation3 + $0x1c] sm:$0xf] %vm693, %v678
      %702 = vst.msk [vmem:[#allocation3 + $0x20] sm:$0xf] %vm693, %v680
      %703 = vst.msk [vmem:[#allocation3 + $0x24] sm:$0xf] %vm693, %v682
      %v704 = vld [vmem:[%s164 + $0x4] sm:$0xc]
      %v705 = vld [vmem:[%s164 + $0x8] sm:$0xf]
      %v706 = vld [vmem:[%s164 + $0xc] sm:$0xf]
      %v707 = vld [vmem:[%s164 + $0x10] sm:$0xf]
      %v708 = vld [vmem:[%s164 + $0x14] sm:$0xf]
      %v709 = vld [vmem:[%s164 + $0x18] sm:$0xf]
      %v710 = vld [vmem:[%s164 + $0x1c] sm:$0xf]
      %v711 = vld [vmem:[%s164 + $0x20] sm:$0xf]
      %v712 = vld [vmem:[%s164 + $0x24] sm:$0xf]
      %v713 = vld [vmem:[%s164 + $0x28] sm:$0xf]
      %v714 = vld [vmem:[%s164 + $0x2c] sm:$0x3]
      %vm726 = vcmask 1041408
      %vm727 = vcmask 1045508
      %vm728 = vmor %vm726, %vm727
      %v729 = vrot.slane %v704, 6
      %v730 = vrot.slane %v729, 4
      %v731 = vrot.slane %v705, 6
      %v732 = vsel %vm728, %v730, %v731
      %v733 = vrot.slane %v731, 4
      %v734 = vrot.slane %v706, 6
      %v735 = vsel %vm728, %v733, %v734
      %v736 = vrot.slane %v734, 4
      %v737 = vrot.slane %v707, 6
      %v738 = vsel %vm728, %v736, %v737
      %v739 = vrot.slane %v737, 4
      %v740 = vrot.slane %v708, 6
      %v741 = vsel %vm728, %v739, %v740
      %v742 = vrot.slane %v740, 4
      %v743 = vrot.slane %v709, 6
      %v744 = vsel %vm728, %v742, %v743
      %v745 = vrot.slane %v743, 4
      %v746 = vrot.slane %v710, 6
      %v747 = vsel %vm728, %v745, %v746
      %v748 = vrot.slane %v746, 4
      %v749 = vrot.slane %v711, 6
      %v750 = vsel %vm728, %v748, %v749
      %v751 = vrot.slane %v749, 4
      %v752 = vrot.slane %v712, 6
      %v753 = vsel %vm728, %v751, %v752
      %v754 = vrot.slane %v752, 4
      %v755 = vrot.slane %v713, 6
      %v756 = vsel %vm728, %v754, %v755
      %v757 = vrot.slane %v755, 4
      %v758 = vrot.slane %v714, 6
      %v759 = vsel %vm728, %v757, %v758
      %760 = vrot.lane.b32.xlu0 %v732, 40
      %v761 = vpop.permute.xlu0 %760
      %762 = vrot.lane.b32.xlu0 %v735, 40
      %v763 = vpop.permute.xlu0 %762
      %764 = vrot.lane.b32.xlu0 %v738, 40
      %v765 = vpop.permute.xlu0 %764
      %766 = vrot.lane.b32.xlu0 %v741, 40
      %v767 = vpop.permute.xlu0 %766
      %768 = vrot.lane.b32.xlu0 %v744, 40
      %v769 = vpop.permute.xlu0 %768
      %770 = vrot.lane.b32.xlu0 %v747, 40
      %v771 = vpop.permute.xlu0 %770
      %772 = vrot.lane.b32.xlu0 %v750, 40
      %v773 = vpop.permute.xlu0 %772
      %774 = vrot.lane.b32.xlu0 %v753, 40
      %v775 = vpop.permute.xlu0 %774
      %776 = vrot.lane.b32.xlu0 %v756, 40
      %v777 = vpop.permute.xlu0 %776
      %778 = vrot.lane.b32.xlu0 %v759, 40
      %v779 = vpop.permute.xlu0 %778
      %vm790 = vcmask 388416
      %791 = vst.msk [vmem:[#allocation3] sm:$0xf] %vm790, %v761
      %792 = vst.msk [vmem:[#allocation3 + $0x4] sm:$0xf] %vm790, %v763
      %793 = vst.msk [vmem:[#allocation3 + $0x8] sm:$0xf] %vm790, %v765
      %794 = vst.msk [vmem:[#allocation3 + $0xc] sm:$0xf] %vm790, %v767
      %795 = vst.msk [vmem:[#allocation3 + $0x10] sm:$0xf] %vm790, %v769
      %796 = vst.msk [vmem:[#allocation3 + $0x14] sm:$0xf] %vm790, %v771
      %797 = vst.msk [vmem:[#allocation3 + $0x18] sm:$0xf] %vm790, %v773
      %798 = vst.msk [vmem:[#allocation3 + $0x1c] sm:$0xf] %vm790, %v775
      %799 = vst.msk [vmem:[#allocation3 + $0x20] sm:$0xf] %vm790, %v777
      %800 = vst.msk [vmem:[#allocation3 + $0x24] sm:$0xf] %vm790, %v779
      %v801 = vld [vmem:[%s164 + $0x8] sm:$0xc]
      %v802 = vld [vmem:[%s164 + $0xc] sm:$0xf]
      %v803 = vld [vmem:[%s164 + $0x10] sm:$0xf]
      %v804 = vld [vmem:[%s164 + $0x14] sm:$0xf]
      %v805 = vld [vmem:[%s164 + $0x18] sm:$0xf]
      %v806 = vld [vmem:[%s164 + $0x1c] sm:$0xf]
      %v807 = vld [vmem:[%s164 + $0x20] sm:$0xf]
      %v808 = vld [vmem:[%s164 + $0x24] sm:$0xf]
      %v809 = vld [vmem:[%s164 + $0x28] sm:$0xf]
      %v810 = vld [vmem:[%s164 + $0x2c] sm:$0xf]
      %v811 = vld [vmem:[%s164 + $0x30] sm:$0x3]
      %v823 = vrot.slane %v801, 6
      %v824 = vrot.slane %v823, 4
      %v825 = vrot.slane %v802, 6
      %v826 = vsel %vm728, %v824, %v825
      %v827 = vrot.slane %v825, 4
      %v828 = vrot.slane %v803, 6
      %v829 = vsel %vm728, %v827, %v828
      %v830 = vrot.slane %v828, 4
      %v831 = vrot.slane %v804, 6
      %v832 = vsel %vm728, %v830, %v831
      %v833 = vrot.slane %v831, 4
      %v834 = vrot.slane %v805, 6
      %v835 = vsel %vm728, %v833, %v834
      %v836 = vrot.slane %v834, 4
      %v837 = vrot.slane %v806, 6
      %v838 = vsel %vm728, %v836, %v837
      %v839 = vrot.slane %v837, 4
      %v840 = vrot.slane %v807, 6
      %v841 = vsel %vm728, %v839, %v840
      %v842 = vrot.slane %v840, 4
      %v843 = vrot.slane %v808, 6
      %v844 = vsel %vm728, %v842, %v843
      %v845 = vrot.slane %v843, 4
      %v846 = vrot.slane %v809, 6
      %v847 = vsel %vm728, %v845, %v846
      %v848 = vrot.slane %v846, 4
      %v849 = vrot.slane %v810, 6
      %v850 = vsel %vm728, %v848, %v849
      %v851 = vrot.slane %v849, 4
      %v852 = vrot.slane %v811, 6
      %v853 = vsel %vm728, %v851, %v852
      %854 = vrot.lane.b32.xlu0 %v826, 48
      %v855 = vpop.permute.xlu0 %854
      %856 = vrot.lane.b32.xlu0 %v829, 48
      %v857 = vpop.permute.xlu0 %856
      %858 = vrot.lane.b32.xlu0 %v832, 48
      %v859 = vpop.permute.xlu0 %858
      %860 = vrot.lane.b32.xlu0 %v835, 48
      %v861 = vpop.permute.xlu0 %860
      %862 = vrot.lane.b32.xlu0 %v838, 48
      %v863 = vpop.permute.xlu0 %862
      %864 = vrot.lane.b32.xlu0 %v841, 48
      %v865 = vpop.permute.xlu0 %864
      %866 = vrot.lane.b32.xlu0 %v844, 48
      %v867 = vpop.permute.xlu0 %866
      %868 = vrot.lane.b32.xlu0 %v847, 48
      %v869 = vpop.permute.xlu0 %868
      %870 = vrot.lane.b32.xlu0 %v850, 48
      %v871 = vpop.permute.xlu0 %870
      %872 = vrot.lane.b32.xlu0 %v853, 48
      %v873 = vpop.permute.xlu0 %872
      %vm884 = vcmask 454016
      %885 = vst.msk [vmem:[#allocation3] sm:$0xf] %vm884, %v855
      %886 = vst.msk [vmem:[#allocation3 + $0x4] sm:$0xf] %vm884, %v857
      %887 = vst.msk [vmem:[#allocation3 + $0x8] sm:$0xf] %vm884, %v859
      %888 = vst.msk [vmem:[#allocation3 + $0xc] sm:$0xf] %vm884, %v861
      %889 = vst.msk [vmem:[#allocation3 + $0x10] sm:$0xf] %vm884, %v863
      %890 = vst.msk [vmem:[#allocation3 + $0x14] sm:$0xf] %vm884, %v865
      %891 = vst.msk [vmem:[#allocation3 + $0x18] sm:$0xf] %vm884, %v867
      %892 = vst.msk [vmem:[#allocation3 + $0x1c] sm:$0xf] %vm884, %v869
      %893 = vst.msk [vmem:[#allocation3 + $0x20] sm:$0xf] %vm884, %v871
      %894 = vst.msk [vmem:[#allocation3 + $0x24] sm:$0xf] %vm884, %v873
      %v895 = vld [vmem:[%s164 + $0x8] sm:$0xc]
      %v896 = vld [vmem:[%s164 + $0xc] sm:$0xf]
      %v897 = vld [vmem:[%s164 + $0x10] sm:$0xf]
      %v898 = vld [vmem:[%s164 + $0x14] sm:$0xf]
      %v899 = vld [vmem:[%s164 + $0x18] sm:$0xf]
      %v900 = vld [vmem:[%s164 + $0x1c] sm:$0xf]
      %v901 = vld [vmem:[%s164 + $0x20] sm:$0xf]
      %v902 = vld [vmem:[%s164 + $0x24] sm:$0xf]
      %v903 = vld [vmem:[%s164 + $0x28] sm:$0xf]
      %v904 = vld [vmem:[%s164 + $0x2c] sm:$0xf]
      %v905 = vld [vmem:[%s164 + $0x30] sm:$0x7]
      %vm906 = vsmask.f32 1280
      %vm907 = vsmask.f32 5392
      %vm908 = vmor %vm906, %vm907
      %v910 = vshrl.u32 %v895, 16
      %v912 = vrot.slane %v910, 6
      %v913 = vshll.u32 %v895, 16
      %v915 = vrot.slane %v913, 7
      %v916 = vor.u32 %v912, %v915
      %v917 = vrot.slane %v916, 4
      %v919 = vshrl.u32 %v896, 16
      %v921 = vrot.slane %v919, 6
      %v922 = vshll.u32 %v896, 16
      %v924 = vrot.slane %v922, 7
      %v925 = vor.u32 %v921, %v924
      %v926 = vsel %vm908, %v917, %v925
      %v927 = vrot.slane %v925, 4
      %v929 = vshrl.u32 %v897, 16
      %v931 = vrot.slane %v929, 6
      %v932 = vshll.u32 %v897, 16
      %v934 = vrot.slane %v932, 7
      %v935 = vor.u32 %v931, %v934
      %v936 = vsel %vm908, %v927, %v935
      %v937 = vrot.slane %v935, 4
      %v939 = vshrl.u32 %v898, 16
      %v941 = vrot.slane %v939, 6
      %v942 = vshll.u32 %v898, 16
      %v944 = vrot.slane %v942, 7
      %v945 = vor.u32 %v941, %v944
      %v946 = vsel %vm908, %v937, %v945
      %v947 = vrot.slane %v945, 4
      %v949 = vshrl.u32 %v899, 16
      %v951 = vrot.slane %v949, 6
      %v952 = vshll.u32 %v899, 16
      %v954 = vrot.slane %v952, 7
      %v955 = vor.u32 %v951, %v954
      %v956 = vsel %vm908, %v947, %v955
      %v957 = vrot.slane %v955, 4
      %v959 = vshrl.u32 %v900, 16
      %v961 = vrot.slane %v959, 6
      %v962 = vshll.u32 %v900, 16
      %v964 = vrot.slane %v962, 7
      %v965 = vor.u32 %v961, %v964
      %v966 = vsel %vm908, %v957, %v965
      %v967 = vrot.slane %v965, 4
      %v969 = vshrl.u32 %v901, 16
      %v971 = vrot.slane %v969, 6
      %v972 = vshll.u32 %v901, 16
      %v974 = vrot.slane %v972, 7
      %v975 = vor.u32 %v971, %v974
      %v976 = vsel %vm908, %v967, %v975
      %v977 = vrot.slane %v975, 4
      %v979 = vshrl.u32 %v902, 16
      %v981 = vrot.slane %v979, 6
      %v982 = vshll.u32 %v902, 16
      %v984 = vrot.slane %v982, 7
      %v985 = vor.u32 %v981, %v984
      %v986 = vsel %vm908, %v977, %v985
      %v987 = vrot.slane %v985, 4
      %v989 = vshrl.u32 %v903, 16
      %v991 = vrot.slane %v989, 6
      %v992 = vshll.u32 %v903, 16
      %v994 = vrot.slane %v992, 7
      %v995 = vor.u32 %v991, %v994
      %v996 = vsel %vm908, %v987, %v995
      %v997 = vrot.slane %v995, 4
      %v999 = vshrl.u32 %v904, 16
      %v1001 = vrot.slane %v999, 6
      %v1002 = vshll.u32 %v904, 16
      %v1004 = vrot.slane %v1002, 7
      %v1005 = vor.u32 %v1001, %v1004
      %v1006 = vsel %vm908, %v997, %v1005
      %v1007 = vrot.slane %v1005, 4
      %v1009 = vshrl.u32 %v905, 16
      %v1011 = vrot.slane %v1009, 6
      %v1012 = vshll.u32 %v905, 16
      %v1014 = vrot.slane %v1012, 7
      %v1015 = vor.u32 %v1011, %v1014
      %v1016 = vsel %vm908, %v1007, %v1015
      %1017 = vrot.lane.b32.xlu0 %v926, 56
      %v1018 = vpop.permute.xlu0 %1017
      %1019 = vrot.lane.b32.xlu0 %v936, 56
      %v1020 = vpop.permute.xlu0 %1019
      %1021 = vrot.lane.b32.xlu0 %v946, 56
      %v1022 = vpop.permute.xlu0 %1021
      %1023 = vrot.lane.b32.xlu0 %v956, 56
      %v1024 = vpop.permute.xlu0 %1023
      %1025 = vrot.lane.b32.xlu0 %v966, 56
      %v1026 = vpop.permute.xlu0 %1025
      %1027 = vrot.lane.b32.xlu0 %v976, 56
      %v1028 = vpop.permute.xlu0 %1027
      %1029 = vrot.lane.b32.xlu0 %v986, 56
      %v1030 = vpop.permute.xlu0 %1029
      %1031 = vrot.lane.b32.xlu0 %v996, 56
      %v1032 = vpop.permute.xlu0 %1031
      %1033 = vrot.lane.b32.xlu0 %v1006, 56
      %v1034 = vpop.permute.xlu0 %1033
      %1035 = vrot.lane.b32.xlu0 %v1016, 56
      %v1036 = vpop.permute.xlu0 %1035
      %vm1047 = vcmask 519616
      %1048 = vst.msk [vmem:[#allocation3] sm:$0xf] %vm1047, %v1018
      %1049 = vst.msk [vmem:[#allocation3 + $0x4] sm:$0xf] %vm1047, %v1020
      %1050 = vst.msk [vmem:[#allocation3 + $0x8] sm:$0xf] %vm1047, %v1022
      %1051 = vst.msk [vmem:[#allocation3 + $0xc] sm:$0xf] %vm1047, %v1024
      %1052 = vst.msk [vmem:[#allocation3 + $0x10] sm:$0xf] %vm1047, %v1026
      %1053 = vst.msk [vmem:[#allocation3 + $0x14] sm:$0xf] %vm1047, %v1028
      %1054 = vst.msk [vmem:[#allocation3 + $0x18] sm:$0xf] %vm1047, %v1030
      %1055 = vst.msk [vmem:[#allocation3 + $0x1c] sm:$0xf] %vm1047, %v1032
      %1056 = vst.msk [vmem:[#allocation3 + $0x20] sm:$0xf] %vm1047, %v1034
      %1057 = vst.msk [vmem:[#allocation3 + $0x24] sm:$0xf] %vm1047, %v1036
      %v1058 = vld [vmem:[%s164 + $0x8] sm:$0x8]
      %v1059 = vld [vmem:[%s164 + $0xc] sm:$0xf]
      %v1060 = vld [vmem:[%s164 + $0x10] sm:$0xf]
      %v1061 = vld [vmem:[%s164 + $0x14] sm:$0xf]
      %v1062 = vld [vmem:[%s164 + $0x18] sm:$0xf]
      %v1063 = vld [vmem:[%s164 + $0x1c] sm:$0xf]
      %v1064 = vld [vmem:[%s164 + $0x20] sm:$0xf]
      %v1065 = vld [vmem:[%s164 + $0x24] sm:$0xf]
      %v1066 = vld [vmem:[%s164 + $0x28] sm:$0xf]
      %v1067 = vld [vmem:[%s164 + $0x2c] sm:$0xf]
      %v1068 = vld [vmem:[%s164 + $0x30] sm:$0x7]
      %vm1080 = vcmask 1040384
      %vm1081 = vcmask 1044484
      %vm1082 = vmor %vm1080, %vm1081
      %v1083 = vrot.slane %v1058, 7
      %v1084 = vrot.slane %v1083, 4
      %v1085 = vrot.slane %v1059, 7
      %v1086 = vsel %vm1082, %v1084, %v1085
      %v1087 = vrot.slane %v1085, 4
      %v1088 = vrot.slane %v1060, 7
      %v1089 = vsel %vm1082, %v1087, %v1088
      %v1090 = vrot.slane %v1088, 4
      %v1091 = vrot.slane %v1061, 7
      %v1092 = vsel %vm1082, %v1090, %v1091
      %v1093 = vrot.slane %v1091, 4
      %v1094 = vrot.slane %v1062, 7
      %v1095 = vsel %vm1082, %v1093, %v1094
      %v1096 = vrot.slane %v1094, 4
      %v1097 = vrot.slane %v1063, 7
      %v1098 = vsel %vm1082, %v1096, %v1097
      %v1099 = vrot.slane %v1097, 4
      %v1100 = vrot.slane %v1064, 7
      %v1101 = vsel %vm1082, %v1099, %v1100
      %v1102 = vrot.slane %v1100, 4
      %v1103 = vrot.slane %v1065, 7
      %v1104 = vsel %vm1082, %v1102, %v1103
      %v1105 = vrot.slane %v1103, 4
      %v1106 = vrot.slane %v1066, 7
      %v1107 = vsel %vm1082, %v1105, %v1106
      %v1108 = vrot.slane %v1106, 4
      %v1109 = vrot.slane %v1067, 7
      %v1110 = vsel %vm1082, %v1108, %v1109
      %v1111 = vrot.slane %v1109, 4
      %v1112 = vrot.slane %v1068, 7
      %v1113 = vsel %vm1082, %v1111, %v1112
      %1114 = vrot.lane.b32.xlu0 %v1086, 64
      %v1115 = vpop.permute.xlu0 %1114
      %1116 = vrot.lane.b32.xlu0 %v1089, 64
      %v1117 = vpop.permute.xlu0 %1116
      %1118 = vrot.lane.b32.xlu0 %v1092, 64
      %v1119 = vpop.permute.xlu0 %1118
      %1120 = vrot.lane.b32.xlu0 %v1095, 64
      %v1121 = vpop.permute.xlu0 %1120
      %1122 = vrot.lane.b32.xlu0 %v1098, 64
      %v1123 = vpop.permute.xlu0 %1122
      %1124 = vrot.lane.b32.xlu0 %v1101, 64
      %v1125 = vpop.permute.xlu0 %1124
      %1126 = vrot.lane.b32.xlu0 %v1104, 64
      %v1127 = vpop.permute.xlu0 %1126
      %1128 = vrot.lane.b32.xlu0 %v1107, 64
      %v1129 = vpop.permute.xlu0 %1128
      %1130 = vrot.lane.b32.xlu0 %v1110, 64
      %v1131 = vpop.permute.xlu0 %1130
      %1132 = vrot.lane.b32.xlu0 %v1113, 64
      %v1133 = vpop.permute.xlu0 %1132
      %vm1144 = vcmask 585216
      %1145 = vst.msk [vmem:[#allocation3] sm:$0xf] %vm1144, %v1115
      %1146 = vst.msk [vmem:[#allocation3 + $0x4] sm:$0xf] %vm1144, %v1117
      %1147 = vst.msk [vmem:[#allocation3 + $0x8] sm:$0xf] %vm1144, %v1119
      %1148 = vst.msk [vmem:[#allocation3 + $0xc] sm:$0xf] %vm1144, %v1121
      %1149 = vst.msk [vmem:[#allocation3 + $0x10] sm:$0xf] %vm1144, %v1123
      %1150 = vst.msk [vmem:[#allocation3 + $0x14] sm:$0xf] %vm1144, %v1125
      %1151 = vst.msk [vmem:[#allocation3 + $0x18] sm:$0xf] %vm1144, %v1127
      %1152 = vst.msk [vmem:[#allocation3 + $0x1c] sm:$0xf] %vm1144, %v1129
      %1153 = vst.msk [vmem:[#allocation3 + $0x20] sm:$0xf] %vm1144, %v1131
      %1154 = vst.msk [vmem:[#allocation3 + $0x24] sm:$0xf] %vm1144, %v1133
      %v1155 = vld [vmem:[#allocation3] sm:$0xf]
      %v1156 = vld [vmem:[#allocation3 + $0x4] sm:$0xf]
      %v1157 = vld [vmem:[#allocation3 + $0x8] sm:$0xf]
      %v1158 = vld [vmem:[#allocation3 + $0xc] sm:$0xf]
      %v1159 = vld [vmem:[#allocation3 + $0x10] sm:$0xf]
      %v1160 = vld [vmem:[#allocation3 + $0x14] sm:$0xf]
      %v1161 = vld [vmem:[#allocation3 + $0x18] sm:$0xf]
      %v1162 = vld [vmem:[#allocation3 + $0x1c] sm:$0xf]
      %v1163 = vld [vmem:[#allocation3 + $0x20] sm:$0xf]
      %v1164 = vld [vmem:[#allocation3 + $0x24] sm:$0xf]
      %v1165 = vld [vmem:[%s1] sm:$0xf]
      %v1166 = vld [vmem:[%s1 + $0x4] sm:$0xf]
      %v1167 = vld [vmem:[%s1 + $0x8] sm:$0xf]
      %v1168 = vld [vmem:[%s1 + $0xc] sm:$0xf]
      %v1169 = vld [vmem:[%s1 + $0x10] sm:$0xf]
      %v1170 = vld [vmem:[%s1 + $0x14] sm:$0xf]
      %v1171 = vld [vmem:[%s1 + $0x18] sm:$0xf]
      %v1172 = vld [vmem:[%s1 + $0x1c] sm:$0xf]
      %v1173 = vld [vmem:[%s1 + $0x20] sm:$0xf]
      %v1184 = vunpack.c.l.b16 %v1155
      %v1185 = vunpack.c.l.b16 %v1156
      %v1186 = vunpack.c.l.b16 %v1157
      %v1187 = vunpack.c.l.b16 %v1158
      %v1188 = vunpack.c.l.b16 %v1159
      %v1189 = vunpack.c.l.b16 %v1160
      %v1190 = vunpack.c.l.b16 %v1161
      %v1191 = vunpack.c.l.b16 %v1162
      %v1192 = vunpack.c.l.b16 %v1163
      %v1193 = vunpack.c.l.b16 %v1164
      %v1194 = vpack.c.b16 %v1185, %v1184
      %v1195 = vpack.c.b16 %v1187, %v1186
      %v1196 = vpack.c.b16 %v1189, %v1188
      %v1197 = vpack.c.b16 %v1191, %v1190
      %v1198 = vpack.c.b16 %v1193, %v1192
      %v1208 = vunpack.c.l.b16 %v1165
      %v1209 = vunpack.c.l.b16 %v1166
      %v1210 = vunpack.c.l.b16 %v1167
      %v1211 = vunpack.c.l.b16 %v1168
      %v1212 = vunpack.c.l.b16 %v1169
      %v1213 = vunpack.c.l.b16 %v1170
      %v1214 = vunpack.c.l.b16 %v1171
      %v1215 = vunpack.c.l.b16 %v1172
      %v1216 = vunpack.c.l.b16 %v1173
      %v1217 = vpack.c.b16 %v1209, %v1208
      %v1218 = vpack.c.b16 %v1211, %v1210
      %v1219 = vpack.c.b16 %v1213, %v1212
      %v1220 = vpack.c.b16 %v1215, %v1214
      %v1221 = vpack.c.b16 %v1216, %v1216
      %vm1226 = vcmask 588800
      %v1228 = vsel %vm1226, %v1194, 0
      %v1231 = vsel %vm1226, %v1195, 0
      %v1234 = vsel %vm1226, %v1196, 0
      %v1237 = vsel %vm1226, %v1197, 0
      %v1240 = vsel %vm1226, %v1198, 0
      %vm1242 = vcmask 1043456
      %v1244 = vsel %vm1242, %v1221, 0
      %1246 = vmatprep.subr.bf16.mxu0 0
      %1247 = vmatpush1.bf16.msra.mxu0 0
      %1248 = vmatprep.subr.bf16.mxu0 0
      %1249 = vmatpush1.bf16.msra.mxu0 0
      %1250 = vmatprep.subr.bf16.mxu0 0
      %1251 = vmatpush1.bf16.msra.mxu0 0
      %1252 = vmatprep.subr.bf16.mxu0 0
      %1253 = vmatpush1.bf16.msra.mxu0 %v1244
      %1254 = vmatprep.subr.bf16.mxu0 0
      %1255 = vmatpush1.bf16.msra.mxu0 %v1220
      %1256 = vmatprep.subr.bf16.mxu0 0
      %1257 = vmatpush1.bf16.msra.mxu0 %v1219
      %1258 = vmatprep.subr.bf16.mxu0 0
      %1259 = vmatpush1.bf16.msra.mxu0 %v1218
      %1260 = vmatprep.subr.bf16.mxu0 0
      %1261 = vmatpush1.bf16.msra.mxu0 %v1217
      %1262 = vmatprep.subr.bf16.mxu0 0
      %1263 = vmatpush2.bf16.msra.mxu0 0
      %1264 = vmatprep.subr.bf16.mxu0 0
      %1265 = vmatpush2.bf16.msra.mxu0 0
      %1266 = vmatprep.subr.bf16.mxu0 0
      %1267 = vmatpush2.bf16.msra.mxu0 0
      %1268 = vmatprep.subr.bf16.mxu0 0
      %1269 = vmatpush2.bf16.msra.mxu0 0
      %1270 = vmatprep.subr.bf16.mxu0 0
      %1271 = vmatpush2.bf16.msra.mxu0 0
      %1272 = vmatprep.subr.bf16.mxu0 0
      %1273 = vmatpush2.bf16.msra.mxu0 0
      %1274 = vmatprep.subr.bf16.mxu0 0
      %1275 = vmatpush2.bf16.msra.mxu0 0
      %1276 = vmatprep.subr.bf16.mxu0 0
      %1277 = vmatpush2.bf16.msra.mxu0 0
      %1278 = vmatprep.mubr.bf16.mxu0 0
      %1279 = vmatmul.mubr.bf16.gmra.mxu0 %v1228
      %v1280 = vpop.f32.mrf.mxu0
      %v1281 = vadd.f32 0.0, %v1280
      %v1282 = vpop.f32.mrf.mxu0
      %v1283 = vpop.f32.mrf.mxu0
      %v1284 = vadd.f32 0.0, %v1283
      %v1285 = vpop.f32.mrf.mxu0
      %1286 = vmatprep.mubr.bf16.mxu0 0
      %1287 = vmatmul.mubr.bf16.gmra.mxu0 %v1231
      %v1288 = vpop.f32.mrf.mxu0
      %v1289 = vadd.f32 0.0, %v1288
      %v1290 = vpop.f32.mrf.mxu0
      %v1291 = vpop.f32.mrf.mxu0
      %v1292 = vadd.f32 0.0, %v1291
      %v1293 = vpop.f32.mrf.mxu0
      %1294 = vmatprep.mubr.bf16.mxu0 0
      %1295 = vmatmul.mubr.bf16.gmra.mxu0 %v1234
      %v1296 = vpop.f32.mrf.mxu0
      %v1297 = vadd.f32 0.0, %v1296
      %v1298 = vpop.f32.mrf.mxu0
      %v1299 = vpop.f32.mrf.mxu0
      %v1300 = vadd.f32 0.0, %v1299
      %v1301 = vpop.f32.mrf.mxu0
      %1302 = vmatprep.mubr.bf16.mxu0 0
      %1303 = vmatmul.mubr.bf16.gmra.mxu0 %v1237
      %v1304 = vpop.f32.mrf.mxu0
      %v1305 = vadd.f32 0.0, %v1304
      %v1306 = vpop.f32.mrf.mxu0
      %v1307 = vpop.f32.mrf.mxu0
      %v1308 = vadd.f32 0.0, %v1307
      %v1309 = vpop.f32.mrf.mxu0
      %1310 = vmatprep.mubr.bf16.mxu0 0
      %1311 = vmatmul.mubr.bf16.gmra.mxu0 %v1240
      %v1312 = vpop.f32.mrf.mxu0
      %v1313 = vadd.f32 0.0, %v1312
      %v1314 = vpop.f32.mrf.mxu0
      %v1315 = vpop.f32.mrf.mxu0
      %v1316 = vadd.f32 0.0, %v1315
      %v1317 = vpop.f32.mrf.mxu0
      %1318 = vdwg.mxu0
      %vm1319 = vcmask 64512
      %1320 = vst.msk [vmem:[#allocation2] sm:$0xff] %vm1319, %v1281
      %1321 = vst.msk [vmem:[#allocation2 + $0x8] sm:$0xff] %vm1319, %v1284
      %1322 = vst.msk [vmem:[#allocation2 + $0x10] sm:$0xff] %vm1319, %v1289
      %1323 = vst.msk [vmem:[#allocation2 + $0x18] sm:$0xff] %vm1319, %v1292
      %1324 = vst.msk [vmem:[#allocation2 + $0x20] sm:$0xff] %vm1319, %v1297
      %1325 = vst.msk [vmem:[#allocation2 + $0x28] sm:$0xff] %vm1319, %v1300
      %1326 = vst.msk [vmem:[#allocation2 + $0x30] sm:$0xff] %vm1319, %v1305
      %1327 = vst.msk [vmem:[#allocation2 + $0x38] sm:$0xff] %vm1319, %v1308
      %1328 = vst.msk [vmem:[#allocation2 + $0x40] sm:$0xff] %vm1319, %v1313
      %1329 = vst.msk [vmem:[#allocation2 + $0x48] sm:$0xff] %vm1319, %v1316
      %v1330 = vld [vmem:[#allocation2] sm:$0xff]
      %v1331 = vld [vmem:[#allocation2 + $0x8] sm:$0xff]
      %v1332 = vld [vmem:[#allocation2 + $0x10] sm:$0xff]
      %v1333 = vld [vmem:[#allocation2 + $0x18] sm:$0xff]
      %v1334 = vld [vmem:[#allocation2 + $0x20] sm:$0xff]
      %v1335 = vld [vmem:[#allocation2 + $0x28] sm:$0xff]
      %v1336 = vld [vmem:[#allocation2 + $0x30] sm:$0xff]
      %v1337 = vld [vmem:[#allocation2 + $0x38] sm:$0xff]
      %v1338 = vld [vmem:[#allocation2 + $0x40] sm:$0xff]
      %v1339 = vld [vmem:[#allocation2 + $0x48] sm:$0xff]
      %v1340 = vld [vmem:[%s2] sm:$0xff]
      %v1341 = vld [vmem:[%s2 + $0x8] sm:$0xff]
      %v1342 = vld [vmem:[%s2 + $0x10] sm:$0xff]
      %v1343 = vld [vmem:[%s2 + $0x18] sm:$0xff]
      %v1344 = vld [vmem:[%s2 + $0x20] sm:$0xff]
      %v1345 = vld [vmem:[%s2 + $0x28] sm:$0xff]
      %v1346 = vld [vmem:[%s2 + $0x30] sm:$0xff]
      %v1347 = vld [vmem:[%s2 + $0x38] sm:$0xff]
      %v1348 = vld [vmem:[%s2 + $0x40] sm:$0xff]
      %v1349 = vld [vmem:[%s2 + $0x48] sm:$0xff]
      %1351 = vset.pattern.permute.xlu0 0
      %1352 = vperm.xlu0 %1351, %v1340
      %v1353 = vpop.permute.xlu0 %1352
      %1356 = vset.pattern.permute.xlu0 0
      %1357 = vperm.xlu0 %1356, %v1341
      %v1358 = vpop.permute.xlu0 %1357
      %1361 = vset.pattern.permute.xlu0 0
      %1362 = vperm.xlu0 %1361, %v1342
      %v1363 = vpop.permute.xlu0 %1362
      %1366 = vset.pattern.permute.xlu0 0
      %1367 = vperm.xlu0 %1366, %v1343
      %v1368 = vpop.permute.xlu0 %1367
      %1371 = vset.pattern.permute.xlu0 0
      %1372 = vperm.xlu0 %1371, %v1344
      %v1373 = vpop.permute.xlu0 %1372
      %1376 = vset.pattern.permute.xlu0 0
      %1377 = vperm.xlu0 %1376, %v1345
      %v1378 = vpop.permute.xlu0 %1377
      %1381 = vset.pattern.permute.xlu0 0
      %1382 = vperm.xlu0 %1381, %v1346
      %v1383 = vpop.permute.xlu0 %1382
      %1386 = vset.pattern.permute.xlu0 0
      %1387 = vperm.xlu0 %1386, %v1347
      %v1388 = vpop.permute.xlu0 %1387
      %1391 = vset.pattern.permute.xlu0 0
      %1392 = vperm.xlu0 %1391, %v1348
      %v1393 = vpop.permute.xlu0 %1392
      %1396 = vset.pattern.permute.xlu0 0
      %1397 = vperm.xlu0 %1396, %v1349
      %v1398 = vpop.permute.xlu0 %1397
      %v1400 = vmul.f32 %v1330, %v1353
      %v1401 = vmul.f32 %v1331, %v1358
      %v1402 = vmul.f32 %v1332, %v1363
      %v1403 = vmul.f32 %v1333, %v1368
      %v1404 = vmul.f32 %v1334, %v1373
      %v1405 = vmul.f32 %v1335, %v1378
      %v1406 = vmul.f32 %v1336, %v1383
      %v1407 = vmul.f32 %v1337, %v1388
      %v1408 = vmul.f32 %v1338, %v1393
      %v1409 = vmul.f32 %v1339, %v1398
      %v1410 = vsel %vm1319, %v1400, 0.0
      %v1411 = vsel %vm1319, %v1401, 0.0
      %v1412 = vadd.f32 %v1410, %v1411
      %v1413 = vsel %vm1319, %v1402, 0.0
      %v1414 = vadd.f32 %v1412, %v1413
      %v1415 = vsel %vm1319, %v1403, 0.0
      %v1416 = vadd.f32 %v1414, %v1415
      %v1417 = vsel %vm1319, %v1404, 0.0
      %v1418 = vadd.f32 %v1416, %v1417
      %v1419 = vsel %vm1319, %v1405, 0.0
      %v1420 = vadd.f32 %v1418, %v1419
      %v1421 = vsel %vm1319, %v1406, 0.0
      %v1422 = vadd.f32 %v1420, %v1421
      %v1423 = vsel %vm1319, %v1407, 0.0
      %v1424 = vadd.f32 %v1422, %v1423
      %v1425 = vsel %vm1319, %v1408, 0.0
      %v1426 = vadd.f32 %v1424, %v1425
      %v1427 = vsel %vm1319, %v1409, 0.0
      %v1428 = vadd.f32 %v1426, %v1427
      %v1429 = vrot.slane %v1428, 4
      %v1430 = vadd.f32 %v1428, %v1429
      %v1431 = vrot.slane %v1430, 2
      %v1432 = vadd.f32 %v1430, %v1431
      %v1433 = vrot.slane %v1432, 1
      %v1434 = vadd.f32 %v1432, %v1433
      %v1435 = vmul.f32 %v1434, 0.015625
      %v1436 = vsub.f32 %v1330, %v1435
      %v1437 = vsub.f32 %v1331, %v1435
      %v1438 = vsub.f32 %v1332, %v1435
      %v1439 = vsub.f32 %v1333, %v1435
      %v1440 = vsub.f32 %v1334, %v1435
      %v1441 = vsub.f32 %v1335, %v1435
      %v1442 = vsub.f32 %v1336, %v1435
      %v1443 = vsub.f32 %v1337, %v1435
      %v1444 = vsub.f32 %v1338, %v1435
      %v1445 = vsub.f32 %v1339, %v1435
      %v1446 = vmul.f32 %v1436, %v1353
      %v1447 = vmul.f32 %v1437, %v1358
      %v1448 = vmul.f32 %v1438, %v1363
      %v1449 = vmul.f32 %v1439, %v1368
      %v1450 = vmul.f32 %v1440, %v1373
      %v1451 = vmul.f32 %v1441, %v1378
      %v1452 = vmul.f32 %v1442, %v1383
      %v1453 = vmul.f32 %v1443, %v1388
      %v1454 = vmul.f32 %v1444, %v1393
      %v1455 = vmul.f32 %v1445, %v1398
      %vm1456 = vcmask 57344
      %1457 = vst.msk [vmem:[%s168] sm:$0x1] %vm1456, %v1434
      %v1458 = vmul.f32 %v1446, %v1446
      %v1459 = vmul.f32 %v1447, %v1447
      %v1460 = vmul.f32 %v1448, %v1448
      %v1461 = vmul.f32 %v1449, %v1449
      %v1462 = vmul.f32 %v1450, %v1450
      %v1463 = vmul.f32 %v1451, %v1451
      %v1464 = vmul.f32 %v1452, %v1452
      %v1465 = vmul.f32 %v1453, %v1453
      %v1466 = vmul.f32 %v1454, %v1454
      %v1467 = vmul.f32 %v1455, %v1455
      %v1468 = vsel %vm1319, %v1458, 0.0
      %v1469 = vsel %vm1319, %v1459, 0.0
      %v1470 = vadd.f32 %v1468, %v1469
      %v1471 = vsel %vm1319, %v1460, 0.0
      %v1472 = vadd.f32 %v1470, %v1471
      %v1473 = vsel %vm1319, %v1461, 0.0
      %v1474 = vadd.f32 %v1472, %v1473
      %v1475 = vsel %vm1319, %v1462, 0.0
      %v1476 = vadd.f32 %v1474, %v1475
      %v1477 = vsel %vm1319, %v1463, 0.0
      %v1478 = vadd.f32 %v1476, %v1477
      %v1479 = vsel %vm1319, %v1464, 0.0
      %v1480 = vadd.f32 %v1478, %v1479
      %v1481 = vsel %vm1319, %v1465, 0.0
      %v1482 = vadd.f32 %v1480, %v1481
      %v1483 = vsel %vm1319, %v1466, 0.0
      %v1484 = vadd.f32 %v1482, %v1483
      %v1485 = vsel %vm1319, %v1467, 0.0
      %v1486 = vadd.f32 %v1484, %v1485
      %v1487 = vrot.slane %v1486, 4
      %v1488 = vadd.f32 %v1486, %v1487
      %v1489 = vrot.slane %v1488, 2
      %v1490 = vadd.f32 %v1488, %v1489
      %v1491 = vrot.slane %v1490, 1
      %v1492 = vadd.f32 %v1490, %v1491
      %1493 = vst.msk [vmem:[%s168 + $0x1] sm:$0x1] %vm1456, %v1492
      %p1494 = scmp.lt.s32.totalorder %s14, 1
      %s1495 = scalar_select %p1494, %s14, 1
      %s1496 = smul.addr %s1495, 2
      %s1497 = scalar_lea.vmem %s3, %s1496
      // Predicated region
      $region33: #{down_forward.6} parent=31 // pred_check
        %p1498 = pneg %p100
      $region34: #{down_forward.6} parent=31 // pred_check_branch
        %1500 = sbr.rel (%p1498) target = $region36
      $region35: #{down_forward.6} parent=31 // pred_region
        _
      $region36: #{down_forward.6} parent=31 // pred_fallthru
        _
    $region32: #{down_forward.6} parent=5 // pred_fallthru
      _
    %p1501 = scmp.le.s32.totalorder 2, %s9
    // Predicated region
    $region37: #{down_forward.6} parent=5 // pred_check
      %p1502 = pneg %p1501
    $region38: #{down_forward.6} parent=5 // pred_check_branch
      %1504 = sbr.rel (%p1502) target = $region40
    $region39: #{down_forward.6} parent=5 // pred_region
      %s1505 = ssub.s32 %s9, 2
      // Predicated region
      $region41: #{down_forward.6} parent=39 // pred_check
        %p1506 = pneg %p106
      $region42: #{down_forward.6} parent=39 // pred_check_branch
        %1508 = sbr.rel (%p1506) target = $region44
      $region43: #{down_forward.6} parent=39 // pred_region
        %p1509 = scmp.lt.s32.totalorder %s15, 1
        %s1510 = scalar_select %p1509, %s15, 1
        %s1511 = smul.addr %s1510, 2
        %s1512 = scalar_lea.vmem %s3, %s1511
      $region44: #{down_forward.6} parent=39 // pred_fallthru
        _
    $region40: #{down_forward.6} parent=5 // pred_fallthru
      _
  $region6: #{down_forward.6} parent=0 // loop_footer
    %s13 = sadd.s32 1, %s9
  $region7: #{down_forward.6} parent=0 // loop_footer_branch
    %8 = sbr.rel target = $region3
  $region8: #{down_forward.6} parent=0 // loop_exit
    _

</llo_original>
